<compile_context>
chip_gen: v6e
topology: v6e:2x2x1
jax: 0.10.0
libtpu: 0.0.40
codegen_flags: <defaults>
</compile_context>

<pallas_src>
import functools

import jax
import jax.numpy as jnp
import numpy as np
from jax import lax
from jax.experimental import pallas as pl
from jax.experimental.pallas import tpu as pltpu


# ----------------------------------------------------------------------------
# generate_spatial_batch (standard 8-dim spatial coords; identical per batch,
# so we generate one (vh*vw, 8) table and broadcast over the batch).
# ----------------------------------------------------------------------------
def generate_spatial_batch(vh, vw):
    ws = np.arange(vw, dtype=np.float32)
    hh = np.arange(vh, dtype=np.float32)
    xmin = ws / vw * 2.0 - 1.0
    xmax = (ws + 1.0) / vw * 2.0 - 1.0
    xctr = 0.5 * (xmin + xmax)
    ymin = hh / vh * 2.0 - 1.0
    ymax = (hh + 1.0) / vh * 2.0 - 1.0
    yctr = 0.5 * (ymin + ymax)
    sp = np.zeros((vh, vw, 8), dtype=np.float32)
    sp[..., 0] = xmin[None, :]
    sp[..., 1] = ymin[:, None]
    sp[..., 2] = xmax[None, :]
    sp[..., 3] = ymax[:, None]
    sp[..., 4] = xctr[None, :]
    sp[..., 5] = yctr[:, None]
    sp[..., 6] = 1.0 / vw
    sp[..., 7] = 1.0 / vh
    return sp.reshape(vh * vw, 8)


def _sigmoid_eup(x):
    # Exact sigmoid rewritten so it lowers to a tanh (EUP slot) + cheap VALU
    # ops instead of exp + divide.
    return 0.5 * jnp.tanh(0.5 * x) + 0.5


# ----------------------------------------------------------------------------
# Pallas kernel: one row block (one or more batch samples' pixel rows) per
# grid step; all seq_len LSTM steps run inside the kernel.  Per step the only
# matmul is h @ W_hh^T (everything else was folded into word_gate / pix_gate).
# ----------------------------------------------------------------------------
def rmi_lstm_kernel(word_gate_ref,   # VMEM (bpb, S, 4R) f32: per-(b,t) input proj
                    pix_gate_ref,    # VMEM (rows, 4R)   f32: per-pixel proj + bias
                    whh_ref,         # VMEM (R, 4R)      bf16: W_hh^T
                    out_ref,         # VMEM (rows, R)    f32
                    *, seq_len, rnn_dim, pix_per_batch, batches_per_block):
    R = rnn_dim
    G = 4 * R
    P = pix_per_batch
    rows = batches_per_block * P

    def step(t, carry):
        h, c = carry                                          # (rows, R) f32
        # Single wide MXU matmul for all four gates (bf16 in, f32 accumulate).
        gates = jnp.dot(h.astype(jnp.bfloat16), whh_ref[...],
                        preferred_element_type=jnp.float32)   # (rows, 4R)
        gates = gates + pix_gate_ref[...]
        # Per-step word contribution: one (1, 4R) row per batch in this block,
        # broadcast over that batch's P pixel rows.
        if batches_per_block == 1:
            gates = gates + word_gate_ref[0, pl.ds(t, 1), :]          # (1, 4R)
        else:
            w_add = jnp.concatenate(
                [jnp.broadcast_to(word_gate_ref[j, pl.ds(t, 1), :], (P, G))
                 for j in range(batches_per_block)], axis=0)          # (rows, 4R)
            gates = gates + w_add

        # PyTorch LSTM gate order: i, f, g, o.
        gi = gates[:, 0 * R:1 * R]
        gf = gates[:, 1 * R:2 * R]
        gg = gates[:, 2 * R:3 * R]
        go = gates[:, 3 * R:4 * R]
        c_new = _sigmoid_eup(gf) * c + _sigmoid_eup(gi) * jnp.tanh(gg)
        h_new = _sigmoid_eup(go) * jnp.tanh(c_new)
        return h_new, c_new

    h0 = jnp.zeros((rows, R), jnp.float32)
    c0 = jnp.zeros((rows, R), jnp.float32)
    # Register-carried recurrent state; fully unrolled (S is small) so the
    # LLO scheduler sees across steps.
    h_final, _ = lax.fori_loop(0, seq_len, step, (h0, c0), unroll=True)
    out_ref[...] = h_final


def _pick_row_block(n_batch, pix_per_batch):
    """Rows per grid step.

    Single-TC chips (v5e/v6e): fuse the whole batch into one row block
    (grid=(1,)) -> half the serial LSTM chains, full MXU rows.
    2-TC chips (v7x): two row blocks so the 'parallel' grid axis shards the
    work across both TensorCores.
    """
    total = n_batch * pix_per_batch
    try:
        kind = jax.devices()[0].device_kind.lower()
    except Exception:
        kind = ""
    two_tc = ("v7" in kind) or ("7x" in kind)
    if two_tc and n_batch % 2 == 0:
        return (n_batch // 2) * pix_per_batch
    return total


# ----------------------------------------------------------------------------
# Wrapper: fold the loop-invariant input projections in plain JAX, then run
# the recurrent kernel.
# ----------------------------------------------------------------------------
def rmi_forward(x, embedding, word_hidden_state, params):
    N, C, vh, vw = x.shape
    S = embedding.shape[1]
    H = word_hidden_state.shape[2]
    E = embedding.shape[2]
    R = params["Whh"].shape[1]          # rnn_dim (Whh is (4R, R))
    P = vh * vw
    G = 4 * R
    NR = N * P

    assert R % 128 == 0, "rnn_dim must be a multiple of 128 (lane tiling)"
    assert P % 8 == 0, "vh*vw must be a multiple of 8 (sublane tiling)"

    Wih = params["Wih"]                 # (4R, H+E+C+8), concat order hs|emb|x|sp
    Whh = params["Whh"]                 # (4R, R)
    bias = params["bih"] + params["bhh"]

    W_hs = Wih[:, :H]
    W_emb = Wih[:, H:H + E]
    W_x = Wih[:, H + E:H + E + C]
    W_sp = Wih[:, H + E + C:]

    # F.normalize(word_hidden_state, p=2, dim=2)
    hs = word_hidden_state
    hs = hs / jnp.maximum(
        jnp.sqrt(jnp.sum(hs * hs, axis=2, keepdims=True)), 1e-12)

    hp = lax.Precision.HIGHEST
    # Per-(batch, word) contribution to the gate pre-activations.     (N, S, 4R)
    word_gate = (jnp.einsum("nsh,gh->nsg", hs, W_hs, precision=hp)
                 + jnp.einsum("nse,ge->nsg", embedding, W_emb, precision=hp)
                 ).astype(jnp.float32)

    # Per-pixel constant contribution (visual + spatial + bias).     (N*P, 4R)
    x_pix = jnp.transpose(x, (0, 2, 3, 1)).reshape(N, P, C)
    spatial = jnp.asarray(generate_spatial_batch(vh, vw))             # (P, 8)
    pix_gate = (jnp.einsum("npc,gc->npg", x_pix, W_x, precision=hp)
                + jnp.einsum("pk,gk->pg", spatial, W_sp, precision=hp)[None]
                + bias).astype(jnp.float32).reshape(NR, G)

    whh_t = jnp.transpose(Whh).astype(jnp.bfloat16)                   # (R, 4R)

    row_block = _pick_row_block(N, P)
    bpb = row_block // P                # batches per row block
    num_blocks = NR // row_block

    kernel = functools.partial(rmi_lstm_kernel, seq_len=S, rnn_dim=R,
                               pix_per_batch=P, batches_per_block=bpb)
    out = pl.pallas_call(
        kernel,
        out_shape=jax.ShapeDtypeStruct((NR, R), jnp.float32),
        grid_spec=pltpu.PrefetchScalarGridSpec(
            num_scalar_prefetch=0,
            grid=(num_blocks,),
            in_specs=[
                pl.BlockSpec((bpb, S, G), lambda i: (i, 0, 0)),   # word gates
                pl.BlockSpec((row_block, G), lambda i: (i, 0)),   # pixel gates
                pl.BlockSpec((R, G), lambda i: (0, 0)),           # W_hh^T
            ],
            out_specs=pl.BlockSpec((row_block, R), lambda i: (i, 0)),
        ),
        compiler_params=pltpu.CompilerParams(
            dimension_semantics=("parallel",)),
    )(word_gate, pix_gate, whh_t)

    # hn -> (N, vh, vw, R) -> NCHW
    return jnp.transpose(out.reshape(N, vh, vw, R), (0, 3, 1, 2))


# ----------------------------------------------------------------------------
# Pure-JAX reference mirroring the PyTorch forward (single-layer LSTM per
# pixel, final hidden state), for a correctness check.
# ----------------------------------------------------------------------------
def rmi_reference(x, embedding, word_hidden_state, params):
    N, C, vh, vw = x.shape
    P = vh * vw
    S = embedding.shape[1]
    H = word_hidden_state.shape[2]
    E = embedding.shape[2]
    R = params["Whh"].shape[1]

    hs = word_hidden_state
    hs = hs / jnp.maximum(
        jnp.sqrt(jnp.sum(hs * hs, axis=2, keepdims=True)), 1e-12)
    x_pix = jnp.transpose(x, (0, 2, 3, 1)).reshape(N, P, C)
    sp = jnp.broadcast_to(jnp.asarray(generate_spatial_batch(vh, vw))[None],
                          (N, P, 8))

    Wih, Whh = params["Wih"], params["Whh"]
    bias = params["bih"] + params["bhh"]
    hp = lax.Precision.HIGHEST

    h = jnp.zeros((N, P, R), jnp.float32)
    c = jnp.zeros((N, P, R), jnp.float32)
    for t in range(S):
        inp = jnp.concatenate(
            [jnp.broadcast_to(hs[:, t][:, None, :], (N, P, H)),
             jnp.broadcast_to(embedding[:, t][:, None, :], (N, P, E)),
             x_pix,
             sp], axis=-1)
        gates = (jnp.einsum("npd,gd->npg", inp, Wih, precision=hp)
                 + jnp.einsum("npr,gr->npg", h, Whh, precision=hp) + bias)
        gi, gf, gg, go = jnp.split(gates, 4, axis=-1)
        c = jax.nn.sigmoid(gf) * c + jax.nn.sigmoid(gi) * jnp.tanh(gg)
        h = jax.nn.sigmoid(go) * jnp.tanh(c)
    return jnp.transpose(h.reshape(N, vh, vw, R), (0, 3, 1, 2))


if __name__ == "__main__":
    key = jax.random.PRNGKey(0)

    # Small shapes consistent with the module's forward:
    N = 2                 # batch
    C = 128               # visual feature channels (x)
    vh = vw = 8           # spatial -> P = 64 pixels
    S = 8                 # seq_len
    H = 32                # word_hidden_state feature dim
    E = 32                # embedding dim
    R = 128               # rnn_dim (LSTM hidden size)
    D = H + E + C + 8     # concat_featrue_dim = LSTM input size

    keys = jax.random.split(key, 8)
    x = jax.random.normal(keys[0], (N, C, vh, vw), jnp.float32)
    embedding = jax.random.normal(keys[1], (N, S, E), jnp.float32)
    word_hidden_state = jax.random.normal(keys[2], (N, S, H), jnp.float32)

    # nn.LSTM single-layer parameters (gate order i, f, g, o).
    params = {
        "Wih": 0.05 * jax.random.normal(keys[3], (4 * R, D), jnp.float32),
        "Whh": 0.05 * jax.random.normal(keys[4], (4 * R, R), jnp.float32),
        "bih": 0.05 * jax.random.normal(keys[5], (4 * R,), jnp.float32),
        "bhh": 0.05 * jax.random.normal(keys[6], (4 * R,), jnp.float32),
    }

    out = jax.jit(rmi_forward)(x, embedding, word_hidden_state, params)
    out = jax.block_until_ready(out)
    assert out.shape == (N, R, vh, vw)

    ref = jax.jit(rmi_reference)(x, embedding, word_hidden_state, params)
    ref = jax.block_until_ready(ref)
    # bf16 MXU operands on the recurrent matmul -> small, bounded drift vs f32.
    np.testing.assert_allclose(np.asarray(out), np.asarray(ref),
                               atol=1e-2, rtol=1e-2)
    print("KERNEL_OK")
</pallas_src>

<mosaic_0001>
module attributes {stable_mosaic.version = 11 : i64} {
  func.func @rmi_lstm_kernel(%arg0: i32, %arg1: memref<2x8x512xf32, #tpu.memory_space<vmem>>, %arg2: memref<128x512xf32, #tpu.memory_space<vmem>>, %arg3: memref<128x512xbf16, #tpu.memory_space<vmem>>, %arg4: memref<128x128xf32, #tpu.memory_space<vmem>>) attributes {dimension_semantics = [#tpu.dimension_semantics<parallel>], iteration_bounds = array<i64: 1>, scalar_prefetch = 0 : i64, scratch_operands = 0 : i64, tpu.core_type = #tpu.core_type<tc>, window_params = [{transform_indices = @transform_0, window_bounds = array<i64: 2, 8, 512>}, {transform_indices = @transform_1, window_bounds = array<i64: 128, 512>}, {pipeline_mode = #tpu.pipeline_mode<synchronous>, transform_indices = @transform_2, window_bounds = array<i64: 128, 512>}, {transform_indices = @transform_3, window_bounds = array<i64: 128, 128>}]} {
    %cst = arith.constant 0.000000e+00 : f32
    %0 = vector.broadcast %cst : f32 to vector<128x128xf32>
    %cst_0 = arith.constant 0.000000e+00 : f32
    %1 = vector.broadcast %cst_0 : f32 to vector<128x128xf32>
    %c0_i32 = arith.constant 0 : i32
    %2 = arith.truncf %0 : vector<128x128xf32> to vector<128x128xbf16>
    %c0 = arith.constant 0 : index
    %c0_1 = arith.constant 0 : index
    %3 = vector.load %arg3[%c0, %c0_1] : memref<128x512xbf16, #tpu.memory_space<vmem>>, vector<128x512xbf16>
    %cst_2 = arith.constant dense<0.000000e+00> : vector<128x512xf32>
    %4 = tpu.matmul %2, %3, %cst_2 {dimension_numbers = #tpu.dot_dimension_numbers<[1], [0], [0], [1], [0, 0, 1, 1], [], []>} : vector<128x128xbf16>, vector<128x512xbf16>, vector<128x512xf32> -> vector<128x512xf32>
    %c0_3 = arith.constant 0 : index
    %c0_4 = arith.constant 0 : index
    %5 = vector.load %arg2[%c0_3, %c0_4] : memref<128x512xf32, #tpu.memory_space<vmem>>, vector<128x512xf32>
    %6 = arith.addf %4, %5 : vector<128x512xf32>
    %c0_5 = arith.constant 0 : index
    %7 = arith.index_cast %c0_i32 : i32 to index
    %c0_6 = arith.constant 0 : index
    %8 = vector.load %arg1[%c0_5, %7, %c0_6] : memref<2x8x512xf32, #tpu.memory_space<vmem>>, vector<1x1x512xf32>
    %9 = vector.shape_cast %8 : vector<1x1x512xf32> to vector<1x512xf32>
    %10 = vector.shape_cast %9 : vector<1x512xf32> to vector<1x512xf32>
    %11 = vector.broadcast %10 : vector<1x512xf32> to vector<64x512xf32>
    %c1 = arith.constant 1 : index
    %12 = arith.index_cast %c0_i32 : i32 to index
    %c0_7 = arith.constant 0 : index
    %13 = vector.load %arg1[%c1, %12, %c0_7] : memref<2x8x512xf32, #tpu.memory_space<vmem>>, vector<1x1x512xf32>
    %14 = vector.shape_cast %13 : vector<1x1x512xf32> to vector<1x512xf32>
    %15 = vector.shape_cast %14 : vector<1x512xf32> to vector<1x512xf32>
    %16 = vector.broadcast %15 : vector<1x512xf32> to vector<64x512xf32>
    %17 = tpu.concatenate %11, %16 in 0 : vector<64x512xf32>, vector<64x512xf32> -> vector<128x512xf32>
    %18 = arith.addf %6, %17 : vector<128x512xf32>
    %19 = vector.extract_strided_slice %18 {offsets = [0, 0], sizes = [128, 128], strides = [1, 1]} : vector<128x512xf32> to vector<128x128xf32>
    %20 = vector.extract_strided_slice %18 {offsets = [0, 128], sizes = [128, 128], strides = [1, 1]} : vector<128x512xf32> to vector<128x128xf32>
    %21 = vector.extract_strided_slice %18 {offsets = [0, 256], sizes = [128, 128], strides = [1, 1]} : vector<128x512xf32> to vector<128x128xf32>
    %22 = vector.extract_strided_slice %18 {offsets = [0, 384], sizes = [128, 128], strides = [1, 1]} : vector<128x512xf32> to vector<128x128xf32>
    %cst_8 = arith.constant 5.000000e-01 : f32
    %23 = vector.broadcast %cst_8 : f32 to vector<128x128xf32>
    %24 = arith.mulf %23, %20 : vector<128x128xf32>
    %25 = math.tanh %24 : vector<128x128xf32>
    %cst_9 = arith.constant 5.000000e-01 : f32
    %26 = vector.broadcast %cst_9 : f32 to vector<128x128xf32>
    %27 = arith.mulf %26, %25 : vector<128x128xf32>
    %cst_10 = arith.constant 5.000000e-01 : f32
    %28 = vector.broadcast %cst_10 : f32 to vector<128x128xf32>
    %29 = arith.addf %27, %28 : vector<128x128xf32>
    %30 = arith.mulf %29, %1 : vector<128x128xf32>
    %cst_11 = arith.constant 5.000000e-01 : f32
    %31 = vector.broadcast %cst_11 : f32 to vector<128x128xf32>
    %32 = arith.mulf %31, %19 : vector<128x128xf32>
    %33 = math.tanh %32 : vector<128x128xf32>
    %cst_12 = arith.constant 5.000000e-01 : f32
    %34 = vector.broadcast %cst_12 : f32 to vector<128x128xf32>
    %35 = arith.mulf %34, %33 : vector<128x128xf32>
    %cst_13 = arith.constant 5.000000e-01 : f32
    %36 = vector.broadcast %cst_13 : f32 to vector<128x128xf32>
    %37 = arith.addf %35, %36 : vector<128x128xf32>
    %38 = math.tanh %21 : vector<128x128xf32>
    %39 = arith.mulf %37, %38 : vector<128x128xf32>
    %40 = arith.addf %30, %39 : vector<128x128xf32>
    %cst_14 = arith.constant 5.000000e-01 : f32
    %41 = vector.broadcast %cst_14 : f32 to vector<128x128xf32>
    %42 = arith.mulf %41, %22 : vector<128x128xf32>
    %43 = math.tanh %42 : vector<128x128xf32>
    %cst_15 = arith.constant 5.000000e-01 : f32
    %44 = vector.broadcast %cst_15 : f32 to vector<128x128xf32>
    %45 = arith.mulf %44, %43 : vector<128x128xf32>
    %cst_16 = arith.constant 5.000000e-01 : f32
    %46 = vector.broadcast %cst_16 : f32 to vector<128x128xf32>
    %47 = arith.addf %45, %46 : vector<128x128xf32>
    %48 = math.tanh %40 : vector<128x128xf32>
    %49 = arith.mulf %47, %48 : vector<128x128xf32>
    %c1_i32 = arith.constant 1 : i32
    %50 = arith.truncf %49 : vector<128x128xf32> to vector<128x128xbf16>
    %c0_17 = arith.constant 0 : index
    %c0_18 = arith.constant 0 : index
    %51 = vector.load %arg3[%c0_17, %c0_18] : memref<128x512xbf16, #tpu.memory_space<vmem>>, vector<128x512xbf16>
    %cst_19 = arith.constant dense<0.000000e+00> : vector<128x512xf32>
    %52 = tpu.matmul %50, %51, %cst_19 {dimension_numbers = #tpu.dot_dimension_numbers<[1], [0], [0], [1], [0, 0, 1, 1], [], []>} : vector<128x128xbf16>, vector<128x512xbf16>, vector<128x512xf32> -> vector<128x512xf32>
    %c0_20 = arith.constant 0 : index
    %c0_21 = arith.constant 0 : index
    %53 = vector.load %arg2[%c0_20, %c0_21] : memref<128x512xf32, #tpu.memory_space<vmem>>, vector<128x512xf32>
    %54 = arith.addf %52, %53 : vector<128x512xf32>
    %c0_22 = arith.constant 0 : index
    %55 = arith.index_cast %c1_i32 : i32 to index
    %c0_23 = arith.constant 0 : index
    %56 = vector.load %arg1[%c0_22, %55, %c0_23] : memref<2x8x512xf32, #tpu.memory_space<vmem>>, vector<1x1x512xf32>
    %57 = vector.shape_cast %56 : vector<1x1x512xf32> to vector<1x512xf32>
    %58 = vector.shape_cast %57 : vector<1x512xf32> to vector<1x512xf32>
    %59 = vector.broadcast %58 : vector<1x512xf32> to vector<64x512xf32>
    %c1_24 = arith.constant 1 : index
    %60 = arith.index_cast %c1_i32 : i32 to index
    %c0_25 = arith.constant 0 : index
    %61 = vector.load %arg1[%c1_24, %60, %c0_25] : memref<2x8x512xf32, #tpu.memory_space<vmem>>, vector<1x1x512xf32>
    %62 = vector.shape_cast %61 : vector<1x1x512xf32> to vector<1x512xf32>
    %63 = vector.shape_cast %62 : vector<1x512xf32> to vector<1x512xf32>
    %64 = vector.broadcast %63 : vector<1x512xf32> to vector<64x512xf32>
    %65 = tpu.concatenate %59, %64 in 0 : vector<64x512xf32>, vector<64x512xf32> -> vector<128x512xf32>
    %66 = arith.addf %54, %65 : vector<128x512xf32>
    %67 = vector.extract_strided_slice %66 {offsets = [0, 0], sizes = [128, 128], strides = [1, 1]} : vector<128x512xf32> to vector<128x128xf32>
    %68 = vector.extract_strided_slice %66 {offsets = [0, 128], sizes = [128, 128], strides = [1, 1]} : vector<128x512xf32> to vector<128x128xf32>
    %69 = vector.extract_strided_slice %66 {offsets = [0, 256], sizes = [128, 128], strides = [1, 1]} : vector<128x512xf32> to vector<128x128xf32>
    %70 = vector.extract_strided_slice %66 {offsets = [0, 384], sizes = [128, 128], strides = [1, 1]} : vector<128x512xf32> to vector<128x128xf32>
    %cst_26 = arith.constant 5.000000e-01 : f32
    %71 = vector.broadcast %cst_26 : f32 to vector<128x128xf32>
    %72 = arith.mulf %71, %68 : vector<128x128xf32>
    %73 = math.tanh %72 : vector<128x128xf32>
    %cst_27 = arith.constant 5.000000e-01 : f32
    %74 = vector.broadcast %cst_27 : f32 to vector<128x128xf32>
    %75 = arith.mulf %74, %73 : vector<128x128xf32>
    %cst_28 = arith.constant 5.000000e-01 : f32
    %76 = vector.broadcast %cst_28 : f32 to vector<128x128xf32>
    %77 = arith.addf %75, %76 : vector<128x128xf32>
    %78 = arith.mulf %77, %40 : vector<128x128xf32>
    %cst_29 = arith.constant 5.000000e-01 : f32
    %79 = vector.broadcast %cst_29 : f32 to vector<128x128xf32>
    %80 = arith.mulf %79, %67 : vector<128x128xf32>
    %81 = math.tanh %80 : vector<128x128xf32>
    %cst_30 = arith.constant 5.000000e-01 : f32
    %82 = vector.broadcast %cst_30 : f32 to vector<128x128xf32>
    %83 = arith.mulf %82, %81 : vector<128x128xf32>
    %cst_31 = arith.constant 5.000000e-01 : f32
    %84 = vector.broadcast %cst_31 : f32 to vector<128x128xf32>
    %85 = arith.addf %83, %84 : vector<128x128xf32>
    %86 = math.tanh %69 : vector<128x128xf32>
    %87 = arith.mulf %85, %86 : vector<128x128xf32>
    %88 = arith.addf %78, %87 : vector<128x128xf32>
    %cst_32 = arith.constant 5.000000e-01 : f32
    %89 = vector.broadcast %cst_32 : f32 to vector<128x128xf32>
    %90 = arith.mulf %89, %70 : vector<128x128xf32>
    %91 = math.tanh %90 : vector<128x128xf32>
    %cst_33 = arith.constant 5.000000e-01 : f32
    %92 = vector.broadcast %cst_33 : f32 to vector<128x128xf32>
    %93 = arith.mulf %92, %91 : vector<128x128xf32>
    %cst_34 = arith.constant 5.000000e-01 : f32
    %94 = vector.broadcast %cst_34 : f32 to vector<128x128xf32>
    %95 = arith.addf %93, %94 : vector<128x128xf32>
    %96 = math.tanh %88 : vector<128x128xf32>
    %97 = arith.mulf %95, %96 : vector<128x128xf32>
    %c2_i32 = arith.constant 2 : i32
    %98 = arith.truncf %97 : vector<128x128xf32> to vector<128x128xbf16>
    %c0_35 = arith.constant 0 : index
    %c0_36 = arith.constant 0 : index
    %99 = vector.load %arg3[%c0_35, %c0_36] : memref<128x512xbf16, #tpu.memory_space<vmem>>, vector<128x512xbf16>
    %cst_37 = arith.constant dense<0.000000e+00> : vector<128x512xf32>
    %100 = tpu.matmul %98, %99, %cst_37 {dimension_numbers = #tpu.dot_dimension_numbers<[1], [0], [0], [1], [0, 0, 1, 1], [], []>} : vector<128x128xbf16>, vector<128x512xbf16>, vector<128x512xf32> -> vector<128x512xf32>
    %c0_38 = arith.constant 0 : index
    %c0_39 = arith.constant 0 : index
    %101 = vector.load %arg2[%c0_38, %c0_39] : memref<128x512xf32, #tpu.memory_space<vmem>>, vector<128x512xf32>
    %102 = arith.addf %100, %101 : vector<128x512xf32>
    %c0_40 = arith.constant 0 : index
    %103 = arith.index_cast %c2_i32 : i32 to index
    %c0_41 = arith.constant 0 : index
    %104 = vector.load %arg1[%c0_40, %103, %c0_41] : memref<2x8x512xf32, #tpu.memory_space<vmem>>, vector<1x1x512xf32>
    %105 = vector.shape_cast %104 : vector<1x1x512xf32> to vector<1x512xf32>
    %106 = vector.shape_cast %105 : vector<1x512xf32> to vector<1x512xf32>
    %107 = vector.broadcast %106 : vector<1x512xf32> to vector<64x512xf32>
    %c1_42 = arith.constant 1 : index
    %108 = arith.index_cast %c2_i32 : i32 to index
    %c0_43 = arith.constant 0 : index
    %109 = vector.load %arg1[%c1_42, %108, %c0_43] : memref<2x8x512xf32, #tpu.memory_space<vmem>>, vector<1x1x512xf32>
    %110 = vector.shape_cast %109 : vector<1x1x512xf32> to vector<1x512xf32>
    %111 = vector.shape_cast %110 : vector<1x512xf32> to vector<1x512xf32>
    %112 = vector.broadcast %111 : vector<1x512xf32> to vector<64x512xf32>
    %113 = tpu.concatenate %107, %112 in 0 : vector<64x512xf32>, vector<64x512xf32> -> vector<128x512xf32>
    %114 = arith.addf %102, %113 : vector<128x512xf32>
    %115 = vector.extract_strided_slice %114 {offsets = [0, 0], sizes = [128, 128], strides = [1, 1]} : vector<128x512xf32> to vector<128x128xf32>
    %116 = vector.extract_strided_slice %114 {offsets = [0, 128], sizes = [128, 128], strides = [1, 1]} : vector<128x512xf32> to vector<128x128xf32>
    %117 = vector.extract_strided_slice %114 {offsets = [0, 256], sizes = [128, 128], strides = [1, 1]} : vector<128x512xf32> to vector<128x128xf32>
    %118 = vector.extract_strided_slice %114 {offsets = [0, 384], sizes = [128, 128], strides = [1, 1]} : vector<128x512xf32> to vector<128x128xf32>
    %cst_44 = arith.constant 5.000000e-01 : f32
    %119 = vector.broadcast %cst_44 : f32 to vector<128x128xf32>
    %120 = arith.mulf %119, %116 : vector<128x128xf32>
    %121 = math.tanh %120 : vector<128x128xf32>
    %cst_45 = arith.constant 5.000000e-01 : f32
    %122 = vector.broadcast %cst_45 : f32 to vector<128x128xf32>
    %123 = arith.mulf %122, %121 : vector<128x128xf32>
    %cst_46 = arith.constant 5.000000e-01 : f32
    %124 = vector.broadcast %cst_46 : f32 to vector<128x128xf32>
    %125 = arith.addf %123, %124 : vector<128x128xf32>
    %126 = arith.mulf %125, %88 : vector<128x128xf32>
    %cst_47 = arith.constant 5.000000e-01 : f32
    %127 = vector.broadcast %cst_47 : f32 to vector<128x128xf32>
    %128 = arith.mulf %127, %115 : vector<128x128xf32>
    %129 = math.tanh %128 : vector<128x128xf32>
    %cst_48 = arith.constant 5.000000e-01 : f32
    %130 = vector.broadcast %cst_48 : f32 to vector<128x128xf32>
    %131 = arith.mulf %130, %129 : vector<128x128xf32>
    %cst_49 = arith.constant 5.000000e-01 : f32
    %132 = vector.broadcast %cst_49 : f32 to vector<128x128xf32>
    %133 = arith.addf %131, %132 : vector<128x128xf32>
    %134 = math.tanh %117 : vector<128x128xf32>
    %135 = arith.mulf %133, %134 : vector<128x128xf32>
    %136 = arith.addf %126, %135 : vector<128x128xf32>
    %cst_50 = arith.constant 5.000000e-01 : f32
    %137 = vector.broadcast %cst_50 : f32 to vector<128x128xf32>
    %138 = arith.mulf %137, %118 : vector<128x128xf32>
    %139 = math.tanh %138 : vector<128x128xf32>
    %cst_51 = arith.constant 5.000000e-01 : f32
    %140 = vector.broadcast %cst_51 : f32 to vector<128x128xf32>
    %141 = arith.mulf %140, %139 : vector<128x128xf32>
    %cst_52 = arith.constant 5.000000e-01 : f32
    %142 = vector.broadcast %cst_52 : f32 to vector<128x128xf32>
    %143 = arith.addf %141, %142 : vector<128x128xf32>
    %144 = math.tanh %136 : vector<128x128xf32>
    %145 = arith.mulf %143, %144 : vector<128x128xf32>
    %c3_i32 = arith.constant 3 : i32
    %146 = arith.truncf %145 : vector<128x128xf32> to vector<128x128xbf16>
    %c0_53 = arith.constant 0 : index
    %c0_54 = arith.constant 0 : index
    %147 = vector.load %arg3[%c0_53, %c0_54] : memref<128x512xbf16, #tpu.memory_space<vmem>>, vector<128x512xbf16>
    %cst_55 = arith.constant dense<0.000000e+00> : vector<128x512xf32>
    %148 = tpu.matmul %146, %147, %cst_55 {dimension_numbers = #tpu.dot_dimension_numbers<[1], [0], [0], [1], [0, 0, 1, 1], [], []>} : vector<128x128xbf16>, vector<128x512xbf16>, vector<128x512xf32> -> vector<128x512xf32>
    %c0_56 = arith.constant 0 : index
    %c0_57 = arith.constant 0 : index
    %149 = vector.load %arg2[%c0_56, %c0_57] : memref<128x512xf32, #tpu.memory_space<vmem>>, vector<128x512xf32>
    %150 = arith.addf %148, %149 : vector<128x512xf32>
    %c0_58 = arith.constant 0 : index
    %151 = arith.index_cast %c3_i32 : i32 to index
    %c0_59 = arith.constant 0 : index
    %152 = vector.load %arg1[%c0_58, %151, %c0_59] : memref<2x8x512xf32, #tpu.memory_space<vmem>>, vector<1x1x512xf32>
    %153 = vector.shape_cast %152 : vector<1x1x512xf32> to vector<1x512xf32>
    %154 = vector.shape_cast %153 : vector<1x512xf32> to vector<1x512xf32>
    %155 = vector.broadcast %154 : vector<1x512xf32> to vector<64x512xf32>
    %c1_60 = arith.constant 1 : index
    %156 = arith.index_cast %c3_i32 : i32 to index
    %c0_61 = arith.constant 0 : index
    %157 = vector.load %arg1[%c1_60, %156, %c0_61] : memref<2x8x512xf32, #tpu.memory_space<vmem>>, vector<1x1x512xf32>
    %158 = vector.shape_cast %157 : vector<1x1x512xf32> to vector<1x512xf32>
    %159 = vector.shape_cast %158 : vector<1x512xf32> to vector<1x512xf32>
    %160 = vector.broadcast %159 : vector<1x512xf32> to vector<64x512xf32>
    %161 = tpu.concatenate %155, %160 in 0 : vector<64x512xf32>, vector<64x512xf32> -> vector<128x512xf32>
    %162 = arith.addf %150, %161 : vector<128x512xf32>
    %163 = vector.extract_strided_slice %162 {offsets = [0, 0], sizes = [128, 128], strides = [1, 1]} : vector<128x512xf32> to vector<128x128xf32>
    %164 = vector.extract_strided_slice %162 {offsets = [0, 128], sizes = [128, 128], strides = [1, 1]} : vector<128x512xf32> to vector<128x128xf32>
    %165 = vector.extract_strided_slice %162 {offsets = [0, 256], sizes = [128, 128], strides = [1, 1]} : vector<128x512xf32> to vector<128x128xf32>
    %166 = vector.extract_strided_slice %162 {offsets = [0, 384], sizes = [128, 128], strides = [1, 1]} : vector<128x512xf32> to vector<128x128xf32>
    %cst_62 = arith.constant 5.000000e-01 : f32
    %167 = vector.broadcast %cst_62 : f32 to vector<128x128xf32>
    %168 = arith.mulf %167, %164 : vector<128x128xf32>
    %169 = math.tanh %168 : vector<128x128xf32>
    %cst_63 = arith.constant 5.000000e-01 : f32
    %170 = vector.broadcast %cst_63 : f32 to vector<128x128xf32>
    %171 = arith.mulf %170, %169 : vector<128x128xf32>
    %cst_64 = arith.constant 5.000000e-01 : f32
    %172 = vector.broadcast %cst_64 : f32 to vector<128x128xf32>
    %173 = arith.addf %171, %172 : vector<128x128xf32>
    %174 = arith.mulf %173, %136 : vector<128x128xf32>
    %cst_65 = arith.constant 5.000000e-01 : f32
    %175 = vector.broadcast %cst_65 : f32 to vector<128x128xf32>
    %176 = arith.mulf %175, %163 : vector<128x128xf32>
    %177 = math.tanh %176 : vector<128x128xf32>
    %cst_66 = arith.constant 5.000000e-01 : f32
    %178 = vector.broadcast %cst_66 : f32 to vector<128x128xf32>
    %179 = arith.mulf %178, %177 : vector<128x128xf32>
    %cst_67 = arith.constant 5.000000e-01 : f32
    %180 = vector.broadcast %cst_67 : f32 to vector<128x128xf32>
    %181 = arith.addf %179, %180 : vector<128x128xf32>
    %182 = math.tanh %165 : vector<128x128xf32>
    %183 = arith.mulf %181, %182 : vector<128x128xf32>
    %184 = arith.addf %174, %183 : vector<128x128xf32>
    %cst_68 = arith.constant 5.000000e-01 : f32
    %185 = vector.broadcast %cst_68 : f32 to vector<128x128xf32>
    %186 = arith.mulf %185, %166 : vector<128x128xf32>
    %187 = math.tanh %186 : vector<128x128xf32>
    %cst_69 = arith.constant 5.000000e-01 : f32
    %188 = vector.broadcast %cst_69 : f32 to vector<128x128xf32>
    %189 = arith.mulf %188, %187 : vector<128x128xf32>
    %cst_70 = arith.constant 5.000000e-01 : f32
    %190 = vector.broadcast %cst_70 : f32 to vector<128x128xf32>
    %191 = arith.addf %189, %190 : vector<128x128xf32>
    %192 = math.tanh %184 : vector<128x128xf32>
    %193 = arith.mulf %191, %192 : vector<128x128xf32>
    %c4_i32 = arith.constant 4 : i32
    %194 = arith.truncf %193 : vector<128x128xf32> to vector<128x128xbf16>
    %c0_71 = arith.constant 0 : index
    %c0_72 = arith.constant 0 : index
    %195 = vector.load %arg3[%c0_71, %c0_72] : memref<128x512xbf16, #tpu.memory_space<vmem>>, vector<128x512xbf16>
    %cst_73 = arith.constant dense<0.000000e+00> : vector<128x512xf32>
    %196 = tpu.matmul %194, %195, %cst_73 {dimension_numbers = #tpu.dot_dimension_numbers<[1], [0], [0], [1], [0, 0, 1, 1], [], []>} : vector<128x128xbf16>, vector<128x512xbf16>, vector<128x512xf32> -> vector<128x512xf32>
    %c0_74 = arith.constant 0 : index
    %c0_75 = arith.constant 0 : index
    %197 = vector.load %arg2[%c0_74, %c0_75] : memref<128x512xf32, #tpu.memory_space<vmem>>, vector<128x512xf32>
    %198 = arith.addf %196, %197 : vector<128x512xf32>
    %c0_76 = arith.constant 0 : index
    %199 = arith.index_cast %c4_i32 : i32 to index
    %c0_77 = arith.constant 0 : index
    %200 = vector.load %arg1[%c0_76, %199, %c0_77] : memref<2x8x512xf32, #tpu.memory_space<vmem>>, vector<1x1x512xf32>
    %201 = vector.shape_cast %200 : vector<1x1x512xf32> to vector<1x512xf32>
    %202 = vector.shape_cast %201 : vector<1x512xf32> to vector<1x512xf32>
    %203 = vector.broadcast %202 : vector<1x512xf32> to vector<64x512xf32>
    %c1_78 = arith.constant 1 : index
    %204 = arith.index_cast %c4_i32 : i32 to index
    %c0_79 = arith.constant 0 : index
    %205 = vector.load %arg1[%c1_78, %204, %c0_79] : memref<2x8x512xf32, #tpu.memory_space<vmem>>, vector<1x1x512xf32>
    %206 = vector.shape_cast %205 : vector<1x1x512xf32> to vector<1x512xf32>
    %207 = vector.shape_cast %206 : vector<1x512xf32> to vector<1x512xf32>
    %208 = vector.broadcast %207 : vector<1x512xf32> to vector<64x512xf32>
    %209 = tpu.concatenate %203, %208 in 0 : vector<64x512xf32>, vector<64x512xf32> -> vector<128x512xf32>
    %210 = arith.addf %198, %209 : vector<128x512xf32>
    %211 = vector.extract_strided_slice %210 {offsets = [0, 0], sizes = [128, 128], strides = [1, 1]} : vector<128x512xf32> to vector<128x128xf32>
    %212 = vector.extract_strided_slice %210 {offsets = [0, 128], sizes = [128, 128], strides = [1, 1]} : vector<128x512xf32> to vector<128x128xf32>
    %213 = vector.extract_strided_slice %210 {offsets = [0, 256], sizes = [128, 128], strides = [1, 1]} : vector<128x512xf32> to vector<128x128xf32>
    %214 = vector.extract_strided_slice %210 {offsets = [0, 384], sizes = [128, 128], strides = [1, 1]} : vector<128x512xf32> to vector<128x128xf32>
    %cst_80 = arith.constant 5.000000e-01 : f32
    %215 = vector.broadcast %cst_80 : f32 to vector<128x128xf32>
    %216 = arith.mulf %215, %212 : vector<128x128xf32>
    %217 = math.tanh %216 : vector<128x128xf32>
    %cst_81 = arith.constant 5.000000e-01 : f32
    %218 = vector.broadcast %cst_81 : f32 to vector<128x128xf32>
    %219 = arith.mulf %218, %217 : vector<128x128xf32>
    %cst_82 = arith.constant 5.000000e-01 : f32
    %220 = vector.broadcast %cst_82 : f32 to vector<128x128xf32>
    %221 = arith.addf %219, %220 : vector<128x128xf32>
    %222 = arith.mulf %221, %184 : vector<128x128xf32>
    %cst_83 = arith.constant 5.000000e-01 : f32
    %223 = vector.broadcast %cst_83 : f32 to vector<128x128xf32>
    %224 = arith.mulf %223, %211 : vector<128x128xf32>
    %225 = math.tanh %224 : vector<128x128xf32>
    %cst_84 = arith.constant 5.000000e-01 : f32
    %226 = vector.broadcast %cst_84 : f32 to vector<128x128xf32>
    %227 = arith.mulf %226, %225 : vector<128x128xf32>
    %cst_85 = arith.constant 5.000000e-01 : f32
    %228 = vector.broadcast %cst_85 : f32 to vector<128x128xf32>
    %229 = arith.addf %227, %228 : vector<128x128xf32>
    %230 = math.tanh %213 : vector<128x128xf32>
    %231 = arith.mulf %229, %230 : vector<128x128xf32>
    %232 = arith.addf %222, %231 : vector<128x128xf32>
    %cst_86 = arith.constant 5.000000e-01 : f32
    %233 = vector.broadcast %cst_86 : f32 to vector<128x128xf32>
    %234 = arith.mulf %233, %214 : vector<128x128xf32>
    %235 = math.tanh %234 : vector<128x128xf32>
    %cst_87 = arith.constant 5.000000e-01 : f32
    %236 = vector.broadcast %cst_87 : f32 to vector<128x128xf32>
    %237 = arith.mulf %236, %235 : vector<128x128xf32>
    %cst_88 = arith.constant 5.000000e-01 : f32
    %238 = vector.broadcast %cst_88 : f32 to vector<128x128xf32>
    %239 = arith.addf %237, %238 : vector<128x128xf32>
    %240 = math.tanh %232 : vector<128x128xf32>
    %241 = arith.mulf %239, %240 : vector<128x128xf32>
    %c5_i32 = arith.constant 5 : i32
    %242 = arith.truncf %241 : vector<128x128xf32> to vector<128x128xbf16>
    %c0_89 = arith.constant 0 : index
    %c0_90 = arith.constant 0 : index
    %243 = vector.load %arg3[%c0_89, %c0_90] : memref<128x512xbf16, #tpu.memory_space<vmem>>, vector<128x512xbf16>
    %cst_91 = arith.constant dense<0.000000e+00> : vector<128x512xf32>
    %244 = tpu.matmul %242, %243, %cst_91 {dimension_numbers = #tpu.dot_dimension_numbers<[1], [0], [0], [1], [0, 0, 1, 1], [], []>} : vector<128x128xbf16>, vector<128x512xbf16>, vector<128x512xf32> -> vector<128x512xf32>
    %c0_92 = arith.constant 0 : index
    %c0_93 = arith.constant 0 : index
    %245 = vector.load %arg2[%c0_92, %c0_93] : memref<128x512xf32, #tpu.memory_space<vmem>>, vector<128x512xf32>
    %246 = arith.addf %244, %245 : vector<128x512xf32>
    %c0_94 = arith.constant 0 : index
    %247 = arith.index_cast %c5_i32 : i32 to index
    %c0_95 = arith.constant 0 : index
    %248 = vector.load %arg1[%c0_94, %247, %c0_95] : memref<2x8x512xf32, #tpu.memory_space<vmem>>, vector<1x1x512xf32>
    %249 = vector.shape_cast %248 : vector<1x1x512xf32> to vector<1x512xf32>
    %250 = vector.shape_cast %249 : vector<1x512xf32> to vector<1x512xf32>
    %251 = vector.broadcast %250 : vector<1x512xf32> to vector<64x512xf32>
    %c1_96 = arith.constant 1 : index
    %252 = arith.index_cast %c5_i32 : i32 to index
    %c0_97 = arith.constant 0 : index
    %253 = vector.load %arg1[%c1_96, %252, %c0_97] : memref<2x8x512xf32, #tpu.memory_space<vmem>>, vector<1x1x512xf32>
    %254 = vector.shape_cast %253 : vector<1x1x512xf32> to vector<1x512xf32>
    %255 = vector.shape_cast %254 : vector<1x512xf32> to vector<1x512xf32>
    %256 = vector.broadcast %255 : vector<1x512xf32> to vector<64x512xf32>
    %257 = tpu.concatenate %251, %256 in 0 : vector<64x512xf32>, vector<64x512xf32> -> vector<128x512xf32>
    %258 = arith.addf %246, %257 : vector<128x512xf32>
    %259 = vector.extract_strided_slice %258 {offsets = [0, 0], sizes = [128, 128], strides = [1, 1]} : vector<128x512xf32> to vector<128x128xf32>
    %260 = vector.extract_strided_slice %258 {offsets = [0, 128], sizes = [128, 128], strides = [1, 1]} : vector<128x512xf32> to vector<128x128xf32>
    %261 = vector.extract_strided_slice %258 {offsets = [0, 256], sizes = [128, 128], strides = [1, 1]} : vector<128x512xf32> to vector<128x128xf32>
    %262 = vector.extract_strided_slice %258 {offsets = [0, 384], sizes = [128, 128], strides = [1, 1]} : vector<128x512xf32> to vector<128x128xf32>
    %cst_98 = arith.constant 5.000000e-01 : f32
    %263 = vector.broadcast %cst_98 : f32 to vector<128x128xf32>
    %264 = arith.mulf %263, %260 : vector<128x128xf32>
    %265 = math.tanh %264 : vector<128x128xf32>
    %cst_99 = arith.constant 5.000000e-01 : f32
    %266 = vector.broadcast %cst_99 : f32 to vector<128x128xf32>
    %267 = arith.mulf %266, %265 : vector<128x128xf32>
    %cst_100 = arith.constant 5.000000e-01 : f32
    %268 = vector.broadcast %cst_100 : f32 to vector<128x128xf32>
    %269 = arith.addf %267, %268 : vector<128x128xf32>
    %270 = arith.mulf %269, %232 : vector<128x128xf32>
    %cst_101 = arith.constant 5.000000e-01 : f32
    %271 = vector.broadcast %cst_101 : f32 to vector<128x128xf32>
    %272 = arith.mulf %271, %259 : vector<128x128xf32>
    %273 = math.tanh %272 : vector<128x128xf32>
    %cst_102 = arith.constant 5.000000e-01 : f32
    %274 = vector.broadcast %cst_102 : f32 to vector<128x128xf32>
    %275 = arith.mulf %274, %273 : vector<128x128xf32>
    %cst_103 = arith.constant 5.000000e-01 : f32
    %276 = vector.broadcast %cst_103 : f32 to vector<128x128xf32>
    %277 = arith.addf %275, %276 : vector<128x128xf32>
    %278 = math.tanh %261 : vector<128x128xf32>
    %279 = arith.mulf %277, %278 : vector<128x128xf32>
    %280 = arith.addf %270, %279 : vector<128x128xf32>
    %cst_104 = arith.constant 5.000000e-01 : f32
    %281 = vector.broadcast %cst_104 : f32 to vector<128x128xf32>
    %282 = arith.mulf %281, %262 : vector<128x128xf32>
    %283 = math.tanh %282 : vector<128x128xf32>
    %cst_105 = arith.constant 5.000000e-01 : f32
    %284 = vector.broadcast %cst_105 : f32 to vector<128x128xf32>
    %285 = arith.mulf %284, %283 : vector<128x128xf32>
    %cst_106 = arith.constant 5.000000e-01 : f32
    %286 = vector.broadcast %cst_106 : f32 to vector<128x128xf32>
    %287 = arith.addf %285, %286 : vector<128x128xf32>
    %288 = math.tanh %280 : vector<128x128xf32>
    %289 = arith.mulf %287, %288 : vector<128x128xf32>
    %c6_i32 = arith.constant 6 : i32
    %290 = arith.truncf %289 : vector<128x128xf32> to vector<128x128xbf16>
    %c0_107 = arith.constant 0 : index
    %c0_108 = arith.constant 0 : index
    %291 = vector.load %arg3[%c0_107, %c0_108] : memref<128x512xbf16, #tpu.memory_space<vmem>>, vector<128x512xbf16>
    %cst_109 = arith.constant dense<0.000000e+00> : vector<128x512xf32>
    %292 = tpu.matmul %290, %291, %cst_109 {dimension_numbers = #tpu.dot_dimension_numbers<[1], [0], [0], [1], [0, 0, 1, 1], [], []>} : vector<128x128xbf16>, vector<128x512xbf16>, vector<128x512xf32> -> vector<128x512xf32>
    %c0_110 = arith.constant 0 : index
    %c0_111 = arith.constant 0 : index
    %293 = vector.load %arg2[%c0_110, %c0_111] : memref<128x512xf32, #tpu.memory_space<vmem>>, vector<128x512xf32>
    %294 = arith.addf %292, %293 : vector<128x512xf32>
    %c0_112 = arith.constant 0 : index
    %295 = arith.index_cast %c6_i32 : i32 to index
    %c0_113 = arith.constant 0 : index
    %296 = vector.load %arg1[%c0_112, %295, %c0_113] : memref<2x8x512xf32, #tpu.memory_space<vmem>>, vector<1x1x512xf32>
    %297 = vector.shape_cast %296 : vector<1x1x512xf32> to vector<1x512xf32>
    %298 = vector.shape_cast %297 : vector<1x512xf32> to vector<1x512xf32>
    %299 = vector.broadcast %298 : vector<1x512xf32> to vector<64x512xf32>
    %c1_114 = arith.constant 1 : index
    %300 = arith.index_cast %c6_i32 : i32 to index
    %c0_115 = arith.constant 0 : index
    %301 = vector.load %arg1[%c1_114, %300, %c0_115] : memref<2x8x512xf32, #tpu.memory_space<vmem>>, vector<1x1x512xf32>
    %302 = vector.shape_cast %301 : vector<1x1x512xf32> to vector<1x512xf32>
    %303 = vector.shape_cast %302 : vector<1x512xf32> to vector<1x512xf32>
    %304 = vector.broadcast %303 : vector<1x512xf32> to vector<64x512xf32>
    %305 = tpu.concatenate %299, %304 in 0 : vector<64x512xf32>, vector<64x512xf32> -> vector<128x512xf32>
    %306 = arith.addf %294, %305 : vector<128x512xf32>
    %307 = vector.extract_strided_slice %306 {offsets = [0, 0], sizes = [128, 128], strides = [1, 1]} : vector<128x512xf32> to vector<128x128xf32>
    %308 = vector.extract_strided_slice %306 {offsets = [0, 128], sizes = [128, 128], strides = [1, 1]} : vector<128x512xf32> to vector<128x128xf32>
    %309 = vector.extract_strided_slice %306 {offsets = [0, 256], sizes = [128, 128], strides = [1, 1]} : vector<128x512xf32> to vector<128x128xf32>
    %310 = vector.extract_strided_slice %306 {offsets = [0, 384], sizes = [128, 128], strides = [1, 1]} : vector<128x512xf32> to vector<128x128xf32>
    %cst_116 = arith.constant 5.000000e-01 : f32
    %311 = vector.broadcast %cst_116 : f32 to vector<128x128xf32>
    %312 = arith.mulf %311, %308 : vector<128x128xf32>
    %313 = math.tanh %312 : vector<128x128xf32>
    %cst_117 = arith.constant 5.000000e-01 : f32
    %314 = vector.broadcast %cst_117 : f32 to vector<128x128xf32>
    %315 = arith.mulf %314, %313 : vector<128x128xf32>
    %cst_118 = arith.constant 5.000000e-01 : f32
    %316 = vector.broadcast %cst_118 : f32 to vector<128x128xf32>
    %317 = arith.addf %315, %316 : vector<128x128xf32>
    %318 = arith.mulf %317, %280 : vector<128x128xf32>
    %cst_119 = arith.constant 5.000000e-01 : f32
    %319 = vector.broadcast %cst_119 : f32 to vector<128x128xf32>
    %320 = arith.mulf %319, %307 : vector<128x128xf32>
    %321 = math.tanh %320 : vector<128x128xf32>
    %cst_120 = arith.constant 5.000000e-01 : f32
    %322 = vector.broadcast %cst_120 : f32 to vector<128x128xf32>
    %323 = arith.mulf %322, %321 : vector<128x128xf32>
    %cst_121 = arith.constant 5.000000e-01 : f32
    %324 = vector.broadcast %cst_121 : f32 to vector<128x128xf32>
    %325 = arith.addf %323, %324 : vector<128x128xf32>
    %326 = math.tanh %309 : vector<128x128xf32>
    %327 = arith.mulf %325, %326 : vector<128x128xf32>
    %328 = arith.addf %318, %327 : vector<128x128xf32>
    %cst_122 = arith.constant 5.000000e-01 : f32
    %329 = vector.broadcast %cst_122 : f32 to vector<128x128xf32>
    %330 = arith.mulf %329, %310 : vector<128x128xf32>
    %331 = math.tanh %330 : vector<128x128xf32>
    %cst_123 = arith.constant 5.000000e-01 : f32
    %332 = vector.broadcast %cst_123 : f32 to vector<128x128xf32>
    %333 = arith.mulf %332, %331 : vector<128x128xf32>
    %cst_124 = arith.constant 5.000000e-01 : f32
    %334 = vector.broadcast %cst_124 : f32 to vector<128x128xf32>
    %335 = arith.addf %333, %334 : vector<128x128xf32>
    %336 = math.tanh %328 : vector<128x128xf32>
    %337 = arith.mulf %335, %336 : vector<128x128xf32>
    %c7_i32 = arith.constant 7 : i32
    %338 = arith.truncf %337 : vector<128x128xf32> to vector<128x128xbf16>
    %c0_125 = arith.constant 0 : index
    %c0_126 = arith.constant 0 : index
    %339 = vector.load %arg3[%c0_125, %c0_126] : memref<128x512xbf16, #tpu.memory_space<vmem>>, vector<128x512xbf16>
    %cst_127 = arith.constant dense<0.000000e+00> : vector<128x512xf32>
    %340 = tpu.matmul %338, %339, %cst_127 {dimension_numbers = #tpu.dot_dimension_numbers<[1], [0], [0], [1], [0, 0, 1, 1], [], []>} : vector<128x128xbf16>, vector<128x512xbf16>, vector<128x512xf32> -> vector<128x512xf32>
    %c0_128 = arith.constant 0 : index
    %c0_129 = arith.constant 0 : index
    %341 = vector.load %arg2[%c0_128, %c0_129] : memref<128x512xf32, #tpu.memory_space<vmem>>, vector<128x512xf32>
    %342 = arith.addf %340, %341 : vector<128x512xf32>
    %c0_130 = arith.constant 0 : index
    %343 = arith.index_cast %c7_i32 : i32 to index
    %c0_131 = arith.constant 0 : index
    %344 = vector.load %arg1[%c0_130, %343, %c0_131] : memref<2x8x512xf32, #tpu.memory_space<vmem>>, vector<1x1x512xf32>
    %345 = vector.shape_cast %344 : vector<1x1x512xf32> to vector<1x512xf32>
    %346 = vector.shape_cast %345 : vector<1x512xf32> to vector<1x512xf32>
    %347 = vector.broadcast %346 : vector<1x512xf32> to vector<64x512xf32>
    %c1_132 = arith.constant 1 : index
    %348 = arith.index_cast %c7_i32 : i32 to index
    %c0_133 = arith.constant 0 : index
    %349 = vector.load %arg1[%c1_132, %348, %c0_133] : memref<2x8x512xf32, #tpu.memory_space<vmem>>, vector<1x1x512xf32>
    %350 = vector.shape_cast %349 : vector<1x1x512xf32> to vector<1x512xf32>
    %351 = vector.shape_cast %350 : vector<1x512xf32> to vector<1x512xf32>
    %352 = vector.broadcast %351 : vector<1x512xf32> to vector<64x512xf32>
    %353 = tpu.concatenate %347, %352 in 0 : vector<64x512xf32>, vector<64x512xf32> -> vector<128x512xf32>
    %354 = arith.addf %342, %353 : vector<128x512xf32>
    %355 = vector.extract_strided_slice %354 {offsets = [0, 0], sizes = [128, 128], strides = [1, 1]} : vector<128x512xf32> to vector<128x128xf32>
    %356 = vector.extract_strided_slice %354 {offsets = [0, 128], sizes = [128, 128], strides = [1, 1]} : vector<128x512xf32> to vector<128x128xf32>
    %357 = vector.extract_strided_slice %354 {offsets = [0, 256], sizes = [128, 128], strides = [1, 1]} : vector<128x512xf32> to vector<128x128xf32>
    %358 = vector.extract_strided_slice %354 {offsets = [0, 384], sizes = [128, 128], strides = [1, 1]} : vector<128x512xf32> to vector<128x128xf32>
    %cst_134 = arith.constant 5.000000e-01 : f32
    %359 = vector.broadcast %cst_134 : f32 to vector<128x128xf32>
    %360 = arith.mulf %359, %356 : vector<128x128xf32>
    %361 = math.tanh %360 : vector<128x128xf32>
    %cst_135 = arith.constant 5.000000e-01 : f32
    %362 = vector.broadcast %cst_135 : f32 to vector<128x128xf32>
    %363 = arith.mulf %362, %361 : vector<128x128xf32>
    %cst_136 = arith.constant 5.000000e-01 : f32
    %364 = vector.broadcast %cst_136 : f32 to vector<128x128xf32>
    %365 = arith.addf %363, %364 : vector<128x128xf32>
    %366 = arith.mulf %365, %328 : vector<128x128xf32>
    %cst_137 = arith.constant 5.000000e-01 : f32
    %367 = vector.broadcast %cst_137 : f32 to vector<128x128xf32>
    %368 = arith.mulf %367, %355 : vector<128x128xf32>
    %369 = math.tanh %368 : vector<128x128xf32>
    %cst_138 = arith.constant 5.000000e-01 : f32
    %370 = vector.broadcast %cst_138 : f32 to vector<128x128xf32>
    %371 = arith.mulf %370, %369 : vector<128x128xf32>
    %cst_139 = arith.constant 5.000000e-01 : f32
    %372 = vector.broadcast %cst_139 : f32 to vector<128x128xf32>
    %373 = arith.addf %371, %372 : vector<128x128xf32>
    %374 = math.tanh %357 : vector<128x128xf32>
    %375 = arith.mulf %373, %374 : vector<128x128xf32>
    %376 = arith.addf %366, %375 : vector<128x128xf32>
    %cst_140 = arith.constant 5.000000e-01 : f32
    %377 = vector.broadcast %cst_140 : f32 to vector<128x128xf32>
    %378 = arith.mulf %377, %358 : vector<128x128xf32>
    %379 = math.tanh %378 : vector<128x128xf32>
    %cst_141 = arith.constant 5.000000e-01 : f32
    %380 = vector.broadcast %cst_141 : f32 to vector<128x128xf32>
    %381 = arith.mulf %380, %379 : vector<128x128xf32>
    %cst_142 = arith.constant 5.000000e-01 : f32
    %382 = vector.broadcast %cst_142 : f32 to vector<128x128xf32>
    %383 = arith.addf %381, %382 : vector<128x128xf32>
    %384 = math.tanh %376 : vector<128x128xf32>
    %385 = arith.mulf %383, %384 : vector<128x128xf32>
    %c8_i32 = arith.constant 8 : i32
    %c0_143 = arith.constant 0 : index
    %c0_144 = arith.constant 0 : index
    %386 = vector.load %arg4[%c0_143, %c0_144] : memref<128x128xf32, #tpu.memory_space<vmem>>, vector<128x128xf32>
    tpu.vector_store %arg4[%c0_143, %c0_144], %385 {strides = array<i32>} : memref<128x128xf32, #tpu.memory_space<vmem>>, vector<128x128xf32>,
    return
  }
  func.func @transform_0(%arg0: i32) -> (i32, i32, i32) {
    %c0_i32 = arith.constant 0 : i32
    %c0_i32_0 = arith.constant 0 : i32
    %c0_i32_1 = arith.constant 0 : i32
    return %arg0, %c0_i32, %c0_i32_0 : i32, i32, i32
  }
  func.func @transform_1(%arg0: i32) -> (i32, i32) {
    %c0_i32 = arith.constant 0 : i32
    %c0_i32_0 = arith.constant 0 : i32
    return %arg0, %c0_i32 : i32, i32
  }
  func.func @transform_2(%arg0: i32) -> (i32, i32) {
    %c0_i32 = arith.constant 0 : i32
    %c0_i32_0 = arith.constant 0 : i32
    %c0_i32_1 = arith.constant 0 : i32
    return %c0_i32, %c0_i32_0 : i32, i32
  }
  func.func @transform_3(%arg0: i32) -> (i32, i32) {
    %c0_i32 = arith.constant 0 : i32
    %c0_i32_0 = arith.constant 0 : i32
    return %arg0, %c0_i32 : i32, i32
  }
}

</mosaic_0001>

<llo_original>
// kernel: rmi_forward.1
$region0: #{rmi_forward.1}
  #allocation0 [shape = 'u32[]', space=smem, size = 0x4, offset = 0x4, fixed_abs, tag = 'smem constant byte address 0x4 - core index']
  #allocation1 [shape = 'u32[144,128]{1,0:T(1,128)}', space=vmem, size = 0x12000, scoped, tag = 'internal scratch']
  %s0 = inlined_call_operand.vmem [shape: f32[2,8,512], index: 0, kind: input, shape index: {}]
  %s1 = inlined_call_operand.vmem [shape: f32[128,512], index: 1, kind: input, shape index: {}]
  %s2 = inlined_call_operand.vmem [shape: bf16[128,512], index: 2, kind: input, shape index: {}]
  %s3 = inlined_call_operand.hbm [shape: f32[128,128], index: 3, kind: output, shape index: {}]
  %s4 = sld [smem:[#allocation0]]
  $region22: #{rmi_forward.1} parent=0
    _
  %s6 = ssub.s32 1, %s4
  %s7 = scalar_select 0, %s6, %s4
  $region1: #{rmi_forward.1} parent=0
    #allocation2 [shape = 'u8[65536]{0}', space=vmem, size = 0x10000, scoped, tag = 'output window, operand 0, single buffered']
    #allocation3 [shape = 's32[1]{0}', space=sflag, size = 0x4, scoped, tag = 'scoped memory for rmi_forward.1']
    %8 = vsyncpa [#allocation3], 0
    // Predicated region
    $region2: #{rmi_forward.1} parent=1 // pred_check
      _
    $region3: #{rmi_forward.1} parent=1 // pred_check_branch
      %10 = sbr.rel (0) target = $region5
    $region4: #{rmi_forward.1} parent=1 // pred_region
      _
    $region5: #{rmi_forward.1} parent=1 // pred_fallthru
      _
    // Predicated region
    $region6: #{rmi_forward.1} parent=1 // pred_check
      _
    $region7: #{rmi_forward.1} parent=1 // pred_check_branch
      %12 = sbr.rel (0) target = $region9
    $region8: #{rmi_forward.1} parent=1 // pred_region
      _
    $region9: #{rmi_forward.1} parent=1 // pred_fallthru
      _
    // Predicated region
    $region10: #{rmi_forward.1} parent=1 // pred_check
      _
    $region11: #{rmi_forward.1} parent=1 // pred_check_branch
      %14 = sbr.rel (0) target = $region13
    $region12: #{rmi_forward.1} parent=1 // pred_region
      _
    $region13: #{rmi_forward.1} parent=1 // pred_fallthru
      _
    %v16 = vld [vmem:[%s2] sm:$0xff]
    %v17 = vld [vmem:[%s2 + $0x8] sm:$0xff]
    %v18 = vld [vmem:[%s2 + $0x10] sm:$0xff]
    %v19 = vld [vmem:[%s2 + $0x18] sm:$0xff]
    %v20 = vld [vmem:[%s2 + $0x20] sm:$0xff]
    %v21 = vld [vmem:[%s2 + $0x28] sm:$0xff]
    %v22 = vld [vmem:[%s2 + $0x30] sm:$0xff]
    %v23 = vld [vmem:[%s2 + $0x38] sm:$0xff]
    %v24 = vld [vmem:[%s2 + $0x40] sm:$0xff]
    %v25 = vld [vmem:[%s2 + $0x48] sm:$0xff]
    %v26 = vld [vmem:[%s2 + $0x50] sm:$0xff]
    %v27 = vld [vmem:[%s2 + $0x58] sm:$0xff]
    %v28 = vld [vmem:[%s2 + $0x60] sm:$0xff]
    %v29 = vld [vmem:[%s2 + $0x68] sm:$0xff]
    %v30 = vld [vmem:[%s2 + $0x70] sm:$0xff]
    %v31 = vld [vmem:[%s2 + $0x78] sm:$0xff]
    %v32 = vld [vmem:[%s2 + $0x80] sm:$0xff]
    %v33 = vld [vmem:[%s2 + $0x88] sm:$0xff]
    %v34 = vld [vmem:[%s2 + $0x90] sm:$0xff]
    %v35 = vld [vmem:[%s2 + $0x98] sm:$0xff]
    %v36 = vld [vmem:[%s2 + $0xa0] sm:$0xff]
    %v37 = vld [vmem:[%s2 + $0xa8] sm:$0xff]
    %v38 = vld [vmem:[%s2 + $0xb0] sm:$0xff]
    %v39 = vld [vmem:[%s2 + $0xb8] sm:$0xff]
    %v40 = vld [vmem:[%s2 + $0xc0] sm:$0xff]
    %v41 = vld [vmem:[%s2 + $0xc8] sm:$0xff]
    %v42 = vld [vmem:[%s2 + $0xd0] sm:$0xff]
    %v43 = vld [vmem:[%s2 + $0xd8] sm:$0xff]
    %v44 = vld [vmem:[%s2 + $0xe0] sm:$0xff]
    %v45 = vld [vmem:[%s2 + $0xe8] sm:$0xff]
    %v46 = vld [vmem:[%s2 + $0xf0] sm:$0xff]
    %v47 = vld [vmem:[%s2 + $0xf8] sm:$0xff]
    %v48 = vld [vmem:[%s1] sm:$0xff]
    %v49 = vld [vmem:[%s1 + $0x8] sm:$0xff]
    %v50 = vld [vmem:[%s1 + $0x10] sm:$0xff]
    %v51 = vld [vmem:[%s1 + $0x18] sm:$0xff]
    %v52 = vld [vmem:[%s1 + $0x20] sm:$0xff]
    %v53 = vld [vmem:[%s1 + $0x28] sm:$0xff]
    %v54 = vld [vmem:[%s1 + $0x30] sm:$0xff]
    %v55 = vld [vmem:[%s1 + $0x38] sm:$0xff]
    %v56 = vld [vmem:[%s1 + $0x40] sm:$0xff]
    %v57 = vld [vmem:[%s1 + $0x48] sm:$0xff]
    %v58 = vld [vmem:[%s1 + $0x50] sm:$0xff]
    %v59 = vld [vmem:[%s1 + $0x58] sm:$0xff]
    %v60 = vld [vmem:[%s1 + $0x60] sm:$0xff]
    %v61 = vld [vmem:[%s1 + $0x68] sm:$0xff]
    %v62 = vld [vmem:[%s1 + $0x70] sm:$0xff]
    %v63 = vld [vmem:[%s1 + $0x78] sm:$0xff]
    %v64 = vld [vmem:[%s1 + $0x80] sm:$0xff]
    %v65 = vld [vmem:[%s1 + $0x88] sm:$0xff]
    %v66 = vld [vmem:[%s1 + $0x90] sm:$0xff]
    %v67 = vld [vmem:[%s1 + $0x98] sm:$0xff]
    %v68 = vld [vmem:[%s1 + $0xa0] sm:$0xff]
    %v69 = vld [vmem:[%s1 + $0xa8] sm:$0xff]
    %v70 = vld [vmem:[%s1 + $0xb0] sm:$0xff]
    %v71 = vld [vmem:[%s1 + $0xb8] sm:$0xff]
    %v72 = vld [vmem:[%s1 + $0xc0] sm:$0xff]
    %v73 = vld [vmem:[%s1 + $0xc8] sm:$0xff]
    %v74 = vld [vmem:[%s1 + $0xd0] sm:$0xff]
    %v75 = vld [vmem:[%s1 + $0xd8] sm:$0xff]
    %v76 = vld [vmem:[%s1 + $0xe0] sm:$0xff]
    %v77 = vld [vmem:[%s1 + $0xe8] sm:$0xff]
    %v78 = vld [vmem:[%s1 + $0xf0] sm:$0xff]
    %v79 = vld [vmem:[%s1 + $0xf8] sm:$0xff]
    %v80 = vld [vmem:[%s1 + $0x100] sm:$0xff]
    %v81 = vld [vmem:[%s1 + $0x108] sm:$0xff]
    %v82 = vld [vmem:[%s1 + $0x110] sm:$0xff]
    %v83 = vld [vmem:[%s1 + $0x118] sm:$0xff]
    %v84 = vld [vmem:[%s1 + $0x120] sm:$0xff]
    %v85 = vld [vmem:[%s1 + $0x128] sm:$0xff]
    %v86 = vld [vmem:[%s1 + $0x130] sm:$0xff]
    %v87 = vld [vmem:[%s1 + $0x138] sm:$0xff]
    %v88 = vld [vmem:[%s1 + $0x140] sm:$0xff]
    %v89 = vld [vmem:[%s1 + $0x148] sm:$0xff]
    %v90 = vld [vmem:[%s1 + $0x150] sm:$0xff]
    %v91 = vld [vmem:[%s1 + $0x158] sm:$0xff]
    %v92 = vld [vmem:[%s1 + $0x160] sm:$0xff]
    %v93 = vld [vmem:[%s1 + $0x168] sm:$0xff]
    %v94 = vld [vmem:[%s1 + $0x170] sm:$0xff]
    %v95 = vld [vmem:[%s1 + $0x178] sm:$0xff]
    %v96 = vld [vmem:[%s1 + $0x180] sm:$0xff]
    %v97 = vld [vmem:[%s1 + $0x188] sm:$0xff]
    %v98 = vld [vmem:[%s1 + $0x190] sm:$0xff]
    %v99 = vld [vmem:[%s1 + $0x198] sm:$0xff]
    %v100 = vld [vmem:[%s1 + $0x1a0] sm:$0xff]
    %v101 = vld [vmem:[%s1 + $0x1a8] sm:$0xff]
    %v102 = vld [vmem:[%s1 + $0x1b0] sm:$0xff]
    %v103 = vld [vmem:[%s1 + $0x1b8] sm:$0xff]
    %v104 = vld [vmem:[%s1 + $0x1c0] sm:$0xff]
    %v105 = vld [vmem:[%s1 + $0x1c8] sm:$0xff]
    %v106 = vld [vmem:[%s1 + $0x1d0] sm:$0xff]
    %v107 = vld [vmem:[%s1 + $0x1d8] sm:$0xff]
    %v108 = vld [vmem:[%s1 + $0x1e0] sm:$0xff]
    %v109 = vld [vmem:[%s1 + $0x1e8] sm:$0xff]
    %v110 = vld [vmem:[%s1 + $0x1f0] sm:$0xff]
    %v111 = vld [vmem:[%s1 + $0x1f8] sm:$0xff]
    %v144 = vunpack.c.l.b16 %v16
    %v145 = vunpack.c.h.b16 %v16
    %v146 = vunpack.c.l.b16 %v17
    %v147 = vunpack.c.h.b16 %v17
    %v148 = vunpack.c.l.b16 %v18
    %v149 = vunpack.c.h.b16 %v18
    %v150 = vunpack.c.l.b16 %v19
    %v151 = vunpack.c.h.b16 %v19
    %v152 = vunpack.c.l.b16 %v20
    %v153 = vunpack.c.h.b16 %v20
    %v154 = vunpack.c.l.b16 %v21
    %v155 = vunpack.c.h.b16 %v21
    %v156 = vunpack.c.l.b16 %v22
    %v157 = vunpack.c.h.b16 %v22
    %v158 = vunpack.c.l.b16 %v23
    %v159 = vunpack.c.h.b16 %v23
    %v160 = vunpack.c.l.b16 %v24
    %v161 = vunpack.c.h.b16 %v24
    %v162 = vunpack.c.l.b16 %v25
    %v163 = vunpack.c.h.b16 %v25
    %v164 = vunpack.c.l.b16 %v26
    %v165 = vunpack.c.h.b16 %v26
    %v166 = vunpack.c.l.b16 %v27
    %v167 = vunpack.c.h.b16 %v27
    %v168 = vunpack.c.l.b16 %v28
    %v169 = vunpack.c.h.b16 %v28
    %v170 = vunpack.c.l.b16 %v29
    %v171 = vunpack.c.h.b16 %v29
    %v172 = vunpack.c.l.b16 %v30
    %v173 = vunpack.c.h.b16 %v30
    %v174 = vunpack.c.l.b16 %v31
    %v175 = vunpack.c.h.b16 %v31
    %v176 = vunpack.c.l.b16 %v32
    %v177 = vunpack.c.h.b16 %v32
    %v178 = vunpack.c.l.b16 %v33
    %v179 = vunpack.c.h.b16 %v33
    %v180 = vunpack.c.l.b16 %v34
    %v181 = vunpack.c.h.b16 %v34
    %v182 = vunpack.c.l.b16 %v35
    %v183 = vunpack.c.h.b16 %v35
    %v184 = vunpack.c.l.b16 %v36
    %v185 = vunpack.c.h.b16 %v36
    %v186 = vunpack.c.l.b16 %v37
    %v187 = vunpack.c.h.b16 %v37
    %v188 = vunpack.c.l.b16 %v38
    %v189 = vunpack.c.h.b16 %v38
    %v190 = vunpack.c.l.b16 %v39
    %v191 = vunpack.c.h.b16 %v39
    %v192 = vunpack.c.l.b16 %v40
    %v193 = vunpack.c.h.b16 %v40
    %v194 = vunpack.c.l.b16 %v41
    %v195 = vunpack.c.h.b16 %v41
    %v196 = vunpack.c.l.b16 %v42
    %v197 = vunpack.c.h.b16 %v42
    %v198 = vunpack.c.l.b16 %v43
    %v199 = vunpack.c.h.b16 %v43
    %v200 = vunpack.c.l.b16 %v44
    %v201 = vunpack.c.h.b16 %v44
    %v202 = vunpack.c.l.b16 %v45
    %v203 = vunpack.c.h.b16 %v45
    %v204 = vunpack.c.l.b16 %v46
    %v205 = vunpack.c.h.b16 %v46
    %v206 = vunpack.c.l.b16 %v47
    %v207 = vunpack.c.h.b16 %v47
    %v208 = vpack.c.b16 %v148, %v144
    %v209 = vpack.c.b16 %v149, %v145
    %v210 = vpack.c.b16 %v150, %v146
    %v211 = vpack.c.b16 %v151, %v147
    %v212 = vpack.c.b16 %v156, %v152
    %v213 = vpack.c.b16 %v157, %v153
    %v214 = vpack.c.b16 %v158, %v154
    %v215 = vpack.c.b16 %v159, %v155
    %v216 = vpack.c.b16 %v164, %v160
    %v217 = vpack.c.b16 %v165, %v161
    %v218 = vpack.c.b16 %v166, %v162
    %v219 = vpack.c.b16 %v167, %v163
    %v220 = vpack.c.b16 %v172, %v168
    %v221 = vpack.c.b16 %v173, %v169
    %v222 = vpack.c.b16 %v174, %v170
    %v223 = vpack.c.b16 %v175, %v171
    %v224 = vpack.c.b16 %v180, %v176
    %v225 = vpack.c.b16 %v181, %v177
    %v226 = vpack.c.b16 %v182, %v178
    %v227 = vpack.c.b16 %v183, %v179
    %v228 = vpack.c.b16 %v188, %v184
    %v229 = vpack.c.b16 %v189, %v185
    %v230 = vpack.c.b16 %v190, %v186
    %v231 = vpack.c.b16 %v191, %v187
    %v232 = vpack.c.b16 %v196, %v192
    %v233 = vpack.c.b16 %v197, %v193
    %v234 = vpack.c.b16 %v198, %v194
    %v235 = vpack.c.b16 %v199, %v195
    %v236 = vpack.c.b16 %v204, %v200
    %v237 = vpack.c.b16 %v205, %v201
    %v238 = vpack.c.b16 %v206, %v202
    %v239 = vpack.c.b16 %v207, %v203
    %272 = vmatprep.subr.bf16.mxu0 %v237
    %273 = vmatpush1.bf16.msra.mxu0 %v236
    %274 = vmatprep.subr.bf16.mxu0 %v233
    %275 = vmatpush1.bf16.msra.mxu0 %v232
    %276 = vmatprep.subr.bf16.mxu0 %v229
    %277 = vmatpush1.bf16.msra.mxu0 %v228
    %278 = vmatprep.subr.bf16.mxu0 %v225
    %279 = vmatpush1.bf16.msra.mxu0 %v224
    %280 = vmatprep.subr.bf16.mxu0 %v221
    %281 = vmatpush1.bf16.msra.mxu0 %v220
    %282 = vmatprep.subr.bf16.mxu0 %v217
    %283 = vmatpush1.bf16.msra.mxu0 %v216
    %284 = vmatprep.subr.bf16.mxu0 %v213
    %285 = vmatpush1.bf16.msra.mxu0 %v212
    %286 = vmatprep.subr.bf16.mxu0 %v209
    %287 = vmatpush1.bf16.msra.mxu0 %v208
    %288 = vmatprep.subr.bf16.mxu0 0
    %289 = vmatpush2.bf16.msra.mxu0 0
    %290 = vmatprep.subr.bf16.mxu0 0
    %291 = vmatpush2.bf16.msra.mxu0 0
    %292 = vmatprep.subr.bf16.mxu0 0
    %293 = vmatpush2.bf16.msra.mxu0 0
    %294 = vmatprep.subr.bf16.mxu0 0
    %295 = vmatpush2.bf16.msra.mxu0 0
    %296 = vmatprep.subr.bf16.mxu0 0
    %297 = vmatpush2.bf16.msra.mxu0 0
    %298 = vmatprep.subr.bf16.mxu0 0
    %299 = vmatpush2.bf16.msra.mxu0 0
    %300 = vmatprep.subr.bf16.mxu0 0
    %301 = vmatpush2.bf16.msra.mxu0 0
    %302 = vmatprep.subr.bf16.mxu0 0
    %303 = vmatpush2.bf16.msra.mxu0 0
    %304 = vmatprep.mubr.bf16.mxu0 0
    %305 = vmatmul.mubr.bf16.gmra.mxu0 0
    %v306 = vpop.f32.mrf.mxu0
    %v307 = vadd.f32 %v48, %v306
    %v308 = vpop.f32.mrf.mxu0
    %v309 = vadd.f32 %v49, %v308
    %v310 = vpop.f32.mrf.mxu0
    %v311 = vadd.f32 %v52, %v310
    %v312 = vpop.f32.mrf.mxu0
    %v313 = vadd.f32 %v53, %v312
    %314 = vmatprep.mubr.bf16.mxu0 0
    %315 = vmatmul.mubr.bf16.gmra.mxu0 0
    %v316 = vpop.f32.mrf.mxu0
    %v317 = vadd.f32 %v56, %v316
    %v318 = vpop.f32.mrf.mxu0
    %v319 = vadd.f32 %v57, %v318
    %v320 = vpop.f32.mrf.mxu0
    %v321 = vadd.f32 %v60, %v320
    %v322 = vpop.f32.mrf.mxu0
    %v323 = vadd.f32 %v61, %v322
    %324 = vmatprep.mubr.bf16.mxu0 0
    %325 = vmatmul.mubr.bf16.gmra.mxu0 0
    %v326 = vpop.f32.mrf.mxu0
    %v327 = vadd.f32 %v64, %v326
    %v328 = vpop.f32.mrf.mxu0
    %v329 = vadd.f32 %v65, %v328
    %v330 = vpop.f32.mrf.mxu0
    %v331 = vadd.f32 %v68, %v330
    %v332 = vpop.f32.mrf.mxu0
    %v333 = vadd.f32 %v69, %v332
    %334 = vmatprep.mubr.bf16.mxu0 0
    %335 = vmatmul.mubr.bf16.gmra.mxu0 0
    %v336 = vpop.f32.mrf.mxu0
    %v337 = vadd.f32 %v72, %v336
    %v338 = vpop.f32.mrf.mxu0
    %v339 = vadd.f32 %v73, %v338
    %v340 = vpop.f32.mrf.mxu0
    %v341 = vadd.f32 %v76, %v340
    %v342 = vpop.f32.mrf.mxu0
    %v343 = vadd.f32 %v77, %v342
    %344 = vmatprep.mubr.bf16.mxu0 0
    %345 = vmatmul.mubr.bf16.gmra.mxu0 0
    %v346 = vpop.f32.mrf.mxu0
    %v347 = vadd.f32 %v80, %v346
    %v348 = vpop.f32.mrf.mxu0
    %v349 = vadd.f32 %v81, %v348
    %v350 = vpop.f32.mrf.mxu0
    %v351 = vadd.f32 %v84, %v350
    %v352 = vpop.f32.mrf.mxu0
    %v353 = vadd.f32 %v85, %v352
    %354 = vmatprep.mubr.bf16.mxu0 0
    %355 = vmatmul.mubr.bf16.gmra.mxu0 0
    %v356 = vpop.f32.mrf.mxu0
    %v357 = vadd.f32 %v88, %v356
    %v358 = vpop.f32.mrf.mxu0
    %v359 = vadd.f32 %v89, %v358
    %v360 = vpop.f32.mrf.mxu0
    %v361 = vadd.f32 %v92, %v360
    %v362 = vpop.f32.mrf.mxu0
    %v363 = vadd.f32 %v93, %v362
    %364 = vmatprep.mubr.bf16.mxu0 0
    %365 = vmatmul.mubr.bf16.gmra.mxu0 0
    %v366 = vpop.f32.mrf.mxu0
    %v367 = vadd.f32 %v96, %v366
    %v368 = vpop.f32.mrf.mxu0
    %v369 = vadd.f32 %v97, %v368
    %v370 = vpop.f32.mrf.mxu0
    %v371 = vadd.f32 %v100, %v370
    %v372 = vpop.f32.mrf.mxu0
    %v373 = vadd.f32 %v101, %v372
    %374 = vmatprep.mubr.bf16.mxu0 0
    %375 = vmatmul.mubr.bf16.gmra.mxu0 0
    %v376 = vpop.f32.mrf.mxu0
    %v377 = vadd.f32 %v104, %v376
    %v378 = vpop.f32.mrf.mxu0
    %v379 = vadd.f32 %v105, %v378
    %v380 = vpop.f32.mrf.mxu0
    %v381 = vadd.f32 %v108, %v380
    %v382 = vpop.f32.mrf.mxu0
    %v383 = vadd.f32 %v109, %v382
    %384 = vdwg.mxu0
    %385 = vmatprep.subr.bf16.mxu0 %v239
    %386 = vmatpush1.bf16.msra.mxu0 %v238
    %387 = vmatprep.subr.bf16.mxu0 %v235
    %388 = vmatpush1.bf16.msra.mxu0 %v234
    %389 = vmatprep.subr.bf16.mxu0 %v231
    %390 = vmatpush1.bf16.msra.mxu0 %v230
    %391 = vmatprep.subr.bf16.mxu0 %v227
    %392 = vmatpush1.bf16.msra.mxu0 %v226
    %393 = vmatprep.subr.bf16.mxu0 %v223
    %394 = vmatpush1.bf16.msra.mxu0 %v222
    %395 = vmatprep.subr.bf16.mxu0 %v219
    %396 = vmatpush1.bf16.msra.mxu0 %v218
    %397 = vmatprep.subr.bf16.mxu0 %v215
    %398 = vmatpush1.bf16.msra.mxu0 %v214
    %399 = vmatprep.subr.bf16.mxu0 %v211
    %400 = vmatpush1.bf16.msra.mxu0 %v210
    %401 = vmatprep.subr.bf16.mxu0 0
    %402 = vmatpush2.bf16.msra.mxu0 0
    %403 = vmatprep.subr.bf16.mxu0 0
    %404 = vmatpush2.bf16.msra.mxu0 0
    %405 = vmatprep.subr.bf16.mxu0 0
    %406 = vmatpush2.bf16.msra.mxu0 0
    %407 = vmatprep.subr.bf16.mxu0 0
    %408 = vmatpush2.bf16.msra.mxu0 0
    %409 = vmatprep.subr.bf16.mxu0 0
    %410 = vmatpush2.bf16.msra.mxu0 0
    %411 = vmatprep.subr.bf16.mxu0 0
    %412 = vmatpush2.bf16.msra.mxu0 0
    %413 = vmatprep.subr.bf16.mxu0 0
    %414 = vmatpush2.bf16.msra.mxu0 0
    %415 = vmatprep.subr.bf16.mxu0 0
    %416 = vmatpush2.bf16.msra.mxu0 0
    %417 = vmatprep.mubr.bf16.mxu0 0
    %418 = vmatmul.mubr.bf16.gmra.mxu0 0
    %v419 = vpop.f32.mrf.mxu0
    %v420 = vadd.f32 %v50, %v419
    %v421 = vpop.f32.mrf.mxu0
    %v422 = vadd.f32 %v51, %v421
    %v423 = vpop.f32.mrf.mxu0
    %v424 = vadd.f32 %v54, %v423
    %v425 = vpop.f32.mrf.mxu0
    %v426 = vadd.f32 %v55, %v425
    %427 = vmatprep.mubr.bf16.mxu0 0
    %428 = vmatmul.mubr.bf16.gmra.mxu0 0
    %v429 = vpop.f32.mrf.mxu0
    %v430 = vadd.f32 %v58, %v429
    %v431 = vpop.f32.mrf.mxu0
    %v432 = vadd.f32 %v59, %v431
    %v433 = vpop.f32.mrf.mxu0
    %v434 = vadd.f32 %v62, %v433
    %v435 = vpop.f32.mrf.mxu0
    %v436 = vadd.f32 %v63, %v435
    %437 = vmatprep.mubr.bf16.mxu0 0
    %438 = vmatmul.mubr.bf16.gmra.mxu0 0
    %v439 = vpop.f32.mrf.mxu0
    %v440 = vadd.f32 %v66, %v439
    %v441 = vpop.f32.mrf.mxu0
    %v442 = vadd.f32 %v67, %v441
    %v443 = vpop.f32.mrf.mxu0
    %v444 = vadd.f32 %v70, %v443
    %v445 = vpop.f32.mrf.mxu0
    %v446 = vadd.f32 %v71, %v445
    %447 = vmatprep.mubr.bf16.mxu0 0
    %448 = vmatmul.mubr.bf16.gmra.mxu0 0
    %v449 = vpop.f32.mrf.mxu0
    %v450 = vadd.f32 %v74, %v449
    %v451 = vpop.f32.mrf.mxu0
    %v452 = vadd.f32 %v75, %v451
    %v453 = vpop.f32.mrf.mxu0
    %v454 = vadd.f32 %v78, %v453
    %v455 = vpop.f32.mrf.mxu0
    %v456 = vadd.f32 %v79, %v455
    %457 = vmatprep.mubr.bf16.mxu0 0
    %458 = vmatmul.mubr.bf16.gmra.mxu0 0
    %v459 = vpop.f32.mrf.mxu0
    %v460 = vadd.f32 %v82, %v459
    %v461 = vpop.f32.mrf.mxu0
    %v462 = vadd.f32 %v83, %v461
    %v463 = vpop.f32.mrf.mxu0
    %v464 = vadd.f32 %v86, %v463
    %v465 = vpop.f32.mrf.mxu0
    %v466 = vadd.f32 %v87, %v465
    %467 = vmatprep.mubr.bf16.mxu0 0
    %468 = vmatmul.mubr.bf16.gmra.mxu0 0
    %v469 = vpop.f32.mrf.mxu0
    %v470 = vadd.f32 %v90, %v469
    %v471 = vpop.f32.mrf.mxu0
    %v472 = vadd.f32 %v91, %v471
    %v473 = vpop.f32.mrf.mxu0
    %v474 = vadd.f32 %v94, %v473
    %v475 = vpop.f32.mrf.mxu0
    %v476 = vadd.f32 %v95, %v475
    %477 = vmatprep.mubr.bf16.mxu0 0
    %478 = vmatmul.mubr.bf16.gmra.mxu0 0
    %v479 = vpop.f32.mrf.mxu0
    %v480 = vadd.f32 %v98, %v479
    %v481 = vpop.f32.mrf.mxu0
    %v482 = vadd.f32 %v99, %v481
    %v483 = vpop.f32.mrf.mxu0
    %v484 = vadd.f32 %v102, %v483
    %v485 = vpop.f32.mrf.mxu0
    %v486 = vadd.f32 %v103, %v485
    %487 = vmatprep.mubr.bf16.mxu0 0
    %488 = vmatmul.mubr.bf16.gmra.mxu0 0
    %v489 = vpop.f32.mrf.mxu0
    %v490 = vadd.f32 %v106, %v489
    %v491 = vpop.f32.mrf.mxu0
    %v492 = vadd.f32 %v107, %v491
    %v493 = vpop.f32.mrf.mxu0
    %v494 = vadd.f32 %v110, %v493
    %v495 = vpop.f32.mrf.mxu0
    %v496 = vadd.f32 %v111, %v495
    %497 = vdwg.mxu0
    %v498 = vld [vmem:[%s0] ss:$8 sm:$0xf]
    %v500 = vlaneseq
    %v501 = vshrl.u32 %v500, 7
    %v502 = vsub.s32 0, %v501
    %v503 = vrot.slane %v498, %v502
    %v504 = vlaneseq
    %v505 = vshrl.u32 %v504, 7
    %v506 = vsub.s32 1, %v505
    %v507 = vrot.slane %v498, %v506
    %v508 = vlaneseq
    %v509 = vshrl.u32 %v508, 7
    %v510 = vsub.s32 2, %v509
    %v511 = vrot.slane %v498, %v510
    %v512 = vlaneseq
    %v513 = vshrl.u32 %v512, 7
    %v514 = vsub.s32 3, %v513
    %v515 = vrot.slane %v498, %v514
    %s520 = scalar_lea.vmem %s0, 32
    %v521 = vld [vmem:[%s520] ss:$8 sm:$0xf]
    %v523 = vlaneseq
    %v524 = vshrl.u32 %v523, 7
    %v525 = vsub.s32 0, %v524
    %v526 = vrot.slane %v521, %v525
    %v527 = vlaneseq
    %v528 = vshrl.u32 %v527, 7
    %v529 = vsub.s32 1, %v528
    %v530 = vrot.slane %v521, %v529
    %v531 = vlaneseq
    %v532 = vshrl.u32 %v531, 7
    %v533 = vsub.s32 2, %v532
    %v534 = vrot.slane %v521, %v533
    %v535 = vlaneseq
    %v536 = vshrl.u32 %v535, 7
    %v537 = vsub.s32 3, %v536
    %v538 = vrot.slane %v521, %v537
    %v543 = vadd.f32 %v307, %v503
    %v544 = vadd.f32 %v309, %v507
    %v545 = vadd.f32 %v420, %v511
    %v546 = vadd.f32 %v422, %v515
    %v547 = vadd.f32 %v311, %v503
    %v548 = vadd.f32 %v313, %v507
    %v549 = vadd.f32 %v424, %v511
    %v550 = vadd.f32 %v426, %v515
    %v551 = vadd.f32 %v317, %v503
    %v552 = vadd.f32 %v319, %v507
    %v553 = vadd.f32 %v430, %v511
    %v554 = vadd.f32 %v432, %v515
    %v555 = vadd.f32 %v321, %v503
    %v556 = vadd.f32 %v323, %v507
    %v557 = vadd.f32 %v434, %v511
    %v558 = vadd.f32 %v436, %v515
    %v559 = vadd.f32 %v327, %v503
    %v560 = vadd.f32 %v329, %v507
    %v561 = vadd.f32 %v440, %v511
    %v562 = vadd.f32 %v442, %v515
    %v563 = vadd.f32 %v331, %v503
    %v564 = vadd.f32 %v333, %v507
    %v565 = vadd.f32 %v444, %v511
    %v566 = vadd.f32 %v446, %v515
    %v567 = vadd.f32 %v337, %v503
    %v568 = vadd.f32 %v339, %v507
    %v569 = vadd.f32 %v450, %v511
    %v570 = vadd.f32 %v452, %v515
    %v571 = vadd.f32 %v341, %v503
    %v572 = vadd.f32 %v343, %v507
    %v573 = vadd.f32 %v454, %v511
    %v574 = vadd.f32 %v456, %v515
    %v575 = vadd.f32 %v347, %v526
    %v576 = vadd.f32 %v349, %v530
    %v577 = vadd.f32 %v460, %v534
    %v578 = vadd.f32 %v462, %v538
    %v579 = vadd.f32 %v351, %v526
    %v580 = vadd.f32 %v353, %v530
    %v581 = vadd.f32 %v464, %v534
    %v582 = vadd.f32 %v466, %v538
    %v583 = vadd.f32 %v357, %v526
    %v584 = vadd.f32 %v359, %v530
    %v585 = vadd.f32 %v470, %v534
    %v586 = vadd.f32 %v472, %v538
    %v587 = vadd.f32 %v361, %v526
    %v588 = vadd.f32 %v363, %v530
    %v589 = vadd.f32 %v474, %v534
    %v590 = vadd.f32 %v476, %v538
    %v591 = vadd.f32 %v367, %v526
    %v592 = vadd.f32 %v369, %v530
    %v593 = vadd.f32 %v480, %v534
    %v594 = vadd.f32 %v482, %v538
    %v595 = vadd.f32 %v371, %v526
    %v596 = vadd.f32 %v373, %v530
    %v597 = vadd.f32 %v484, %v534
    %v598 = vadd.f32 %v486, %v538
    %v599 = vadd.f32 %v377, %v526
    %v600 = vadd.f32 %v379, %v530
    %v601 = vadd.f32 %v490, %v534
    %v602 = vadd.f32 %v492, %v538
    %v603 = vadd.f32 %v381, %v526
    %v604 = vadd.f32 %v383, %v530
    %v605 = vadd.f32 %v494, %v534
    %v606 = vadd.f32 %v496, %v538
    %v607 = vmul.f32 %v544, 0.5
    %v608 = vmul.f32 %v548, 0.5
    %v609 = vmul.f32 %v552, 0.5
    %v610 = vmul.f32 %v556, 0.5
    %v611 = vmul.f32 %v560, 0.5
    %v612 = vmul.f32 %v564, 0.5
    %v613 = vmul.f32 %v568, 0.5
    %v614 = vmul.f32 %v572, 0.5
    %v615 = vmul.f32 %v576, 0.5
    %v616 = vmul.f32 %v580, 0.5
    %v617 = vmul.f32 %v584, 0.5
    %v618 = vmul.f32 %v588, 0.5
    %v619 = vmul.f32 %v592, 0.5
    %v620 = vmul.f32 %v596, 0.5
    %v621 = vmul.f32 %v600, 0.5
    %v622 = vmul.f32 %v604, 0.5
    %v623 = vtanh.pop %v607
    %v624 = vtanh.pop %v608
    %v625 = vtanh.pop %v609
    %v626 = vtanh.pop %v610
    %v627 = vtanh.pop %v611
    %v628 = vtanh.pop %v612
    %v629 = vtanh.pop %v613
    %v630 = vtanh.pop %v614
    %v631 = vtanh.pop %v615
    %v632 = vtanh.pop %v616
    %v633 = vtanh.pop %v617
    %v634 = vtanh.pop %v618
    %v635 = vtanh.pop %v619
    %v636 = vtanh.pop %v620
    %v637 = vtanh.pop %v621
    %v638 = vtanh.pop %v622
    %v639 = vmul.f32 %v623, 0.5
    %v640 = vmul.f32 %v624, 0.5
    %v641 = vmul.f32 %v625, 0.5
    %v642 = vmul.f32 %v626, 0.5
    %v643 = vmul.f32 %v627, 0.5
    %v644 = vmul.f32 %v628, 0.5
    %v645 = vmul.f32 %v629, 0.5
    %v646 = vmul.f32 %v630, 0.5
    %v647 = vmul.f32 %v631, 0.5
    %v648 = vmul.f32 %v632, 0.5
    %v649 = vmul.f32 %v633, 0.5
    %v650 = vmul.f32 %v634, 0.5
    %v651 = vmul.f32 %v635, 0.5
    %v652 = vmul.f32 %v636, 0.5
    %v653 = vmul.f32 %v637, 0.5
    %v654 = vmul.f32 %v638, 0.5
    %v655 = vadd.f32 %v639, 0.5
    %v656 = vadd.f32 %v640, 0.5
    %v657 = vadd.f32 %v641, 0.5
    %v658 = vadd.f32 %v642, 0.5
    %v659 = vadd.f32 %v643, 0.5
    %v660 = vadd.f32 %v644, 0.5
    %v661 = vadd.f32 %v645, 0.5
    %v662 = vadd.f32 %v646, 0.5
    %v663 = vadd.f32 %v647, 0.5
    %v664 = vadd.f32 %v648, 0.5
    %v665 = vadd.f32 %v649, 0.5
    %v666 = vadd.f32 %v650, 0.5
    %v667 = vadd.f32 %v651, 0.5
    %v668 = vadd.f32 %v652, 0.5
    %v669 = vadd.f32 %v653, 0.5
    %v670 = vadd.f32 %v654, 0.5
    %v671 = vmul.f32 %v655, 0.0
    %v672 = vmul.f32 %v656, 0.0
    %v673 = vmul.f32 %v657, 0.0
    %v674 = vmul.f32 %v658, 0.0
    %v675 = vmul.f32 %v659, 0.0
    %v676 = vmul.f32 %v660, 0.0
    %v677 = vmul.f32 %v661, 0.0
    %v678 = vmul.f32 %v662, 0.0
    %v679 = vmul.f32 %v663, 0.0
    %v680 = vmul.f32 %v664, 0.0
    %v681 = vmul.f32 %v665, 0.0
    %v682 = vmul.f32 %v666, 0.0
    %v683 = vmul.f32 %v667, 0.0
    %v684 = vmul.f32 %v668, 0.0
    %v685 = vmul.f32 %v669, 0.0
    %v686 = vmul.f32 %v670, 0.0
    %v687 = vmul.f32 %v543, 0.5
    %v688 = vmul.f32 %v547, 0.5
    %v689 = vmul.f32 %v551, 0.5
    %v690 = vmul.f32 %v555, 0.5
    %v691 = vmul.f32 %v559, 0.5
    %v692 = vmul.f32 %v563, 0.5
    %v693 = vmul.f32 %v567, 0.5
    %v694 = vmul.f32 %v571, 0.5
    %v695 = vmul.f32 %v575, 0.5
    %v696 = vmul.f32 %v579, 0.5
    %v697 = vmul.f32 %v583, 0.5
    %v698 = vmul.f32 %v587, 0.5
    %v699 = vmul.f32 %v591, 0.5
    %v700 = vmul.f32 %v595, 0.5
    %v701 = vmul.f32 %v599, 0.5
    %v702 = vmul.f32 %v603, 0.5
    %v703 = vtanh.pop %v687
    %v704 = vtanh.pop %v688
    %v705 = vtanh.pop %v689
    %v706 = vtanh.pop %v690
    %v707 = vtanh.pop %v691
    %v708 = vtanh.pop %v692
    %v709 = vtanh.pop %v693
    %v710 = vtanh.pop %v694
    %v711 = vtanh.pop %v695
    %v712 = vtanh.pop %v696
    %v713 = vtanh.pop %v697
    %v714 = vtanh.pop %v698
    %v715 = vtanh.pop %v699
    %v716 = vtanh.pop %v700
    %v717 = vtanh.pop %v701
    %v718 = vtanh.pop %v702
    %v719 = vmul.f32 %v703, 0.5
    %v720 = vmul.f32 %v704, 0.5
    %v721 = vmul.f32 %v705, 0.5
    %v722 = vmul.f32 %v706, 0.5
    %v723 = vmul.f32 %v707, 0.5
    %v724 = vmul.f32 %v708, 0.5
    %v725 = vmul.f32 %v709, 0.5
    %v726 = vmul.f32 %v710, 0.5
    %v727 = vmul.f32 %v711, 0.5
    %v728 = vmul.f32 %v712, 0.5
    %v729 = vmul.f32 %v713, 0.5
    %v730 = vmul.f32 %v714, 0.5
    %v731 = vmul.f32 %v715, 0.5
    %v732 = vmul.f32 %v716, 0.5
    %v733 = vmul.f32 %v717, 0.5
    %v734 = vmul.f32 %v718, 0.5
    %v735 = vadd.f32 %v719, 0.5
    %v736 = vadd.f32 %v720, 0.5
    %v737 = vadd.f32 %v721, 0.5
    %v738 = vadd.f32 %v722, 0.5
    %v739 = vadd.f32 %v723, 0.5
    %v740 = vadd.f32 %v724, 0.5
    %v741 = vadd.f32 %v725, 0.5
    %v742 = vadd.f32 %v726, 0.5
    %v743 = vadd.f32 %v727, 0.5
    %v744 = vadd.f32 %v728, 0.5
    %v745 = vadd.f32 %v729, 0.5
    %v746 = vadd.f32 %v730, 0.5
    %v747 = vadd.f32 %v731, 0.5
    %v748 = vadd.f32 %v732, 0.5
    %v749 = vadd.f32 %v733, 0.5
    %v750 = vadd.f32 %v734, 0.5
    %v751 = vtanh.pop %v545
    %v752 = vtanh.pop %v549
    %v753 = vtanh.pop %v553
    %v754 = vtanh.pop %v557
    %v755 = vtanh.pop %v561
    %v756 = vtanh.pop %v565
    %v757 = vtanh.pop %v569
    %v758 = vtanh.pop %v573
    %v759 = vtanh.pop %v577
    %v760 = vtanh.pop %v581
    %v761 = vtanh.pop %v585
    %v762 = vtanh.pop %v589
    %v763 = vtanh.pop %v593
    %v764 = vtanh.pop %v597
    %v765 = vtanh.pop %v601
    %v766 = vtanh.pop %v605
    %v767 = vmul.f32 %v735, %v751
    %v768 = vmul.f32 %v736, %v752
    %v769 = vmul.f32 %v737, %v753
    %v770 = vmul.f32 %v738, %v754
    %v771 = vmul.f32 %v739, %v755
    %v772 = vmul.f32 %v740, %v756
    %v773 = vmul.f32 %v741, %v757
    %v774 = vmul.f32 %v742, %v758
    %v775 = vmul.f32 %v743, %v759
    %v776 = vmul.f32 %v744, %v760
    %v777 = vmul.f32 %v745, %v761
    %v778 = vmul.f32 %v746, %v762
    %v779 = vmul.f32 %v747, %v763
    %v780 = vmul.f32 %v748, %v764
    %v781 = vmul.f32 %v749, %v765
    %v782 = vmul.f32 %v750, %v766
    %v783 = vadd.f32 %v671, %v767
    %v784 = vadd.f32 %v672, %v768
    %v785 = vadd.f32 %v673, %v769
    %v786 = vadd.f32 %v674, %v770
    %v787 = vadd.f32 %v675, %v771
    %v788 = vadd.f32 %v676, %v772
    %v789 = vadd.f32 %v677, %v773
    %v790 = vadd.f32 %v678, %v774
    %v791 = vadd.f32 %v679, %v775
    %v792 = vadd.f32 %v680, %v776
    %v793 = vadd.f32 %v681, %v777
    %v794 = vadd.f32 %v682, %v778
    %v795 = vadd.f32 %v683, %v779
    %v796 = vadd.f32 %v684, %v780
    %v797 = vadd.f32 %v685, %v781
    %v798 = vadd.f32 %v686, %v782
    %v799 = vmul.f32 %v546, 0.5
    %v800 = vmul.f32 %v550, 0.5
    %v801 = vmul.f32 %v554, 0.5
    %v802 = vmul.f32 %v558, 0.5
    %v803 = vmul.f32 %v562, 0.5
    %v804 = vmul.f32 %v566, 0.5
    %v805 = vmul.f32 %v570, 0.5
    %v806 = vmul.f32 %v574, 0.5
    %v807 = vmul.f32 %v578, 0.5
    %v808 = vmul.f32 %v582, 0.5
    %v809 = vmul.f32 %v586, 0.5
    %v810 = vmul.f32 %v590, 0.5
    %v811 = vmul.f32 %v594, 0.5
    %v812 = vmul.f32 %v598, 0.5
    %v813 = vmul.f32 %v602, 0.5
    %v814 = vmul.f32 %v606, 0.5
    %v815 = vtanh.pop %v799
    %v816 = vtanh.pop %v800
    %v817 = vtanh.pop %v801
    %v818 = vtanh.pop %v802
    %v819 = vtanh.pop %v803
    %v820 = vtanh.pop %v804
    %v821 = vtanh.pop %v805
    %v822 = vtanh.pop %v806
    %v823 = vtanh.pop %v807
    %v824 = vtanh.pop %v808
    %v825 = vtanh.pop %v809
    %v826 = vtanh.pop %v810
    %v827 = vtanh.pop %v811
    %v828 = vtanh.pop %v812
    %v829 = vtanh.pop %v813
    %v830 = vtanh.pop %v814
    %v831 = vmul.f32 %v815, 0.5
    %v832 = vmul.f32 %v816, 0.5
    %v833 = vmul.f32 %v817, 0.5
    %v834 = vmul.f32 %v818, 0.5
    %v835 = vmul.f32 %v819, 0.5
    %v836 = vmul.f32 %v820, 0.5
    %v837 = vmul.f32 %v821, 0.5
    %v838 = vmul.f32 %v822, 0.5
    %v839 = vmul.f32 %v823, 0.5
    %v840 = vmul.f32 %v824, 0.5
    %v841 = vmul.f32 %v825, 0.5
    %v842 = vmul.f32 %v826, 0.5
    %v843 = vmul.f32 %v827, 0.5
    %v844 = vmul.f32 %v828, 0.5
    %v845 = vmul.f32 %v829, 0.5
    %v846 = vmul.f32 %v830, 0.5
    %v847 = vadd.f32 %v831, 0.5
    %v848 = vadd.f32 %v832, 0.5
    %v849 = vadd.f32 %v833, 0.5
    %v850 = vadd.f32 %v834, 0.5
    %v851 = vadd.f32 %v835, 0.5
    %v852 = vadd.f32 %v836, 0.5
    %v853 = vadd.f32 %v837, 0.5
    %v854 = vadd.f32 %v838, 0.5
    %v855 = vadd.f32 %v839, 0.5
    %v856 = vadd.f32 %v840, 0.5
    %v857 = vadd.f32 %v841, 0.5
    %v858 = vadd.f32 %v842, 0.5
    %v859 = vadd.f32 %v843, 0.5
    %v860 = vadd.f32 %v844, 0.5
    %v861 = vadd.f32 %v845, 0.5
    %v862 = vadd.f32 %v846, 0.5
    %v863 = vtanh.pop %v783
    %v864 = vtanh.pop %v784
    %v865 = vtanh.pop %v785
    %v866 = vtanh.pop %v786
    %v867 = vtanh.pop %v787
    %v868 = vtanh.pop %v788
    %v869 = vtanh.pop %v789
    %v870 = vtanh.pop %v790
    %v871 = vtanh.pop %v791
    %v872 = vtanh.pop %v792
    %v873 = vtanh.pop %v793
    %v874 = vtanh.pop %v794
    %v875 = vtanh.pop %v795
    %v876 = vtanh.pop %v796
    %v877 = vtanh.pop %v797
    %v878 = vtanh.pop %v798
    %v879 = vmul.f32 %v847, %v863
    %v880 = vmul.f32 %v848, %v864
    %v881 = vmul.f32 %v849, %v865
    %v882 = vmul.f32 %v850, %v866
    %v883 = vmul.f32 %v851, %v867
    %v884 = vmul.f32 %v852, %v868
    %v885 = vmul.f32 %v853, %v869
    %v886 = vmul.f32 %v854, %v870
    %v887 = vmul.f32 %v855, %v871
    %v888 = vmul.f32 %v856, %v872
    %v889 = vmul.f32 %v857, %v873
    %v890 = vmul.f32 %v858, %v874
    %v891 = vmul.f32 %v859, %v875
    %v892 = vmul.f32 %v860, %v876
    %v893 = vmul.f32 %v861, %v877
    %v894 = vmul.f32 %v862, %v878
    %v895 = vpack.c.bf16 %v880, %v879
    %v896 = vpack.c.bf16 %v882, %v881
    %v897 = vpack.c.bf16 %v884, %v883
    %v898 = vpack.c.bf16 %v886, %v885
    %v899 = vpack.c.bf16 %v888, %v887
    %v900 = vpack.c.bf16 %v890, %v889
    %v901 = vpack.c.bf16 %v892, %v891
    %v902 = vpack.c.bf16 %v894, %v893
    %903 = vmatprep.subr.bf16.mxu0 %v237
    %904 = vmatpush1.bf16.msra.mxu0 %v236
    %905 = vmatprep.subr.bf16.mxu0 %v233
    %906 = vmatpush1.bf16.msra.mxu0 %v232
    %907 = vmatprep.subr.bf16.mxu0 %v229
    %908 = vmatpush1.bf16.msra.mxu0 %v228
    %909 = vmatprep.subr.bf16.mxu0 %v225
    %910 = vmatpush1.bf16.msra.mxu0 %v224
    %911 = vmatprep.subr.bf16.mxu0 %v221
    %912 = vmatpush1.bf16.msra.mxu0 %v220
    %913 = vmatprep.subr.bf16.mxu0 %v217
    %914 = vmatpush1.bf16.msra.mxu0 %v216
    %915 = vmatprep.subr.bf16.mxu0 %v213
    %916 = vmatpush1.bf16.msra.mxu0 %v212
    %917 = vmatprep.subr.bf16.mxu0 %v209
    %918 = vmatpush1.bf16.msra.mxu0 %v208
    %919 = vmatprep.subr.bf16.mxu0 0
    %920 = vmatpush2.bf16.msra.mxu0 0
    %921 = vmatprep.subr.bf16.mxu0 0
    %922 = vmatpush2.bf16.msra.mxu0 0
    %923 = vmatprep.subr.bf16.mxu0 0
    %924 = vmatpush2.bf16.msra.mxu0 0
    %925 = vmatprep.subr.bf16.mxu0 0
    %926 = vmatpush2.bf16.msra.mxu0 0
    %927 = vmatprep.subr.bf16.mxu0 0
    %928 = vmatpush2.bf16.msra.mxu0 0
    %929 = vmatprep.subr.bf16.mxu0 0
    %930 = vmatpush2.bf16.msra.mxu0 0
    %931 = vmatprep.subr.bf16.mxu0 0
    %932 = vmatpush2.bf16.msra.mxu0 0
    %933 = vmatprep.subr.bf16.mxu0 0
    %934 = vmatpush2.bf16.msra.mxu0 0
    %935 = vmatprep.mubr.bf16.mxu0 0
    %936 = vmatmul.mubr.bf16.gmra.mxu0 %v895
    %v937 = vpop.f32.mrf.mxu0
    %v938 = vadd.f32 %v48, %v937
    %v939 = vpop.f32.mrf.mxu0
    %v940 = vadd.f32 %v49, %v939
    %v941 = vpop.f32.mrf.mxu0
    %v942 = vadd.f32 %v52, %v941
    %v943 = vpop.f32.mrf.mxu0
    %v944 = vadd.f32 %v53, %v943
    %945 = vmatprep.mubr.bf16.mxu0 0
    %946 = vmatmul.mubr.bf16.gmra.mxu0 %v896
    %v947 = vpop.f32.mrf.mxu0
    %v948 = vadd.f32 %v56, %v947
    %v949 = vpop.f32.mrf.mxu0
    %v950 = vadd.f32 %v57, %v949
    %v951 = vpop.f32.mrf.mxu0
    %v952 = vadd.f32 %v60, %v951
    %v953 = vpop.f32.mrf.mxu0
    %v954 = vadd.f32 %v61, %v953
    %955 = vmatprep.mubr.bf16.mxu0 0
    %956 = vmatmul.mubr.bf16.gmra.mxu0 %v897
    %v957 = vpop.f32.mrf.mxu0
    %v958 = vadd.f32 %v64, %v957
    %v959 = vpop.f32.mrf.mxu0
    %v960 = vadd.f32 %v65, %v959
    %v961 = vpop.f32.mrf.mxu0
    %v962 = vadd.f32 %v68, %v961
    %v963 = vpop.f32.mrf.mxu0
    %v964 = vadd.f32 %v69, %v963
    %965 = vmatprep.mubr.bf16.mxu0 0
    %966 = vmatmul.mubr.bf16.gmra.mxu0 %v898
    %v967 = vpop.f32.mrf.mxu0
    %v968 = vadd.f32 %v72, %v967
    %v969 = vpop.f32.mrf.mxu0
    %v970 = vadd.f32 %v73, %v969
    %v971 = vpop.f32.mrf.mxu0
    %v972 = vadd.f32 %v76, %v971
    %v973 = vpop.f32.mrf.mxu0
    %v974 = vadd.f32 %v77, %v973
    %975 = vmatprep.mubr.bf16.mxu0 0
    %976 = vmatmul.mubr.bf16.gmra.mxu0 %v899
    %v977 = vpop.f32.mrf.mxu0
    %v978 = vadd.f32 %v80, %v977
    %v979 = vpop.f32.mrf.mxu0
    %v980 = vadd.f32 %v81, %v979
    %v981 = vpop.f32.mrf.mxu0
    %v982 = vadd.f32 %v84, %v981
    %v983 = vpop.f32.mrf.mxu0
    %v984 = vadd.f32 %v85, %v983
    %985 = vmatprep.mubr.bf16.mxu0 0
    %986 = vmatmul.mubr.bf16.gmra.mxu0 %v900
    %v987 = vpop.f32.mrf.mxu0
    %v988 = vadd.f32 %v88, %v987
    %v989 = vpop.f32.mrf.mxu0
    %v990 = vadd.f32 %v89, %v989
    %v991 = vpop.f32.mrf.mxu0
    %v992 = vadd.f32 %v92, %v991
    %v993 = vpop.f32.mrf.mxu0
    %v994 = vadd.f32 %v93, %v993
    %995 = vmatprep.mubr.bf16.mxu0 0
    %996 = vmatmul.mubr.bf16.gmra.mxu0 %v901
    %v997 = vpop.f32.mrf.mxu0
    %v998 = vadd.f32 %v96, %v997
    %v999 = vpop.f32.mrf.mxu0
    %v1000 = vadd.f32 %v97, %v999
    %v1001 = vpop.f32.mrf.mxu0
    %v1002 = vadd.f32 %v100, %v1001
    %v1003 = vpop.f32.mrf.mxu0
    %v1004 = vadd.f32 %v101, %v1003
    %1005 = vmatprep.mubr.bf16.mxu0 0
    %1006 = vmatmul.mubr.bf16.gmra.mxu0 %v902
    %v1007 = vpop.f32.mrf.mxu0
    %v1008 = vadd.f32 %v104, %v1007
    %v1009 = vpop.f32.mrf.mxu0
    %v1010 = vadd.f32 %v105, %v1009
    %v1011 = vpop.f32.mrf.mxu0
    %v1012 = vadd.f32 %v108, %v1011
    %v1013 = vpop.f32.mrf.mxu0
    %v1014 = vadd.f32 %v109, %v1013
    %1015 = vdwg.mxu0
    %1016 = vmatprep.subr.bf16.mxu0 %v239
    %1017 = vmatpush1.bf16.msra.mxu0 %v238
    %1018 = vmatprep.subr.bf16.mxu0 %v235
    %1019 = vmatpush1.bf16.msra.mxu0 %v234
    %1020 = vmatprep.subr.bf16.mxu0 %v231
    %1021 = vmatpush1.bf16.msra.mxu0 %v230
    %1022 = vmatprep.subr.bf16.mxu0 %v227
    %1023 = vmatpush1.bf16.msra.mxu0 %v226
    %1024 = vmatprep.subr.bf16.mxu0 %v223
    %1025 = vmatpush1.bf16.msra.mxu0 %v222
    %1026 = vmatprep.subr.bf16.mxu0 %v219
    %1027 = vmatpush1.bf16.msra.mxu0 %v218
    %1028 = vmatprep.subr.bf16.mxu0 %v215
    %1029 = vmatpush1.bf16.msra.mxu0 %v214
    %1030 = vmatprep.subr.bf16.mxu0 %v211
    %1031 = vmatpush1.bf16.msra.mxu0 %v210
    %1032 = vmatprep.subr.bf16.mxu0 0
    %1033 = vmatpush2.bf16.msra.mxu0 0
    %1034 = vmatprep.subr.bf16.mxu0 0
    %1035 = vmatpush2.bf16.msra.mxu0 0
    %1036 = vmatprep.subr.bf16.mxu0 0
    %1037 = vmatpush2.bf16.msra.mxu0 0
    %1038 = vmatprep.subr.bf16.mxu0 0
    %1039 = vmatpush2.bf16.msra.mxu0 0
    %1040 = vmatprep.subr.bf16.mxu0 0
    %1041 = vmatpush2.bf16.msra.mxu0 0
    %1042 = vmatprep.subr.bf16.mxu0 0
    %1043 = vmatpush2.bf16.msra.mxu0 0
    %1044 = vmatprep.subr.bf16.mxu0 0
    %1045 = vmatpush2.bf16.msra.mxu0 0
    %1046 = vmatprep.subr.bf16.mxu0 0
    %1047 = vmatpush2.bf16.msra.mxu0 0
    %1048 = vmatprep.mubr.bf16.mxu0 0
    %1049 = vmatmul.mubr.bf16.gmra.mxu0 %v895
    %v1050 = vpop.f32.mrf.mxu0
    %v1051 = vadd.f32 %v50, %v1050
    %v1052 = vpop.f32.mrf.mxu0
    %v1053 = vadd.f32 %v51, %v1052
    %v1054 = vpop.f32.mrf.mxu0
    %v1055 = vadd.f32 %v54, %v1054
    %v1056 = vpop.f32.mrf.mxu0
    %v1057 = vadd.f32 %v55, %v1056
    %1058 = vmatprep.mubr.bf16.mxu0 0
    %1059 = vmatmul.mubr.bf16.gmra.mxu0 %v896
    %v1060 = vpop.f32.mrf.mxu0
    %v1061 = vadd.f32 %v58, %v1060
    %v1062 = vpop.f32.mrf.mxu0
    %v1063 = vadd.f32 %v59, %v1062
    %v1064 = vpop.f32.mrf.mxu0
    %v1065 = vadd.f32 %v62, %v1064
    %v1066 = vpop.f32.mrf.mxu0
    %v1067 = vadd.f32 %v63, %v1066
    %1068 = vmatprep.mubr.bf16.mxu0 0
    %1069 = vmatmul.mubr.bf16.gmra.mxu0 %v897
    %v1070 = vpop.f32.mrf.mxu0
    %v1071 = vadd.f32 %v66, %v1070
    %v1072 = vpop.f32.mrf.mxu0
    %v1073 = vadd.f32 %v67, %v1072
    %v1074 = vpop.f32.mrf.mxu0
    %v1075 = vadd.f32 %v70, %v1074
    %v1076 = vpop.f32.mrf.mxu0
    %v1077 = vadd.f32 %v71, %v1076
    %1078 = vmatprep.mubr.bf16.mxu0 0
    %1079 = vmatmul.mubr.bf16.gmra.mxu0 %v898
    %v1080 = vpop.f32.mrf.mxu0
    %v1081 = vadd.f32 %v74, %v1080
    %v1082 = vpop.f32.mrf.mxu0
    %v1083 = vadd.f32 %v75, %v1082
    %v1084 = vpop.f32.mrf.mxu0
    %v1085 = vadd.f32 %v78, %v1084
    %v1086 = vpop.f32.mrf.mxu0
    %v1087 = vadd.f32 %v79, %v1086
    %1088 = vmatprep.mubr.bf16.mxu0 0
    %1089 = vmatmul.mubr.bf16.gmra.mxu0 %v899
    %v1090 = vpop.f32.mrf.mxu0
    %v1091 = vadd.f32 %v82, %v1090
    %v1092 = vpop.f32.mrf.mxu0
    %v1093 = vadd.f32 %v83, %v1092
    %v1094 = vpop.f32.mrf.mxu0
    %v1095 = vadd.f32 %v86, %v1094
    %v1096 = vpop.f32.mrf.mxu0
    %v1097 = vadd.f32 %v87, %v1096
    %1098 = vmatprep.mubr.bf16.mxu0 0
    %1099 = vmatmul.mubr.bf16.gmra.mxu0 %v900
    %v1100 = vpop.f32.mrf.mxu0
    %v1101 = vadd.f32 %v90, %v1100
    %v1102 = vpop.f32.mrf.mxu0
    %v1103 = vadd.f32 %v91, %v1102
    %v1104 = vpop.f32.mrf.mxu0
    %v1105 = vadd.f32 %v94, %v1104
    %v1106 = vpop.f32.mrf.mxu0
    %v1107 = vadd.f32 %v95, %v1106
    %1108 = vmatprep.mubr.bf16.mxu0 0
    %1109 = vmatmul.mubr.bf16.gmra.mxu0 %v901
    %v1110 = vpop.f32.mrf.mxu0
    %v1111 = vadd.f32 %v98, %v1110
    %v1112 = vpop.f32.mrf.mxu0
    %v1113 = vadd.f32 %v99, %v1112
    %v1114 = vpop.f32.mrf.mxu0
    %v1115 = vadd.f32 %v102, %v1114
    %v1116 = vpop.f32.mrf.mxu0
    %v1117 = vadd.f32 %v103, %v1116
    %1118 = vmatprep.mubr.bf16.mxu0 0
    %1119 = vmatmul.mubr.bf16.gmra.mxu0 %v902
    %v1120 = vpop.f32.mrf.mxu0
    %v1121 = vadd.f32 %v106, %v1120
    %v1122 = vpop.f32.mrf.mxu0
    %v1123 = vadd.f32 %v107, %v1122
    %v1124 = vpop.f32.mrf.mxu0
    %v1125 = vadd.f32 %v110, %v1124
    %v1126 = vpop.f32.mrf.mxu0
    %v1127 = vadd.f32 %v111, %v1126
    %1128 = vdwg.mxu0
    %s1129 = scalar_lea.vmem %s0, 1
    %v1130 = vld [vmem:[%s1129] ss:$8 sm:$0xf]
    %v1132 = vlaneseq
    %v1133 = vshrl.u32 %v1132, 7
    %v1134 = vsub.s32 0, %v1133
    %v1135 = vrot.slane %v1130, %v1134
    %v1136 = vlaneseq
    %v1137 = vshrl.u32 %v1136, 7
    %v1138 = vsub.s32 1, %v1137
    %v1139 = vrot.slane %v1130, %v1138
    %v1140 = vlaneseq
    %v1141 = vshrl.u32 %v1140, 7
    %v1142 = vsub.s32 2, %v1141
    %v1143 = vrot.slane %v1130, %v1142
    %v1144 = vlaneseq
    %v1145 = vshrl.u32 %v1144, 7
    %v1146 = vsub.s32 3, %v1145
    %v1147 = vrot.slane %v1130, %v1146
    %s1152 = scalar_lea.vmem %s520, 1
    %v1153 = vld [vmem:[%s1152] ss:$8 sm:$0xf]
    %v1155 = vlaneseq
    %v1156 = vshrl.u32 %v1155, 7
    %v1157 = vsub.s32 0, %v1156
    %v1158 = vrot.slane %v1153, %v1157
    %v1159 = vlaneseq
    %v1160 = vshrl.u32 %v1159, 7
    %v1161 = vsub.s32 1, %v1160
    %v1162 = vrot.slane %v1153, %v1161
    %v1163 = vlaneseq
    %v1164 = vshrl.u32 %v1163, 7
    %v1165 = vsub.s32 2, %v1164
    %v1166 = vrot.slane %v1153, %v1165
    %v1167 = vlaneseq
    %v1168 = vshrl.u32 %v1167, 7
    %v1169 = vsub.s32 3, %v1168
    %v1170 = vrot.slane %v1153, %v1169
    %v1175 = vadd.f32 %v938, %v1135
    %v1176 = vadd.f32 %v940, %v1139
    %v1177 = vadd.f32 %v1051, %v1143
    %v1178 = vadd.f32 %v1053, %v1147
    %v1179 = vadd.f32 %v942, %v1135
    %v1180 = vadd.f32 %v944, %v1139
    %v1181 = vadd.f32 %v1055, %v1143
    %v1182 = vadd.f32 %v1057, %v1147
    %v1183 = vadd.f32 %v948, %v1135
    %v1184 = vadd.f32 %v950, %v1139
    %v1185 = vadd.f32 %v1061, %v1143
    %v1186 = vadd.f32 %v1063, %v1147
    %v1187 = vadd.f32 %v952, %v1135
    %v1188 = vadd.f32 %v954, %v1139
    %v1189 = vadd.f32 %v1065, %v1143
    %v1190 = vadd.f32 %v1067, %v1147
    %v1191 = vadd.f32 %v958, %v1135
    %v1192 = vadd.f32 %v960, %v1139
    %v1193 = vadd.f32 %v1071, %v1143
    %v1194 = vadd.f32 %v1073, %v1147
    %v1195 = vadd.f32 %v962, %v1135
    %v1196 = vadd.f32 %v964, %v1139
    %v1197 = vadd.f32 %v1075, %v1143
    %v1198 = vadd.f32 %v1077, %v1147
    %v1199 = vadd.f32 %v968, %v1135
    %v1200 = vadd.f32 %v970, %v1139
    %v1201 = vadd.f32 %v1081, %v1143
    %v1202 = vadd.f32 %v1083, %v1147
    %v1203 = vadd.f32 %v972, %v1135
    %v1204 = vadd.f32 %v974, %v1139
    %v1205 = vadd.f32 %v1085, %v1143
    %v1206 = vadd.f32 %v1087, %v1147
    %v1207 = vadd.f32 %v978, %v1158
    %v1208 = vadd.f32 %v980, %v1162
    %v1209 = vadd.f32 %v1091, %v1166
    %v1210 = vadd.f32 %v1093, %v1170
    %v1211 = vadd.f32 %v982, %v1158
    %v1212 = vadd.f32 %v984, %v1162
    %v1213 = vadd.f32 %v1095, %v1166
    %v1214 = vadd.f32 %v1097, %v1170
    %v1215 = vadd.f32 %v988, %v1158
    %v1216 = vadd.f32 %v990, %v1162
    %v1217 = vadd.f32 %v1101, %v1166
    %v1218 = vadd.f32 %v1103, %v1170
    %v1219 = vadd.f32 %v992, %v1158
    %v1220 = vadd.f32 %v994, %v1162
    %v1221 = vadd.f32 %v1105, %v1166
    %v1222 = vadd.f32 %v1107, %v1170
    %v1223 = vadd.f32 %v998, %v1158
    %v1224 = vadd.f32 %v1000, %v1162
    %v1225 = vadd.f32 %v1111, %v1166
    %v1226 = vadd.f32 %v1113, %v1170
    %v1227 = vadd.f32 %v1002, %v1158
    %v1228 = vadd.f32 %v1004, %v1162
    %v1229 = vadd.f32 %v1115, %v1166
    %v1230 = vadd.f32 %v1117, %v1170
    %v1231 = vadd.f32 %v1008, %v1158
    %v1232 = vadd.f32 %v1010, %v1162
    %v1233 = vadd.f32 %v1121, %v1166
    %v1234 = vadd.f32 %v1123, %v1170
    %v1235 = vadd.f32 %v1012, %v1158
    %v1236 = vadd.f32 %v1014, %v1162
    %v1237 = vadd.f32 %v1125, %v1166
    %v1238 = vadd.f32 %v1127, %v1170
    %v1239 = vmul.f32 %v1176, 0.5
    %v1240 = vmul.f32 %v1180, 0.5
    %v1241 = vmul.f32 %v1184, 0.5
    %v1242 = vmul.f32 %v1188, 0.5
    %v1243 = vmul.f32 %v1192, 0.5
    %v1244 = vmul.f32 %v1196, 0.5
    %v1245 = vmul.f32 %v1200, 0.5
    %v1246 = vmul.f32 %v1204, 0.5
    %v1247 = vmul.f32 %v1208, 0.5
    %v1248 = vmul.f32 %v1212, 0.5
    %v1249 = vmul.f32 %v1216, 0.5
    %v1250 = vmul.f32 %v1220, 0.5
    %v1251 = vmul.f32 %v1224, 0.5
    %v1252 = vmul.f32 %v1228, 0.5
    %v1253 = vmul.f32 %v1232, 0.5
    %v1254 = vmul.f32 %v1236, 0.5
    %v1255 = vtanh.pop %v1239
    %v1256 = vtanh.pop %v1240
    %v1257 = vtanh.pop %v1241
    %v1258 = vtanh.pop %v1242
    %v1259 = vtanh.pop %v1243
    %v1260 = vtanh.pop %v1244
    %v1261 = vtanh.pop %v1245
    %v1262 = vtanh.pop %v1246
    %v1263 = vtanh.pop %v1247
    %v1264 = vtanh.pop %v1248
    %v1265 = vtanh.pop %v1249
    %v1266 = vtanh.pop %v1250
    %v1267 = vtanh.pop %v1251
    %v1268 = vtanh.pop %v1252
    %v1269 = vtanh.pop %v1253
    %v1270 = vtanh.pop %v1254
    %v1271 = vmul.f32 %v1255, 0.5
    %v1272 = vmul.f32 %v1256, 0.5
    %v1273 = vmul.f32 %v1257, 0.5
    %v1274 = vmul.f32 %v1258, 0.5
    %v1275 = vmul.f32 %v1259, 0.5
    %v1276 = vmul.f32 %v1260, 0.5
    %v1277 = vmul.f32 %v1261, 0.5
    %v1278 = vmul.f32 %v1262, 0.5
    %v1279 = vmul.f32 %v1263, 0.5
    %v1280 = vmul.f32 %v1264, 0.5
    %v1281 = vmul.f32 %v1265, 0.5
    %v1282 = vmul.f32 %v1266, 0.5
    %v1283 = vmul.f32 %v1267, 0.5
    %v1284 = vmul.f32 %v1268, 0.5
    %v1285 = vmul.f32 %v1269, 0.5
    %v1286 = vmul.f32 %v1270, 0.5
    %v1287 = vadd.f32 %v1271, 0.5
    %v1288 = vadd.f32 %v1272, 0.5
    %v1289 = vadd.f32 %v1273, 0.5
    %v1290 = vadd.f32 %v1274, 0.5
    %v1291 = vadd.f32 %v1275, 0.5
    %v1292 = vadd.f32 %v1276, 0.5
    %v1293 = vadd.f32 %v1277, 0.5
    %v1294 = vadd.f32 %v1278, 0.5
    %v1295 = vadd.f32 %v1279, 0.5
    %v1296 = vadd.f32 %v1280, 0.5
    %v1297 = vadd.f32 %v1281, 0.5
    %v1298 = vadd.f32 %v1282, 0.5
    %v1299 = vadd.f32 %v1283, 0.5
    %v1300 = vadd.f32 %v1284, 0.5
    %v1301 = vadd.f32 %v1285, 0.5
    %v1302 = vadd.f32 %v1286, 0.5
    %v1303 = vmul.f32 %v1287, %v783
    %v1304 = vmul.f32 %v1288, %v784
    %v1305 = vmul.f32 %v1289, %v785
    %v1306 = vmul.f32 %v1290, %v786
    %v1307 = vmul.f32 %v1291, %v787
    %v1308 = vmul.f32 %v1292, %v788
    %v1309 = vmul.f32 %v1293, %v789
    %v1310 = vmul.f32 %v1294, %v790
    %v1311 = vmul.f32 %v1295, %v791
    %v1312 = vmul.f32 %v1296, %v792
    %v1313 = vmul.f32 %v1297, %v793
    %v1314 = vmul.f32 %v1298, %v794
    %v1315 = vmul.f32 %v1299, %v795
    %v1316 = vmul.f32 %v1300, %v796
    %v1317 = vmul.f32 %v1301, %v797
    %v1318 = vmul.f32 %v1302, %v798
    %v1319 = vmul.f32 %v1175, 0.5
    %v1320 = vmul.f32 %v1179, 0.5
    %v1321 = vmul.f32 %v1183, 0.5
    %v1322 = vmul.f32 %v1187, 0.5
    %v1323 = vmul.f32 %v1191, 0.5
    %v1324 = vmul.f32 %v1195, 0.5
    %v1325 = vmul.f32 %v1199, 0.5
    %v1326 = vmul.f32 %v1203, 0.5
    %v1327 = vmul.f32 %v1207, 0.5
    %v1328 = vmul.f32 %v1211, 0.5
    %v1329 = vmul.f32 %v1215, 0.5
    %v1330 = vmul.f32 %v1219, 0.5
    %v1331 = vmul.f32 %v1223, 0.5
    %v1332 = vmul.f32 %v1227, 0.5
    %v1333 = vmul.f32 %v1231, 0.5
    %v1334 = vmul.f32 %v1235, 0.5
    %v1335 = vtanh.pop %v1319
    %v1336 = vtanh.pop %v1320
    %v1337 = vtanh.pop %v1321
    %v1338 = vtanh.pop %v1322
    %v1339 = vtanh.pop %v1323
    %v1340 = vtanh.pop %v1324
    %v1341 = vtanh.pop %v1325
    %v1342 = vtanh.pop %v1326
    %v1343 = vtanh.pop %v1327
    %v1344 = vtanh.pop %v1328
    %v1345 = vtanh.pop %v1329
    %v1346 = vtanh.pop %v1330
    %v1347 = vtanh.pop %v1331
    %v1348 = vtanh.pop %v1332
    %v1349 = vtanh.pop %v1333
    %v1350 = vtanh.pop %v1334
    %v1351 = vmul.f32 %v1335, 0.5
    %v1352 = vmul.f32 %v1336, 0.5
    %v1353 = vmul.f32 %v1337, 0.5
    %v1354 = vmul.f32 %v1338, 0.5
    %v1355 = vmul.f32 %v1339, 0.5
    %v1356 = vmul.f32 %v1340, 0.5
    %v1357 = vmul.f32 %v1341, 0.5
    %v1358 = vmul.f32 %v1342, 0.5
    %v1359 = vmul.f32 %v1343, 0.5
    %v1360 = vmul.f32 %v1344, 0.5
    %v1361 = vmul.f32 %v1345, 0.5
    %v1362 = vmul.f32 %v1346, 0.5
    %v1363 = vmul.f32 %v1347, 0.5
    %v1364 = vmul.f32 %v1348, 0.5
    %v1365 = vmul.f32 %v1349, 0.5
    %v1366 = vmul.f32 %v1350, 0.5
    %v1367 = vadd.f32 %v1351, 0.5
    %v1368 = vadd.f32 %v1352, 0.5
    %v1369 = vadd.f32 %v1353, 0.5
    %v1370 = vadd.f32 %v1354, 0.5
    %v1371 = vadd.f32 %v1355, 0.5
    %v1372 = vadd.f32 %v1356, 0.5
    %v1373 = vadd.f32 %v1357, 0.5
    %v1374 = vadd.f32 %v1358, 0.5
    %v1375 = vadd.f32 %v1359, 0.5
    %v1376 = vadd.f32 %v1360, 0.5
    %v1377 = vadd.f32 %v1361, 0.5
    %v1378 = vadd.f32 %v1362, 0.5
    %v1379 = vadd.f32 %v1363, 0.5
    %v1380 = vadd.f32 %v1364, 0.5
    %v1381 = vadd.f32 %v1365, 0.5
    %v1382 = vadd.f32 %v1366, 0.5
    %v1383 = vtanh.pop %v1177
    %v1384 = vtanh.pop %v1181
    %v1385 = vtanh.pop %v1185
    %v1386 = vtanh.pop %v1189
    %v1387 = vtanh.pop %v1193
    %v1388 = vtanh.pop %v1197
    %v1389 = vtanh.pop %v1201
    %v1390 = vtanh.pop %v1205
    %v1391 = vtanh.pop %v1209
    %v1392 = vtanh.pop %v1213
    %v1393 = vtanh.pop %v1217
    %v1394 = vtanh.pop %v1221
    %v1395 = vtanh.pop %v1225
    %v1396 = vtanh.pop %v1229
    %v1397 = vtanh.pop %v1233
    %v1398 = vtanh.pop %v1237
    %v1399 = vmul.f32 %v1367, %v1383
    %v1400 = vmul.f32 %v1368, %v1384
    %v1401 = vmul.f32 %v1369, %v1385
    %v1402 = vmul.f32 %v1370, %v1386
    %v1403 = vmul.f32 %v1371, %v1387
    %v1404 = vmul.f32 %v1372, %v1388
    %v1405 = vmul.f32 %v1373, %v1389
    %v1406 = vmul.f32 %v1374, %v1390
    %v1407 = vmul.f32 %v1375, %v1391
    %v1408 = vmul.f32 %v1376, %v1392
    %v1409 = vmul.f32 %v1377, %v1393
    %v1410 = vmul.f32 %v1378, %v1394
    %v1411 = vmul.f32 %v1379, %v1395
    %v1412 = vmul.f32 %v1380, %v1396
    %v1413 = vmul.f32 %v1381, %v1397
    %v1414 = vmul.f32 %v1382, %v1398
    %v1415 = vadd.f32 %v1303, %v1399
    %v1416 = vadd.f32 %v1304, %v1400
    %v1417 = vadd.f32 %v1305, %v1401
    %v1418 = vadd.f32 %v1306, %v1402
    %v1419 = vadd.f32 %v1307, %v1403
    %v1420 = vadd.f32 %v1308, %v1404
    %v1421 = vadd.f32 %v1309, %v1405
    %v1422 = vadd.f32 %v1310, %v1406
    %v1423 = vadd.f32 %v1311, %v1407
    %v1424 = vadd.f32 %v1312, %v1408
    %v1425 = vadd.f32 %v1313, %v1409
    %v1426 = vadd.f32 %v1314, %v1410
    %v1427 = vadd.f32 %v1315, %v1411
    %v1428 = vadd.f32 %v1316, %v1412
    %v1429 = vadd.f32 %v1317, %v1413
    %v1430 = vadd.f32 %v1318, %v1414
    %v1431 = vmul.f32 %v1178, 0.5
    %v1432 = vmul.f32 %v1182, 0.5
    %v1433 = vmul.f32 %v1186, 0.5
    %v1434 = vmul.f32 %v1190, 0.5
    %v1435 = vmul.f32 %v1194, 0.5
    %v1436 = vmul.f32 %v1198, 0.5
    %v1437 = vmul.f32 %v1202, 0.5
    %v1438 = vmul.f32 %v1206, 0.5
    %v1439 = vmul.f32 %v1210, 0.5
    %v1440 = vmul.f32 %v1214, 0.5
    %v1441 = vmul.f32 %v1218, 0.5
    %v1442 = vmul.f32 %v1222, 0.5
    %v1443 = vmul.f32 %v1226, 0.5
    %v1444 = vmul.f32 %v1230, 0.5
    %v1445 = vmul.f32 %v1234, 0.5
    %v1446 = vmul.f32 %v1238, 0.5
    %v1447 = vtanh.pop %v1431
    %v1448 = vtanh.pop %v1432
    %v1449 = vtanh.pop %v1433
    %v1450 = vtanh.pop %v1434
    %v1451 = vtanh.pop %v1435
    %v1452 = vtanh.pop %v1436
    %v1453 = vtanh.pop %v1437
    %v1454 = vtanh.pop %v1438
    %v1455 = vtanh.pop %v1439
    %v1456 = vtanh.pop %v1440
    %v1457 = vtanh.pop %v1441
    %v1458 = vtanh.pop %v1442
    %v1459 = vtanh.pop %v1443
    %v1460 = vtanh.pop %v1444
    %v1461 = vtanh.pop %v1445
    %v1462 = vtanh.pop %v1446
    %v1463 = vmul.f32 %v1447, 0.5
    %v1464 = vmul.f32 %v1448, 0.5
    %v1465 = vmul.f32 %v1449, 0.5
    %v1466 = vmul.f32 %v1450, 0.5
    %v1467 = vmul.f32 %v1451, 0.5
    %v1468 = vmul.f32 %v1452, 0.5
    %v1469 = vmul.f32 %v1453, 0.5
    %v1470 = vmul.f32 %v1454, 0.5
    %v1471 = vmul.f32 %v1455, 0.5
    %v1472 = vmul.f32 %v1456, 0.5
    %v1473 = vmul.f32 %v1457, 0.5
    %v1474 = vmul.f32 %v1458, 0.5
    %v1475 = vmul.f32 %v1459, 0.5
    %v1476 = vmul.f32 %v1460, 0.5
    %v1477 = vmul.f32 %v1461, 0.5
    %v1478 = vmul.f32 %v1462, 0.5
    %v1479 = vadd.f32 %v1463, 0.5
    %v1480 = vadd.f32 %v1464, 0.5
    %v1481 = vadd.f32 %v1465, 0.5
    %v1482 = vadd.f32 %v1466, 0.5
    %v1483 = vadd.f32 %v1467, 0.5
    %v1484 = vadd.f32 %v1468, 0.5
    %v1485 = vadd.f32 %v1469, 0.5
    %v1486 = vadd.f32 %v1470, 0.5
    %v1487 = vadd.f32 %v1471, 0.5
    %v1488 = vadd.f32 %v1472, 0.5
    %v1489 = vadd.f32 %v1473, 0.5
    %v1490 = vadd.f32 %v1474, 0.5
    %v1491 = vadd.f32 %v1475, 0.5
    %v1492 = vadd.f32 %v1476, 0.5
    %v1493 = vadd.f32 %v1477, 0.5
    %v1494 = vadd.f32 %v1478, 0.5
    %v1495 = vtanh.pop %v1415
    %v1496 = vtanh.pop %v1416
    %v1497 = vtanh.pop %v1417
    %v1498 = vtanh.pop %v1418
    %v1499 = vtanh.pop %v1419
    %v1500 = vtanh.pop %v1420
    %v1501 = vtanh.pop %v1421
    %v1502 = vtanh.pop %v1422
    %v1503 = vtanh.pop %v1423
    %v1504 = vtanh.pop %v1424
    %v1505 = vtanh.pop %v1425
    %v1506 = vtanh.pop %v1426
    %v1507 = vtanh.pop %v1427
    %v1508 = vtanh.pop %v1428
    %v1509 = vtanh.pop %v1429
    %v1510 = vtanh.pop %v1430
    %v1511 = vmul.f32 %v1479, %v1495
    %v1512 = vmul.f32 %v1480, %v1496
    %v1513 = vmul.f32 %v1481, %v1497
    %v1514 = vmul.f32 %v1482, %v1498
    %v1515 = vmul.f32 %v1483, %v1499
    %v1516 = vmul.f32 %v1484, %v1500
    %v1517 = vmul.f32 %v1485, %v1501
    %v1518 = vmul.f32 %v1486, %v1502
    %v1519 = vmul.f32 %v1487, %v1503
    %v1520 = vmul.f32 %v1488, %v1504
    %v1521 = vmul.f32 %v1489, %v1505
    %v1522 = vmul.f32 %v1490, %v1506
    %v1523 = vmul.f32 %v1491, %v1507
    %v1524 = vmul.f32 %v1492, %v1508
    %v1525 = vmul.f32 %v1493, %v1509
    %v1526 = vmul.f32 %v1494, %v1510
    %v1527 = vpack.c.bf16 %v1512, %v1511
    %v1528 = vpack.c.bf16 %v1514, %v1513
    %v1529 = vpack.c.bf16 %v1516, %v1515
    %v1530 = vpack.c.bf16 %v1518, %v1517
    %v1531 = vpack.c.bf16 %v1520, %v1519
    %v1532 = vpack.c.bf16 %v1522, %v1521
    %v1533 = vpack.c.bf16 %v1524, %v1523
    %v1534 = vpack.c.bf16 %v1526, %v1525
    %1535 = vmatprep.subr.bf16.mxu0 %v237
    %1536 = vmatpush1.bf16.msra.mxu0 %v236
    %1537 = vmatprep.subr.bf16.mxu0 %v233
    %1538 = vmatpush1.bf16.msra.mxu0 %v232
    %1539 = vmatprep.subr.bf16.mxu0 %v229
    %1540 = vmatpush1.bf16.msra.mxu0 %v228
    %1541 = vmatprep.subr.bf16.mxu0 %v225
    %1542 = vmatpush1.bf16.msra.mxu0 %v224
    %1543 = vmatprep.subr.bf16.mxu0 %v221
    %1544 = vmatpush1.bf16.msra.mxu0 %v220
    %1545 = vmatprep.subr.bf16.mxu0 %v217
    %1546 = vmatpush1.bf16.msra.mxu0 %v216
    %1547 = vmatprep.subr.bf16.mxu0 %v213
    %1548 = vmatpush1.bf16.msra.mxu0 %v212
    %1549 = vmatprep.subr.bf16.mxu0 %v209
    %1550 = vmatpush1.bf16.msra.mxu0 %v208
    %1551 = vmatprep.subr.bf16.mxu0 0
    %1552 = vmatpush2.bf16.msra.mxu0 0
    %1553 = vmatprep.subr.bf16.mxu0 0
    %1554 = vmatpush2.bf16.msra.mxu0 0
    %1555 = vmatprep.subr.bf16.mxu0 0
    %1556 = vmatpush2.bf16.msra.mxu0 0
    %1557 = vmatprep.subr.bf16.mxu0 0
    %1558 = vmatpush2.bf16.msra.mxu0 0
    %1559 = vmatprep.subr.bf16.mxu0 0
    %1560 = vmatpush2.bf16.msra.mxu0 0
    %1561 = vmatprep.subr.bf16.mxu0 0
    %1562 = vmatpush2.bf16.msra.mxu0 0
    %1563 = vmatprep.subr.bf16.mxu0 0
    %1564 = vmatpush2.bf16.msra.mxu0 0
    %1565 = vmatprep.subr.bf16.mxu0 0
    %1566 = vmatpush2.bf16.msra.mxu0 0
    %1567 = vmatprep.mubr.bf16.mxu0 0
    %1568 = vmatmul.mubr.bf16.gmra.mxu0 %v1527
    %v1569 = vpop.f32.mrf.mxu0
    %v1570 = vadd.f32 %v48, %v1569
    %v1571 = vpop.f32.mrf.mxu0
    %v1572 = vadd.f32 %v49, %v1571
    %v1573 = vpop.f32.mrf.mxu0
    %v1574 = vadd.f32 %v52, %v1573
    %v1575 = vpop.f32.mrf.mxu0
    %v1576 = vadd.f32 %v53, %v1575
    %1577 = vmatprep.mubr.bf16.mxu0 0
    %1578 = vmatmul.mubr.bf16.gmra.mxu0 %v1528
    %v1579 = vpop.f32.mrf.mxu0
    %v1580 = vadd.f32 %v56, %v1579
    %v1581 = vpop.f32.mrf.mxu0
    %v1582 = vadd.f32 %v57, %v1581
    %v1583 = vpop.f32.mrf.mxu0
    %v1584 = vadd.f32 %v60, %v1583
    %v1585 = vpop.f32.mrf.mxu0
    %v1586 = vadd.f32 %v61, %v1585
    %1587 = vmatprep.mubr.bf16.mxu0 0
    %1588 = vmatmul.mubr.bf16.gmra.mxu0 %v1529
    %v1589 = vpop.f32.mrf.mxu0
    %v1590 = vadd.f32 %v64, %v1589
    %v1591 = vpop.f32.mrf.mxu0
    %v1592 = vadd.f32 %v65, %v1591
    %v1593 = vpop.f32.mrf.mxu0
    %v1594 = vadd.f32 %v68, %v1593
    %v1595 = vpop.f32.mrf.mxu0
    %v1596 = vadd.f32 %v69, %v1595
    %1597 = vmatprep.mubr.bf16.mxu0 0
    %1598 = vmatmul.mubr.bf16.gmra.mxu0 %v1530
    %v1599 = vpop.f32.mrf.mxu0
    %v1600 = vadd.f32 %v72, %v1599
    %v1601 = vpop.f32.mrf.mxu0
    %v1602 = vadd.f32 %v73, %v1601
    %v1603 = vpop.f32.mrf.mxu0
    %v1604 = vadd.f32 %v76, %v1603
    %v1605 = vpop.f32.mrf.mxu0
    %v1606 = vadd.f32 %v77, %v1605
    %1607 = vmatprep.mubr.bf16.mxu0 0
    %1608 = vmatmul.mubr.bf16.gmra.mxu0 %v1531
    %v1609 = vpop.f32.mrf.mxu0
    %v1610 = vadd.f32 %v80, %v1609
    %v1611 = vpop.f32.mrf.mxu0
    %v1612 = vadd.f32 %v81, %v1611
    %v1613 = vpop.f32.mrf.mxu0
    %v1614 = vadd.f32 %v84, %v1613
    %v1615 = vpop.f32.mrf.mxu0
    %v1616 = vadd.f32 %v85, %v1615
    %1617 = vmatprep.mubr.bf16.mxu0 0
    %1618 = vmatmul.mubr.bf16.gmra.mxu0 %v1532
    %v1619 = vpop.f32.mrf.mxu0
    %v1620 = vadd.f32 %v88, %v1619
    %v1621 = vpop.f32.mrf.mxu0
    %v1622 = vadd.f32 %v89, %v1621
    %v1623 = vpop.f32.mrf.mxu0
    %v1624 = vadd.f32 %v92, %v1623
    %v1625 = vpop.f32.mrf.mxu0
    %v1626 = vadd.f32 %v93, %v1625
    %1627 = vmatprep.mubr.bf16.mxu0 0
    %1628 = vmatmul.mubr.bf16.gmra.mxu0 %v1533
    %v1629 = vpop.f32.mrf.mxu0
    %v1630 = vadd.f32 %v96, %v1629
    %v1631 = vpop.f32.mrf.mxu0
    %v1632 = vadd.f32 %v97, %v1631
    %v1633 = vpop.f32.mrf.mxu0
    %v1634 = vadd.f32 %v100, %v1633
    %v1635 = vpop.f32.mrf.mxu0
    %v1636 = vadd.f32 %v101, %v1635
    %1637 = vmatprep.mubr.bf16.mxu0 0
    %1638 = vmatmul.mubr.bf16.gmra.mxu0 %v1534
    %v1639 = vpop.f32.mrf.mxu0
    %v1640 = vadd.f32 %v104, %v1639
    %v1641 = vpop.f32.mrf.mxu0
    %v1642 = vadd.f32 %v105, %v1641
    %v1643 = vpop.f32.mrf.mxu0
    %v1644 = vadd.f32 %v108, %v1643
    %v1645 = vpop.f32.mrf.mxu0
    %v1646 = vadd.f32 %v109, %v1645
    %1647 = vdwg.mxu0
    %1648 = vmatprep.subr.bf16.mxu0 %v239
    %1649 = vmatpush1.bf16.msra.mxu0 %v238
    %1650 = vmatprep.subr.bf16.mxu0 %v235
    %1651 = vmatpush1.bf16.msra.mxu0 %v234
    %1652 = vmatprep.subr.bf16.mxu0 %v231
    %1653 = vmatpush1.bf16.msra.mxu0 %v230
    %1654 = vmatprep.subr.bf16.mxu0 %v227
    %1655 = vmatpush1.bf16.msra.mxu0 %v226
    %1656 = vmatprep.subr.bf16.mxu0 %v223
    %1657 = vmatpush1.bf16.msra.mxu0 %v222
    %1658 = vmatprep.subr.bf16.mxu0 %v219
    %1659 = vmatpush1.bf16.msra.mxu0 %v218
    %1660 = vmatprep.subr.bf16.mxu0 %v215
    %1661 = vmatpush1.bf16.msra.mxu0 %v214
    %1662 = vmatprep.subr.bf16.mxu0 %v211
    %1663 = vmatpush1.bf16.msra.mxu0 %v210
    %1664 = vmatprep.subr.bf16.mxu0 0
    %1665 = vmatpush2.bf16.msra.mxu0 0
    %1666 = vmatprep.subr.bf16.mxu0 0
    %1667 = vmatpush2.bf16.msra.mxu0 0
    %1668 = vmatprep.subr.bf16.mxu0 0
    %1669 = vmatpush2.bf16.msra.mxu0 0
    %1670 = vmatprep.subr.bf16.mxu0 0
    %1671 = vmatpush2.bf16.msra.mxu0 0
    %1672 = vmatprep.subr.bf16.mxu0 0
    %1673 = vmatpush2.bf16.msra.mxu0 0
    %1674 = vmatprep.subr.bf16.mxu0 0
    %1675 = vmatpush2.bf16.msra.mxu0 0
    %1676 = vmatprep.subr.bf16.mxu0 0
    %1677 = vmatpush2.bf16.msra.mxu0 0
    %1678 = vmatprep.subr.bf16.mxu0 0
    %1679 = vmatpush2.bf16.msra.mxu0 0
    %1680 = vmatprep.mubr.bf16.mxu0 0
    %1681 = vmatmul.mubr.bf16.gmra.mxu0 %v1527
    %v1682 = vpop.f32.mrf.mxu0
    %v1683 = vadd.f32 %v50, %v1682
    %v1684 = vpop.f32.mrf.mxu0
    %v1685 = vadd.f32 %v51, %v1684
    %v1686 = vpop.f32.mrf.mxu0
    %v1687 = vadd.f32 %v54, %v1686
    %v1688 = vpop.f32.mrf.mxu0
    %v1689 = vadd.f32 %v55, %v1688
    %1690 = vmatprep.mubr.bf16.mxu0 0
    %1691 = vmatmul.mubr.bf16.gmra.mxu0 %v1528
    %v1692 = vpop.f32.mrf.mxu0
    %v1693 = vadd.f32 %v58, %v1692
    %v1694 = vpop.f32.mrf.mxu0
    %v1695 = vadd.f32 %v59, %v1694
    %v1696 = vpop.f32.mrf.mxu0
    %v1697 = vadd.f32 %v62, %v1696
    %v1698 = vpop.f32.mrf.mxu0
    %v1699 = vadd.f32 %v63, %v1698
    %1700 = vmatprep.mubr.bf16.mxu0 0
    %1701 = vmatmul.mubr.bf16.gmra.mxu0 %v1529
    %v1702 = vpop.f32.mrf.mxu0
    %v1703 = vadd.f32 %v66, %v1702
    %v1704 = vpop.f32.mrf.mxu0
    %v1705 = vadd.f32 %v67, %v1704
    %v1706 = vpop.f32.mrf.mxu0
    %v1707 = vadd.f32 %v70, %v1706
    %v1708 = vpop.f32.mrf.mxu0
    %v1709 = vadd.f32 %v71, %v1708
    %1710 = vmatprep.mubr.bf16.mxu0 0
    %1711 = vmatmul.mubr.bf16.gmra.mxu0 %v1530
    %v1712 = vpop.f32.mrf.mxu0
    %v1713 = vadd.f32 %v74, %v1712
    %v1714 = vpop.f32.mrf.mxu0
    %v1715 = vadd.f32 %v75, %v1714
    %v1716 = vpop.f32.mrf.mxu0
    %v1717 = vadd.f32 %v78, %v1716
    %v1718 = vpop.f32.mrf.mxu0
    %v1719 = vadd.f32 %v79, %v1718
    %1720 = vmatprep.mubr.bf16.mxu0 0
    %1721 = vmatmul.mubr.bf16.gmra.mxu0 %v1531
    %v1722 = vpop.f32.mrf.mxu0
    %v1723 = vadd.f32 %v82, %v1722
    %v1724 = vpop.f32.mrf.mxu0
    %v1725 = vadd.f32 %v83, %v1724
    %v1726 = vpop.f32.mrf.mxu0
    %v1727 = vadd.f32 %v86, %v1726
    %v1728 = vpop.f32.mrf.mxu0
    %v1729 = vadd.f32 %v87, %v1728
    %1730 = vmatprep.mubr.bf16.mxu0 0
    %1731 = vmatmul.mubr.bf16.gmra.mxu0 %v1532
    %v1732 = vpop.f32.mrf.mxu0
    %v1733 = vadd.f32 %v90, %v1732
    %v1734 = vpop.f32.mrf.mxu0
    %v1735 = vadd.f32 %v91, %v1734
    %v1736 = vpop.f32.mrf.mxu0
    %v1737 = vadd.f32 %v94, %v1736
    %v1738 = vpop.f32.mrf.mxu0
    %v1739 = vadd.f32 %v95, %v1738
    %1740 = vmatprep.mubr.bf16.mxu0 0
    %1741 = vmatmul.mubr.bf16.gmra.mxu0 %v1533
    %v1742 = vpop.f32.mrf.mxu0
    %v1743 = vadd.f32 %v98, %v1742
    %v1744 = vpop.f32.mrf.mxu0
    %v1745 = vadd.f32 %v99, %v1744
    %v1746 = vpop.f32.mrf.mxu0
    %v1747 = vadd.f32 %v102, %v1746
    %v1748 = vpop.f32.mrf.mxu0
    %v1749 = vadd.f32 %v103, %v1748
    %1750 = vmatprep.mubr.bf16.mxu0 0
    %1751 = vmatmul.mubr.bf16.gmra.mxu0 %v1534
    %v1752 = vpop.f32.mrf.mxu0
    %v1753 = vadd.f32 %v106, %v1752
    %v1754 = vpop.f32.mrf.mxu0
    %v1755 = vadd.f32 %v107, %v1754
    %v1756 = vpop.f32.mrf.mxu0
    %v1757 = vadd.f32 %v110, %v1756
    %v1758 = vpop.f32.mrf.mxu0
    %v1759 = vadd.f32 %v111, %v1758
    %1760 = vdwg.mxu0
    %s1761 = scalar_lea.vmem %s0, 2
    %v1762 = vld [vmem:[%s1761] ss:$8 sm:$0xf]
    %v1764 = vlaneseq
    %v1765 = vshrl.u32 %v1764, 7
    %v1766 = vsub.s32 0, %v1765
    %v1767 = vrot.slane %v1762, %v1766
    %v1768 = vlaneseq
    %v1769 = vshrl.u32 %v1768, 7
    %v1770 = vsub.s32 1, %v1769
    %v1771 = vrot.slane %v1762, %v1770
    %v1772 = vlaneseq
    %v1773 = vshrl.u32 %v1772, 7
    %v1774 = vsub.s32 2, %v1773
    %v1775 = vrot.slane %v1762, %v1774
    %v1776 = vlaneseq
    %v1777 = vshrl.u32 %v1776, 7
    %v1778 = vsub.s32 3, %v1777
    %v1779 = vrot.slane %v1762, %v1778
    %s1784 = scalar_lea.vmem %s520, 2
    %v1785 = vld [vmem:[%s1784] ss:$8 sm:$0xf]
    %v1787 = vlaneseq
    %v1788 = vshrl.u32 %v1787, 7
    %v1789 = vsub.s32 0, %v1788
    %v1790 = vrot.slane %v1785, %v1789
    %v1791 = vlaneseq
    %v1792 = vshrl.u32 %v1791, 7
    %v1793 = vsub.s32 1, %v1792
    %v1794 = vrot.slane %v1785, %v1793
    %v1795 = vlaneseq
    %v1796 = vshrl.u32 %v1795, 7
    %v1797 = vsub.s32 2, %v1796
    %v1798 = vrot.slane %v1785, %v1797
    %v1799 = vlaneseq
    %v1800 = vshrl.u32 %v1799, 7
    %v1801 = vsub.s32 3, %v1800
    %v1802 = vrot.slane %v1785, %v1801
    %v1807 = vadd.f32 %v1570, %v1767
    %v1808 = vadd.f32 %v1572, %v1771
    %v1809 = vadd.f32 %v1683, %v1775
    %v1810 = vadd.f32 %v1685, %v1779
    %v1811 = vadd.f32 %v1574, %v1767
    %v1812 = vadd.f32 %v1576, %v1771
    %v1813 = vadd.f32 %v1687, %v1775
    %v1814 = vadd.f32 %v1689, %v1779
    %v1815 = vadd.f32 %v1580, %v1767
    %v1816 = vadd.f32 %v1582, %v1771
    %v1817 = vadd.f32 %v1693, %v1775
    %v1818 = vadd.f32 %v1695, %v1779
    %v1819 = vadd.f32 %v1584, %v1767
    %v1820 = vadd.f32 %v1586, %v1771
    %v1821 = vadd.f32 %v1697, %v1775
    %v1822 = vadd.f32 %v1699, %v1779
    %v1823 = vadd.f32 %v1590, %v1767
    %v1824 = vadd.f32 %v1592, %v1771
    %v1825 = vadd.f32 %v1703, %v1775
    %v1826 = vadd.f32 %v1705, %v1779
    %v1827 = vadd.f32 %v1594, %v1767
    %v1828 = vadd.f32 %v1596, %v1771
    %v1829 = vadd.f32 %v1707, %v1775
    %v1830 = vadd.f32 %v1709, %v1779
    %v1831 = vadd.f32 %v1600, %v1767
    %v1832 = vadd.f32 %v1602, %v1771
    %v1833 = vadd.f32 %v1713, %v1775
    %v1834 = vadd.f32 %v1715, %v1779
    %v1835 = vadd.f32 %v1604, %v1767
    %v1836 = vadd.f32 %v1606, %v1771
    %v1837 = vadd.f32 %v1717, %v1775
    %v1838 = vadd.f32 %v1719, %v1779
    %v1839 = vadd.f32 %v1610, %v1790
    %v1840 = vadd.f32 %v1612, %v1794
    %v1841 = vadd.f32 %v1723, %v1798
    %v1842 = vadd.f32 %v1725, %v1802
    %v1843 = vadd.f32 %v1614, %v1790
    %v1844 = vadd.f32 %v1616, %v1794
    %v1845 = vadd.f32 %v1727, %v1798
    %v1846 = vadd.f32 %v1729, %v1802
    %v1847 = vadd.f32 %v1620, %v1790
    %v1848 = vadd.f32 %v1622, %v1794
    %v1849 = vadd.f32 %v1733, %v1798
    %v1850 = vadd.f32 %v1735, %v1802
    %v1851 = vadd.f32 %v1624, %v1790
    %v1852 = vadd.f32 %v1626, %v1794
    %v1853 = vadd.f32 %v1737, %v1798
    %v1854 = vadd.f32 %v1739, %v1802
    %v1855 = vadd.f32 %v1630, %v1790
    %v1856 = vadd.f32 %v1632, %v1794
    %v1857 = vadd.f32 %v1743, %v1798
    %v1858 = vadd.f32 %v1745, %v1802
    %v1859 = vadd.f32 %v1634, %v1790
    %v1860 = vadd.f32 %v1636, %v1794
    %v1861 = vadd.f32 %v1747, %v1798
    %v1862 = vadd.f32 %v1749, %v1802
    %v1863 = vadd.f32 %v1640, %v1790
    %v1864 = vadd.f32 %v1642, %v1794
    %v1865 = vadd.f32 %v1753, %v1798
    %v1866 = vadd.f32 %v1755, %v1802
    %v1867 = vadd.f32 %v1644, %v1790
    %v1868 = vadd.f32 %v1646, %v1794
    %v1869 = vadd.f32 %v1757, %v1798
    %v1870 = vadd.f32 %v1759, %v1802
    %v1871 = vmul.f32 %v1808, 0.5
    %v1872 = vmul.f32 %v1812, 0.5
    %v1873 = vmul.f32 %v1816, 0.5
    %v1874 = vmul.f32 %v1820, 0.5
    %v1875 = vmul.f32 %v1824, 0.5
    %v1876 = vmul.f32 %v1828, 0.5
    %v1877 = vmul.f32 %v1832, 0.5
    %v1878 = vmul.f32 %v1836, 0.5
    %v1879 = vmul.f32 %v1840, 0.5
    %v1880 = vmul.f32 %v1844, 0.5
    %v1881 = vmul.f32 %v1848, 0.5
    %v1882 = vmul.f32 %v1852, 0.5
    %v1883 = vmul.f32 %v1856, 0.5
    %v1884 = vmul.f32 %v1860, 0.5
    %v1885 = vmul.f32 %v1864, 0.5
    %v1886 = vmul.f32 %v1868, 0.5
    %v1887 = vtanh.pop %v1871
    %v1888 = vtanh.pop %v1872
    %v1889 = vtanh.pop %v1873
    %v1890 = vtanh.pop %v1874
    %v1891 = vtanh.pop %v1875
    %v1892 = vtanh.pop %v1876
    %v1893 = vtanh.pop %v1877
    %v1894 = vtanh.pop %v1878
    %v1895 = vtanh.pop %v1879
    %v1896 = vtanh.pop %v1880
    %v1897 = vtanh.pop %v1881
    %v1898 = vtanh.pop %v1882
    %v1899 = vtanh.pop %v1883
    %v1900 = vtanh.pop %v1884
    %v1901 = vtanh.pop %v1885
    %v1902 = vtanh.pop %v1886
    %v1903 = vmul.f32 %v1887, 0.5
    %v1904 = vmul.f32 %v1888, 0.5
    %v1905 = vmul.f32 %v1889, 0.5
    %v1906 = vmul.f32 %v1890, 0.5
    %v1907 = vmul.f32 %v1891, 0.5
    %v1908 = vmul.f32 %v1892, 0.5
    %v1909 = vmul.f32 %v1893, 0.5
    %v1910 = vmul.f32 %v1894, 0.5
    %v1911 = vmul.f32 %v1895, 0.5
    %v1912 = vmul.f32 %v1896, 0.5
    %v1913 = vmul.f32 %v1897, 0.5
    %v1914 = vmul.f32 %v1898, 0.5
    %v1915 = vmul.f32 %v1899, 0.5
    %v1916 = vmul.f32 %v1900, 0.5
    %v1917 = vmul.f32 %v1901, 0.5
    %v1918 = vmul.f32 %v1902, 0.5
    %v1919 = vadd.f32 %v1903, 0.5
    %v1920 = vadd.f32 %v1904, 0.5
    %v1921 = vadd.f32 %v1905, 0.5
    %v1922 = vadd.f32 %v1906, 0.5
    %v1923 = vadd.f32 %v1907, 0.5
    %v1924 = vadd.f32 %v1908, 0.5
    %v1925 = vadd.f32 %v1909, 0.5
    %v1926 = vadd.f32 %v1910, 0.5
    %v1927 = vadd.f32 %v1911, 0.5
    %v1928 = vadd.f32 %v1912, 0.5
    %v1929 = vadd.f32 %v1913, 0.5
    %v1930 = vadd.f32 %v1914, 0.5
    %v1931 = vadd.f32 %v1915, 0.5
    %v1932 = vadd.f32 %v1916, 0.5
    %v1933 = vadd.f32 %v1917, 0.5
    %v1934 = vadd.f32 %v1918, 0.5
    %v1935 = vmul.f32 %v1919, %v1415
    %v1936 = vmul.f32 %v1920, %v1416
    %v1937 = vmul.f32 %v1921, %v1417
    %v1938 = vmul.f32 %v1922, %v1418
    %v1939 = vmul.f32 %v1923, %v1419
    %v1940 = vmul.f32 %v1924, %v1420
    %v1941 = vmul.f32 %v1925, %v1421
    %v1942 = vmul.f32 %v1926, %v1422
    %v1943 = vmul.f32 %v1927, %v1423
    %v1944 = vmul.f32 %v1928, %v1424
    %v1945 = vmul.f32 %v1929, %v1425
    %v1946 = vmul.f32 %v1930, %v1426
    %v1947 = vmul.f32 %v1931, %v1427
    %v1948 = vmul.f32 %v1932, %v1428
    %v1949 = vmul.f32 %v1933, %v1429
    %v1950 = vmul.f32 %v1934, %v1430
    %v1951 = vmul.f32 %v1807, 0.5
    %v1952 = vmul.f32 %v1811, 0.5
    %v1953 = vmul.f32 %v1815, 0.5
    %v1954 = vmul.f32 %v1819, 0.5
    %v1955 = vmul.f32 %v1823, 0.5
    %v1956 = vmul.f32 %v1827, 0.5
    %v1957 = vmul.f32 %v1831, 0.5
    %v1958 = vmul.f32 %v1835, 0.5
    %v1959 = vmul.f32 %v1839, 0.5
    %v1960 = vmul.f32 %v1843, 0.5
    %v1961 = vmul.f32 %v1847, 0.5
    %v1962 = vmul.f32 %v1851, 0.5
    %v1963 = vmul.f32 %v1855, 0.5
    %v1964 = vmul.f32 %v1859, 0.5
    %v1965 = vmul.f32 %v1863, 0.5
    %v1966 = vmul.f32 %v1867, 0.5
    %v1967 = vtanh.pop %v1951
    %v1968 = vtanh.pop %v1952
    %v1969 = vtanh.pop %v1953
    %v1970 = vtanh.pop %v1954
    %v1971 = vtanh.pop %v1955
    %v1972 = vtanh.pop %v1956
    %v1973 = vtanh.pop %v1957
    %v1974 = vtanh.pop %v1958
    %v1975 = vtanh.pop %v1959
    %v1976 = vtanh.pop %v1960
    %v1977 = vtanh.pop %v1961
    %v1978 = vtanh.pop %v1962
    %v1979 = vtanh.pop %v1963
    %v1980 = vtanh.pop %v1964
    %v1981 = vtanh.pop %v1965
    %v1982 = vtanh.pop %v1966
    %v1983 = vmul.f32 %v1967, 0.5
    %v1984 = vmul.f32 %v1968, 0.5
    %v1985 = vmul.f32 %v1969, 0.5
    %v1986 = vmul.f32 %v1970, 0.5
    %v1987 = vmul.f32 %v1971, 0.5
    %v1988 = vmul.f32 %v1972, 0.5
    %v1989 = vmul.f32 %v1973, 0.5
    %v1990 = vmul.f32 %v1974, 0.5
    %v1991 = vmul.f32 %v1975, 0.5
    %v1992 = vmul.f32 %v1976, 0.5
    %v1993 = vmul.f32 %v1977, 0.5
    %v1994 = vmul.f32 %v1978, 0.5
    %v1995 = vmul.f32 %v1979, 0.5
    %v1996 = vmul.f32 %v1980, 0.5
    %v1997 = vmul.f32 %v1981, 0.5
    %v1998 = vmul.f32 %v1982, 0.5
    %v1999 = vadd.f32 %v1983, 0.5
    %v2000 = vadd.f32 %v1984, 0.5
    %v2001 = vadd.f32 %v1985, 0.5
    %v2002 = vadd.f32 %v1986, 0.5
    %v2003 = vadd.f32 %v1987, 0.5
    %v2004 = vadd.f32 %v1988, 0.5
    %v2005 = vadd.f32 %v1989, 0.5
    %v2006 = vadd.f32 %v1990, 0.5
    %v2007 = vadd.f32 %v1991, 0.5
    %v2008 = vadd.f32 %v1992, 0.5
    %v2009 = vadd.f32 %v1993, 0.5
    %v2010 = vadd.f32 %v1994, 0.5
    %v2011 = vadd.f32 %v1995, 0.5
    %v2012 = vadd.f32 %v1996, 0.5
    %v2013 = vadd.f32 %v1997, 0.5
    %v2014 = vadd.f32 %v1998, 0.5
    %v2015 = vtanh.pop %v1809
    %v2016 = vtanh.pop %v1813
    %v2017 = vtanh.pop %v1817
    %v2018 = vtanh.pop %v1821
    %v2019 = vtanh.pop %v1825
    %v2020 = vtanh.pop %v1829
    %v2021 = vtanh.pop %v1833
    %v2022 = vtanh.pop %v1837
    %v2023 = vtanh.pop %v1841
    %v2024 = vtanh.pop %v1845
    %v2025 = vtanh.pop %v1849
    %v2026 = vtanh.pop %v1853
    %v2027 = vtanh.pop %v1857
    %v2028 = vtanh.pop %v1861
    %v2029 = vtanh.pop %v1865
    %v2030 = vtanh.pop %v1869
    %v2031 = vmul.f32 %v1999, %v2015
    %v2032 = vmul.f32 %v2000, %v2016
    %v2033 = vmul.f32 %v2001, %v2017
    %v2034 = vmul.f32 %v2002, %v2018
    %v2035 = vmul.f32 %v2003, %v2019
    %v2036 = vmul.f32 %v2004, %v2020
    %v2037 = vmul.f32 %v2005, %v2021
    %v2038 = vmul.f32 %v2006, %v2022
    %v2039 = vmul.f32 %v2007, %v2023
    %v2040 = vmul.f32 %v2008, %v2024
    %v2041 = vmul.f32 %v2009, %v2025
    %v2042 = vmul.f32 %v2010, %v2026
    %v2043 = vmul.f32 %v2011, %v2027
    %v2044 = vmul.f32 %v2012, %v2028
    %v2045 = vmul.f32 %v2013, %v2029
    %v2046 = vmul.f32 %v2014, %v2030
    %v2047 = vadd.f32 %v1935, %v2031
    %v2048 = vadd.f32 %v1936, %v2032
    %v2049 = vadd.f32 %v1937, %v2033
    %v2050 = vadd.f32 %v1938, %v2034
    %v2051 = vadd.f32 %v1939, %v2035
    %v2052 = vadd.f32 %v1940, %v2036
    %v2053 = vadd.f32 %v1941, %v2037
    %v2054 = vadd.f32 %v1942, %v2038
    %v2055 = vadd.f32 %v1943, %v2039
    %v2056 = vadd.f32 %v1944, %v2040
    %v2057 = vadd.f32 %v1945, %v2041
    %v2058 = vadd.f32 %v1946, %v2042
    %v2059 = vadd.f32 %v1947, %v2043
    %v2060 = vadd.f32 %v1948, %v2044
    %v2061 = vadd.f32 %v1949, %v2045
    %v2062 = vadd.f32 %v1950, %v2046
    %v2063 = vmul.f32 %v1810, 0.5
    %v2064 = vmul.f32 %v1814, 0.5
    %v2065 = vmul.f32 %v1818, 0.5
    %v2066 = vmul.f32 %v1822, 0.5
    %v2067 = vmul.f32 %v1826, 0.5
    %v2068 = vmul.f32 %v1830, 0.5
    %v2069 = vmul.f32 %v1834, 0.5
    %v2070 = vmul.f32 %v1838, 0.5
    %v2071 = vmul.f32 %v1842, 0.5
    %v2072 = vmul.f32 %v1846, 0.5
    %v2073 = vmul.f32 %v1850, 0.5
    %v2074 = vmul.f32 %v1854, 0.5
    %v2075 = vmul.f32 %v1858, 0.5
    %v2076 = vmul.f32 %v1862, 0.5
    %v2077 = vmul.f32 %v1866, 0.5
    %v2078 = vmul.f32 %v1870, 0.5
    %v2079 = vtanh.pop %v2063
    %v2080 = vtanh.pop %v2064
    %v2081 = vtanh.pop %v2065
    %v2082 = vtanh.pop %v2066
    %v2083 = vtanh.pop %v2067
    %v2084 = vtanh.pop %v2068
    %v2085 = vtanh.pop %v2069
    %v2086 = vtanh.pop %v2070
    %v2087 = vtanh.pop %v2071
    %v2088 = vtanh.pop %v2072
    %v2089 = vtanh.pop %v2073
    %v2090 = vtanh.pop %v2074
    %v2091 = vtanh.pop %v2075
    %v2092 = vtanh.pop %v2076
    %v2093 = vtanh.pop %v2077
    %v2094 = vtanh.pop %v2078
    %v2095 = vmul.f32 %v2079, 0.5
    %v2096 = vmul.f32 %v2080, 0.5
    %v2097 = vmul.f32 %v2081, 0.5
    %v2098 = vmul.f32 %v2082, 0.5
    %v2099 = vmul.f32 %v2083, 0.5
    %v2100 = vmul.f32 %v2084, 0.5
    %v2101 = vmul.f32 %v2085, 0.5
    %v2102 = vmul.f32 %v2086, 0.5
    %v2103 = vmul.f32 %v2087, 0.5
    %v2104 = vmul.f32 %v2088, 0.5
    %v2105 = vmul.f32 %v2089, 0.5
    %v2106 = vmul.f32 %v2090, 0.5
    %v2107 = vmul.f32 %v2091, 0.5
    %v2108 = vmul.f32 %v2092, 0.5
    %v2109 = vmul.f32 %v2093, 0.5
    %v2110 = vmul.f32 %v2094, 0.5
    %v2111 = vadd.f32 %v2095, 0.5
    %v2112 = vadd.f32 %v2096, 0.5
    %v2113 = vadd.f32 %v2097, 0.5
    %v2114 = vadd.f32 %v2098, 0.5
    %v2115 = vadd.f32 %v2099, 0.5
    %v2116 = vadd.f32 %v2100, 0.5
    %v2117 = vadd.f32 %v2101, 0.5
    %v2118 = vadd.f32 %v2102, 0.5
    %v2119 = vadd.f32 %v2103, 0.5
    %v2120 = vadd.f32 %v2104, 0.5
    %v2121 = vadd.f32 %v2105, 0.5
    %v2122 = vadd.f32 %v2106, 0.5
    %v2123 = vadd.f32 %v2107, 0.5
    %v2124 = vadd.f32 %v2108, 0.5
    %v2125 = vadd.f32 %v2109, 0.5
    %v2126 = vadd.f32 %v2110, 0.5
    %v2127 = vtanh.pop %v2047
    %v2128 = vtanh.pop %v2048
    %v2129 = vtanh.pop %v2049
    %v2130 = vtanh.pop %v2050
    %v2131 = vtanh.pop %v2051
    %v2132 = vtanh.pop %v2052
    %v2133 = vtanh.pop %v2053
    %v2134 = vtanh.pop %v2054
    %v2135 = vtanh.pop %v2055
    %v2136 = vtanh.pop %v2056
    %v2137 = vtanh.pop %v2057
    %v2138 = vtanh.pop %v2058
    %v2139 = vtanh.pop %v2059
    %v2140 = vtanh.pop %v2060
    %v2141 = vtanh.pop %v2061
    %v2142 = vtanh.pop %v2062
    %v2143 = vmul.f32 %v2111, %v2127
    %v2144 = vmul.f32 %v2112, %v2128
    %v2145 = vmul.f32 %v2113, %v2129
    %v2146 = vmul.f32 %v2114, %v2130
    %v2147 = vmul.f32 %v2115, %v2131
    %v2148 = vmul.f32 %v2116, %v2132
    %v2149 = vmul.f32 %v2117, %v2133
    %v2150 = vmul.f32 %v2118, %v2134
    %v2151 = vmul.f32 %v2119, %v2135
    %v2152 = vmul.f32 %v2120, %v2136
    %v2153 = vmul.f32 %v2121, %v2137
    %v2154 = vmul.f32 %v2122, %v2138
    %v2155 = vmul.f32 %v2123, %v2139
    %v2156 = vmul.f32 %v2124, %v2140
    %v2157 = vmul.f32 %v2125, %v2141
    %v2158 = vmul.f32 %v2126, %v2142
    %v2159 = vpack.c.bf16 %v2144, %v2143
    %v2160 = vpack.c.bf16 %v2146, %v2145
    %v2161 = vpack.c.bf16 %v2148, %v2147
    %v2162 = vpack.c.bf16 %v2150, %v2149
    %v2163 = vpack.c.bf16 %v2152, %v2151
    %v2164 = vpack.c.bf16 %v2154, %v2153
    %v2165 = vpack.c.bf16 %v2156, %v2155
    %v2166 = vpack.c.bf16 %v2158, %v2157
    %2167 = vmatprep.subr.bf16.mxu0 %v237
    %2168 = vmatpush1.bf16.msra.mxu0 %v236
    %2169 = vmatprep.subr.bf16.mxu0 %v233
    %2170 = vmatpush1.bf16.msra.mxu0 %v232
    %2171 = vmatprep.subr.bf16.mxu0 %v229
    %2172 = vmatpush1.bf16.msra.mxu0 %v228
    %2173 = vmatprep.subr.bf16.mxu0 %v225
    %2174 = vmatpush1.bf16.msra.mxu0 %v224
    %2175 = vmatprep.subr.bf16.mxu0 %v221
    %2176 = vmatpush1.bf16.msra.mxu0 %v220
    %2177 = vmatprep.subr.bf16.mxu0 %v217
    %2178 = vmatpush1.bf16.msra.mxu0 %v216
    %2179 = vmatprep.subr.bf16.mxu0 %v213
    %2180 = vmatpush1.bf16.msra.mxu0 %v212
    %2181 = vmatprep.subr.bf16.mxu0 %v209
    %2182 = vmatpush1.bf16.msra.mxu0 %v208
    %2183 = vmatprep.subr.bf16.mxu0 0
    %2184 = vmatpush2.bf16.msra.mxu0 0
    %2185 = vmatprep.subr.bf16.mxu0 0
    %2186 = vmatpush2.bf16.msra.mxu0 0
    %2187 = vmatprep.subr.bf16.mxu0 0
    %2188 = vmatpush2.bf16.msra.mxu0 0
    %2189 = vmatprep.subr.bf16.mxu0 0
    %2190 = vmatpush2.bf16.msra.mxu0 0
    %2191 = vmatprep.subr.bf16.mxu0 0
    %2192 = vmatpush2.bf16.msra.mxu0 0
    %2193 = vmatprep.subr.bf16.mxu0 0
    %2194 = vmatpush2.bf16.msra.mxu0 0
    %2195 = vmatprep.subr.bf16.mxu0 0
    %2196 = vmatpush2.bf16.msra.mxu0 0
    %2197 = vmatprep.subr.bf16.mxu0 0
    %2198 = vmatpush2.bf16.msra.mxu0 0
    %2199 = vmatprep.mubr.bf16.mxu0 0
    %2200 = vmatmul.mubr.bf16.gmra.mxu0 %v2159
    %v2201 = vpop.f32.mrf.mxu0
    %v2202 = vadd.f32 %v48, %v2201
    %v2203 = vpop.f32.mrf.mxu0
    %v2204 = vadd.f32 %v49, %v2203
    %v2205 = vpop.f32.mrf.mxu0
    %v2206 = vadd.f32 %v52, %v2205
    %v2207 = vpop.f32.mrf.mxu0
    %v2208 = vadd.f32 %v53, %v2207
    %2209 = vmatprep.mubr.bf16.mxu0 0
    %2210 = vmatmul.mubr.bf16.gmra.mxu0 %v2160
    %v2211 = vpop.f32.mrf.mxu0
    %v2212 = vadd.f32 %v56, %v2211
    %v2213 = vpop.f32.mrf.mxu0
    %v2214 = vadd.f32 %v57, %v2213
    %v2215 = vpop.f32.mrf.mxu0
    %v2216 = vadd.f32 %v60, %v2215
    %v2217 = vpop.f32.mrf.mxu0
    %v2218 = vadd.f32 %v61, %v2217
    %2219 = vmatprep.mubr.bf16.mxu0 0
    %2220 = vmatmul.mubr.bf16.gmra.mxu0 %v2161
    %v2221 = vpop.f32.mrf.mxu0
    %v2222 = vadd.f32 %v64, %v2221
    %v2223 = vpop.f32.mrf.mxu0
    %v2224 = vadd.f32 %v65, %v2223
    %v2225 = vpop.f32.mrf.mxu0
    %v2226 = vadd.f32 %v68, %v2225
    %v2227 = vpop.f32.mrf.mxu0
    %v2228 = vadd.f32 %v69, %v2227
    %2229 = vmatprep.mubr.bf16.mxu0 0
    %2230 = vmatmul.mubr.bf16.gmra.mxu0 %v2162
    %v2231 = vpop.f32.mrf.mxu0
    %v2232 = vadd.f32 %v72, %v2231
    %v2233 = vpop.f32.mrf.mxu0
    %v2234 = vadd.f32 %v73, %v2233
    %v2235 = vpop.f32.mrf.mxu0
    %v2236 = vadd.f32 %v76, %v2235
    %v2237 = vpop.f32.mrf.mxu0
    %v2238 = vadd.f32 %v77, %v2237
    %2239 = vmatprep.mubr.bf16.mxu0 0
    %2240 = vmatmul.mubr.bf16.gmra.mxu0 %v2163
    %v2241 = vpop.f32.mrf.mxu0
    %v2242 = vadd.f32 %v80, %v2241
    %v2243 = vpop.f32.mrf.mxu0
    %v2244 = vadd.f32 %v81, %v2243
    %v2245 = vpop.f32.mrf.mxu0
    %v2246 = vadd.f32 %v84, %v2245
    %v2247 = vpop.f32.mrf.mxu0
    %v2248 = vadd.f32 %v85, %v2247
    %2249 = vmatprep.mubr.bf16.mxu0 0
    %2250 = vmatmul.mubr.bf16.gmra.mxu0 %v2164
    %v2251 = vpop.f32.mrf.mxu0
    %v2252 = vadd.f32 %v88, %v2251
    %v2253 = vpop.f32.mrf.mxu0
    %v2254 = vadd.f32 %v89, %v2253
    %v2255 = vpop.f32.mrf.mxu0
    %v2256 = vadd.f32 %v92, %v2255
    %v2257 = vpop.f32.mrf.mxu0
    %v2258 = vadd.f32 %v93, %v2257
    %2259 = vmatprep.mubr.bf16.mxu0 0
    %2260 = vmatmul.mubr.bf16.gmra.mxu0 %v2165
    %v2261 = vpop.f32.mrf.mxu0
    %v2262 = vadd.f32 %v96, %v2261
    %v2263 = vpop.f32.mrf.mxu0
    %v2264 = vadd.f32 %v97, %v2263
    %v2265 = vpop.f32.mrf.mxu0
    %v2266 = vadd.f32 %v100, %v2265
    %v2267 = vpop.f32.mrf.mxu0
    %v2268 = vadd.f32 %v101, %v2267
    %2269 = vmatprep.mubr.bf16.mxu0 0
    %2270 = vmatmul.mubr.bf16.gmra.mxu0 %v2166
    %v2271 = vpop.f32.mrf.mxu0
    %v2272 = vadd.f32 %v104, %v2271
    %v2273 = vpop.f32.mrf.mxu0
    %v2274 = vadd.f32 %v105, %v2273
    %v2275 = vpop.f32.mrf.mxu0
    %v2276 = vadd.f32 %v108, %v2275
    %v2277 = vpop.f32.mrf.mxu0
    %v2278 = vadd.f32 %v109, %v2277
    %2279 = vdwg.mxu0
    %2280 = vmatprep.subr.bf16.mxu0 %v239
    %2281 = vmatpush1.bf16.msra.mxu0 %v238
    %2282 = vmatprep.subr.bf16.mxu0 %v235
    %2283 = vmatpush1.bf16.msra.mxu0 %v234
    %2284 = vmatprep.subr.bf16.mxu0 %v231
    %2285 = vmatpush1.bf16.msra.mxu0 %v230
    %2286 = vmatprep.subr.bf16.mxu0 %v227
    %2287 = vmatpush1.bf16.msra.mxu0 %v226
    %2288 = vmatprep.subr.bf16.mxu0 %v223
    %2289 = vmatpush1.bf16.msra.mxu0 %v222
    %2290 = vmatprep.subr.bf16.mxu0 %v219
    %2291 = vmatpush1.bf16.msra.mxu0 %v218
    %2292 = vmatprep.subr.bf16.mxu0 %v215
    %2293 = vmatpush1.bf16.msra.mxu0 %v214
    %2294 = vmatprep.subr.bf16.mxu0 %v211
    %2295 = vmatpush1.bf16.msra.mxu0 %v210
    %2296 = vmatprep.subr.bf16.mxu0 0
    %2297 = vmatpush2.bf16.msra.mxu0 0
    %2298 = vmatprep.subr.bf16.mxu0 0
    %2299 = vmatpush2.bf16.msra.mxu0 0
    %2300 = vmatprep.subr.bf16.mxu0 0
    %2301 = vmatpush2.bf16.msra.mxu0 0
    %2302 = vmatprep.subr.bf16.mxu0 0
    %2303 = vmatpush2.bf16.msra.mxu0 0
    %2304 = vmatprep.subr.bf16.mxu0 0
    %2305 = vmatpush2.bf16.msra.mxu0 0
    %2306 = vmatprep.subr.bf16.mxu0 0
    %2307 = vmatpush2.bf16.msra.mxu0 0
    %2308 = vmatprep.subr.bf16.mxu0 0
    %2309 = vmatpush2.bf16.msra.mxu0 0
    %2310 = vmatprep.subr.bf16.mxu0 0
    %2311 = vmatpush2.bf16.msra.mxu0 0
    %2312 = vmatprep.mubr.bf16.mxu0 0
    %2313 = vmatmul.mubr.bf16.gmra.mxu0 %v2159
    %v2314 = vpop.f32.mrf.mxu0
    %v2315 = vadd.f32 %v50, %v2314
    %v2316 = vpop.f32.mrf.mxu0
    %v2317 = vadd.f32 %v51, %v2316
    %v2318 = vpop.f32.mrf.mxu0
    %v2319 = vadd.f32 %v54, %v2318
    %v2320 = vpop.f32.mrf.mxu0
    %v2321 = vadd.f32 %v55, %v2320
    %2322 = vmatprep.mubr.bf16.mxu0 0
    %2323 = vmatmul.mubr.bf16.gmra.mxu0 %v2160
    %v2324 = vpop.f32.mrf.mxu0
    %v2325 = vadd.f32 %v58, %v2324
    %v2326 = vpop.f32.mrf.mxu0
    %v2327 = vadd.f32 %v59, %v2326
    %v2328 = vpop.f32.mrf.mxu0
    %v2329 = vadd.f32 %v62, %v2328
    %v2330 = vpop.f32.mrf.mxu0
    %v2331 = vadd.f32 %v63, %v2330
    %2332 = vmatprep.mubr.bf16.mxu0 0
    %2333 = vmatmul.mubr.bf16.gmra.mxu0 %v2161
    %v2334 = vpop.f32.mrf.mxu0
    %v2335 = vadd.f32 %v66, %v2334
    %v2336 = vpop.f32.mrf.mxu0
    %v2337 = vadd.f32 %v67, %v2336
    %v2338 = vpop.f32.mrf.mxu0
    %v2339 = vadd.f32 %v70, %v2338
    %v2340 = vpop.f32.mrf.mxu0
    %v2341 = vadd.f32 %v71, %v2340
    %2342 = vmatprep.mubr.bf16.mxu0 0
    %2343 = vmatmul.mubr.bf16.gmra.mxu0 %v2162
    %v2344 = vpop.f32.mrf.mxu0
    %v2345 = vadd.f32 %v74, %v2344
    %v2346 = vpop.f32.mrf.mxu0
    %v2347 = vadd.f32 %v75, %v2346
    %v2348 = vpop.f32.mrf.mxu0
    %v2349 = vadd.f32 %v78, %v2348
    %v2350 = vpop.f32.mrf.mxu0
    %v2351 = vadd.f32 %v79, %v2350
    %2352 = vmatprep.mubr.bf16.mxu0 0
    %2353 = vmatmul.mubr.bf16.gmra.mxu0 %v2163
    %v2354 = vpop.f32.mrf.mxu0
    %v2355 = vadd.f32 %v82, %v2354
    %v2356 = vpop.f32.mrf.mxu0
    %v2357 = vadd.f32 %v83, %v2356
    %v2358 = vpop.f32.mrf.mxu0
    %v2359 = vadd.f32 %v86, %v2358
    %v2360 = vpop.f32.mrf.mxu0
    %v2361 = vadd.f32 %v87, %v2360
    %2362 = vmatprep.mubr.bf16.mxu0 0
    %2363 = vmatmul.mubr.bf16.gmra.mxu0 %v2164
    %v2364 = vpop.f32.mrf.mxu0
    %v2365 = vadd.f32 %v90, %v2364
    %v2366 = vpop.f32.mrf.mxu0
    %v2367 = vadd.f32 %v91, %v2366
    %v2368 = vpop.f32.mrf.mxu0
    %v2369 = vadd.f32 %v94, %v2368
    %v2370 = vpop.f32.mrf.mxu0
    %v2371 = vadd.f32 %v95, %v2370
    %2372 = vmatprep.mubr.bf16.mxu0 0
    %2373 = vmatmul.mubr.bf16.gmra.mxu0 %v2165
    %v2374 = vpop.f32.mrf.mxu0
    %v2375 = vadd.f32 %v98, %v2374
    %v2376 = vpop.f32.mrf.mxu0
    %v2377 = vadd.f32 %v99, %v2376
    %v2378 = vpop.f32.mrf.mxu0
    %v2379 = vadd.f32 %v102, %v2378
    %v2380 = vpop.f32.mrf.mxu0
    %v2381 = vadd.f32 %v103, %v2380
    %2382 = vmatprep.mubr.bf16.mxu0 0
    %2383 = vmatmul.mubr.bf16.gmra.mxu0 %v2166
    %v2384 = vpop.f32.mrf.mxu0
    %v2385 = vadd.f32 %v106, %v2384
    %v2386 = vpop.f32.mrf.mxu0
    %v2387 = vadd.f32 %v107, %v2386
    %v2388 = vpop.f32.mrf.mxu0
    %v2389 = vadd.f32 %v110, %v2388
    %v2390 = vpop.f32.mrf.mxu0
    %v2391 = vadd.f32 %v111, %v2390
    %2392 = vdwg.mxu0
    %s2393 = scalar_lea.vmem %s0, 3
    %v2394 = vld [vmem:[%s2393] ss:$8 sm:$0xf]
    %v2396 = vlaneseq
    %v2397 = vshrl.u32 %v2396, 7
    %v2398 = vsub.s32 0, %v2397
    %v2399 = vrot.slane %v2394, %v2398
    %v2400 = vlaneseq
    %v2401 = vshrl.u32 %v2400, 7
    %v2402 = vsub.s32 1, %v2401
    %v2403 = vrot.slane %v2394, %v2402
    %v2404 = vlaneseq
    %v2405 = vshrl.u32 %v2404, 7
    %v2406 = vsub.s32 2, %v2405
    %v2407 = vrot.slane %v2394, %v2406
    %v2408 = vlaneseq
    %v2409 = vshrl.u32 %v2408, 7
    %v2410 = vsub.s32 3, %v2409
    %v2411 = vrot.slane %v2394, %v2410
    %s2416 = scalar_lea.vmem %s520, 3
    %v2417 = vld [vmem:[%s2416] ss:$8 sm:$0xf]
    %v2419 = vlaneseq
    %v2420 = vshrl.u32 %v2419, 7
    %v2421 = vsub.s32 0, %v2420
    %v2422 = vrot.slane %v2417, %v2421
    %v2423 = vlaneseq
    %v2424 = vshrl.u32 %v2423, 7
    %v2425 = vsub.s32 1, %v2424
    %v2426 = vrot.slane %v2417, %v2425
    %v2427 = vlaneseq
    %v2428 = vshrl.u32 %v2427, 7
    %v2429 = vsub.s32 2, %v2428
    %v2430 = vrot.slane %v2417, %v2429
    %v2431 = vlaneseq
    %v2432 = vshrl.u32 %v2431, 7
    %v2433 = vsub.s32 3, %v2432
    %v2434 = vrot.slane %v2417, %v2433
    %v2439 = vadd.f32 %v2202, %v2399
    %v2440 = vadd.f32 %v2204, %v2403
    %v2441 = vadd.f32 %v2315, %v2407
    %v2442 = vadd.f32 %v2317, %v2411
    %v2443 = vadd.f32 %v2206, %v2399
    %v2444 = vadd.f32 %v2208, %v2403
    %v2445 = vadd.f32 %v2319, %v2407
    %v2446 = vadd.f32 %v2321, %v2411
    %v2447 = vadd.f32 %v2212, %v2399
    %v2448 = vadd.f32 %v2214, %v2403
    %v2449 = vadd.f32 %v2325, %v2407
    %v2450 = vadd.f32 %v2327, %v2411
    %v2451 = vadd.f32 %v2216, %v2399
    %v2452 = vadd.f32 %v2218, %v2403
    %v2453 = vadd.f32 %v2329, %v2407
    %v2454 = vadd.f32 %v2331, %v2411
    %v2455 = vadd.f32 %v2222, %v2399
    %v2456 = vadd.f32 %v2224, %v2403
    %v2457 = vadd.f32 %v2335, %v2407
    %v2458 = vadd.f32 %v2337, %v2411
    %v2459 = vadd.f32 %v2226, %v2399
    %v2460 = vadd.f32 %v2228, %v2403
    %v2461 = vadd.f32 %v2339, %v2407
    %v2462 = vadd.f32 %v2341, %v2411
    %v2463 = vadd.f32 %v2232, %v2399
    %v2464 = vadd.f32 %v2234, %v2403
    %v2465 = vadd.f32 %v2345, %v2407
    %v2466 = vadd.f32 %v2347, %v2411
    %v2467 = vadd.f32 %v2236, %v2399
    %v2468 = vadd.f32 %v2238, %v2403
    %v2469 = vadd.f32 %v2349, %v2407
    %v2470 = vadd.f32 %v2351, %v2411
    %v2471 = vadd.f32 %v2242, %v2422
    %v2472 = vadd.f32 %v2244, %v2426
    %v2473 = vadd.f32 %v2355, %v2430
    %v2474 = vadd.f32 %v2357, %v2434
    %v2475 = vadd.f32 %v2246, %v2422
    %v2476 = vadd.f32 %v2248, %v2426
    %v2477 = vadd.f32 %v2359, %v2430
    %v2478 = vadd.f32 %v2361, %v2434
    %v2479 = vadd.f32 %v2252, %v2422
    %v2480 = vadd.f32 %v2254, %v2426
    %v2481 = vadd.f32 %v2365, %v2430
    %v2482 = vadd.f32 %v2367, %v2434
    %v2483 = vadd.f32 %v2256, %v2422
    %v2484 = vadd.f32 %v2258, %v2426
    %v2485 = vadd.f32 %v2369, %v2430
    %v2486 = vadd.f32 %v2371, %v2434
    %v2487 = vadd.f32 %v2262, %v2422
    %v2488 = vadd.f32 %v2264, %v2426
    %v2489 = vadd.f32 %v2375, %v2430
    %v2490 = vadd.f32 %v2377, %v2434
    %v2491 = vadd.f32 %v2266, %v2422
    %v2492 = vadd.f32 %v2268, %v2426
    %v2493 = vadd.f32 %v2379, %v2430
    %v2494 = vadd.f32 %v2381, %v2434
    %v2495 = vadd.f32 %v2272, %v2422
    %v2496 = vadd.f32 %v2274, %v2426
    %v2497 = vadd.f32 %v2385, %v2430
    %v2498 = vadd.f32 %v2387, %v2434
    %v2499 = vadd.f32 %v2276, %v2422
    %v2500 = vadd.f32 %v2278, %v2426
    %v2501 = vadd.f32 %v2389, %v2430
    %v2502 = vadd.f32 %v2391, %v2434
    %v2503 = vmul.f32 %v2440, 0.5
    %v2504 = vmul.f32 %v2444, 0.5
    %v2505 = vmul.f32 %v2448, 0.5
    %v2506 = vmul.f32 %v2452, 0.5
    %v2507 = vmul.f32 %v2456, 0.5
    %v2508 = vmul.f32 %v2460, 0.5
    %v2509 = vmul.f32 %v2464, 0.5
    %v2510 = vmul.f32 %v2468, 0.5
    %v2511 = vmul.f32 %v2472, 0.5
    %v2512 = vmul.f32 %v2476, 0.5
    %v2513 = vmul.f32 %v2480, 0.5
    %v2514 = vmul.f32 %v2484, 0.5
    %v2515 = vmul.f32 %v2488, 0.5
    %v2516 = vmul.f32 %v2492, 0.5
    %v2517 = vmul.f32 %v2496, 0.5
    %v2518 = vmul.f32 %v2500, 0.5
    %v2519 = vtanh.pop %v2503
    %v2520 = vtanh.pop %v2504
    %v2521 = vtanh.pop %v2505
    %v2522 = vtanh.pop %v2506
    %v2523 = vtanh.pop %v2507
    %v2524 = vtanh.pop %v2508
    %v2525 = vtanh.pop %v2509
    %v2526 = vtanh.pop %v2510
    %v2527 = vtanh.pop %v2511
    %v2528 = vtanh.pop %v2512
    %v2529 = vtanh.pop %v2513
    %v2530 = vtanh.pop %v2514
    %v2531 = vtanh.pop %v2515
    %v2532 = vtanh.pop %v2516
    %v2533 = vtanh.pop %v2517
    %v2534 = vtanh.pop %v2518
    %v2535 = vmul.f32 %v2519, 0.5
    %v2536 = vmul.f32 %v2520, 0.5
    %v2537 = vmul.f32 %v2521, 0.5
    %v2538 = vmul.f32 %v2522, 0.5
    %v2539 = vmul.f32 %v2523, 0.5
    %v2540 = vmul.f32 %v2524, 0.5
    %v2541 = vmul.f32 %v2525, 0.5
    %v2542 = vmul.f32 %v2526, 0.5
    %v2543 = vmul.f32 %v2527, 0.5
    %v2544 = vmul.f32 %v2528, 0.5
    %v2545 = vmul.f32 %v2529, 0.5
    %v2546 = vmul.f32 %v2530, 0.5
    %v2547 = vmul.f32 %v2531, 0.5
    %v2548 = vmul.f32 %v2532, 0.5
    %v2549 = vmul.f32 %v2533, 0.5
    %v2550 = vmul.f32 %v2534, 0.5
    %v2551 = vadd.f32 %v2535, 0.5
    %v2552 = vadd.f32 %v2536, 0.5
    %v2553 = vadd.f32 %v2537, 0.5
    %v2554 = vadd.f32 %v2538, 0.5
    %v2555 = vadd.f32 %v2539, 0.5
    %v2556 = vadd.f32 %v2540, 0.5
    %v2557 = vadd.f32 %v2541, 0.5
    %v2558 = vadd.f32 %v2542, 0.5
    %v2559 = vadd.f32 %v2543, 0.5
    %v2560 = vadd.f32 %v2544, 0.5
    %v2561 = vadd.f32 %v2545, 0.5
    %v2562 = vadd.f32 %v2546, 0.5
    %v2563 = vadd.f32 %v2547, 0.5
    %v2564 = vadd.f32 %v2548, 0.5
    %v2565 = vadd.f32 %v2549, 0.5
    %v2566 = vadd.f32 %v2550, 0.5
    %v2567 = vmul.f32 %v2551, %v2047
    %v2568 = vmul.f32 %v2552, %v2048
    %v2569 = vmul.f32 %v2553, %v2049
    %v2570 = vmul.f32 %v2554, %v2050
    %v2571 = vmul.f32 %v2555, %v2051
    %v2572 = vmul.f32 %v2556, %v2052
    %v2573 = vmul.f32 %v2557, %v2053
    %v2574 = vmul.f32 %v2558, %v2054
    %v2575 = vmul.f32 %v2559, %v2055
    %v2576 = vmul.f32 %v2560, %v2056
    %v2577 = vmul.f32 %v2561, %v2057
    %v2578 = vmul.f32 %v2562, %v2058
    %v2579 = vmul.f32 %v2563, %v2059
    %v2580 = vmul.f32 %v2564, %v2060
    %v2581 = vmul.f32 %v2565, %v2061
    %v2582 = vmul.f32 %v2566, %v2062
    %v2583 = vmul.f32 %v2439, 0.5
    %v2584 = vmul.f32 %v2443, 0.5
    %v2585 = vmul.f32 %v2447, 0.5
    %v2586 = vmul.f32 %v2451, 0.5
    %v2587 = vmul.f32 %v2455, 0.5
    %v2588 = vmul.f32 %v2459, 0.5
    %v2589 = vmul.f32 %v2463, 0.5
    %v2590 = vmul.f32 %v2467, 0.5
    %v2591 = vmul.f32 %v2471, 0.5
    %v2592 = vmul.f32 %v2475, 0.5
    %v2593 = vmul.f32 %v2479, 0.5
    %v2594 = vmul.f32 %v2483, 0.5
    %v2595 = vmul.f32 %v2487, 0.5
    %v2596 = vmul.f32 %v2491, 0.5
    %v2597 = vmul.f32 %v2495, 0.5
    %v2598 = vmul.f32 %v2499, 0.5
    %v2599 = vtanh.pop %v2583
    %v2600 = vtanh.pop %v2584
    %v2601 = vtanh.pop %v2585
    %v2602 = vtanh.pop %v2586
    %v2603 = vtanh.pop %v2587
    %v2604 = vtanh.pop %v2588
    %v2605 = vtanh.pop %v2589
    %v2606 = vtanh.pop %v2590
    %v2607 = vtanh.pop %v2591
    %v2608 = vtanh.pop %v2592
    %v2609 = vtanh.pop %v2593
    %v2610 = vtanh.pop %v2594
    %v2611 = vtanh.pop %v2595
    %v2612 = vtanh.pop %v2596
    %v2613 = vtanh.pop %v2597
    %v2614 = vtanh.pop %v2598
    %v2615 = vmul.f32 %v2599, 0.5
    %v2616 = vmul.f32 %v2600, 0.5
    %v2617 = vmul.f32 %v2601, 0.5
    %v2618 = vmul.f32 %v2602, 0.5
    %v2619 = vmul.f32 %v2603, 0.5
    %v2620 = vmul.f32 %v2604, 0.5
    %v2621 = vmul.f32 %v2605, 0.5
    %v2622 = vmul.f32 %v2606, 0.5
    %v2623 = vmul.f32 %v2607, 0.5
    %v2624 = vmul.f32 %v2608, 0.5
    %v2625 = vmul.f32 %v2609, 0.5
    %v2626 = vmul.f32 %v2610, 0.5
    %v2627 = vmul.f32 %v2611, 0.5
    %v2628 = vmul.f32 %v2612, 0.5
    %v2629 = vmul.f32 %v2613, 0.5
    %v2630 = vmul.f32 %v2614, 0.5
    %v2631 = vadd.f32 %v2615, 0.5
    %v2632 = vadd.f32 %v2616, 0.5
    %v2633 = vadd.f32 %v2617, 0.5
    %v2634 = vadd.f32 %v2618, 0.5
    %v2635 = vadd.f32 %v2619, 0.5
    %v2636 = vadd.f32 %v2620, 0.5
    %v2637 = vadd.f32 %v2621, 0.5
    %v2638 = vadd.f32 %v2622, 0.5
    %v2639 = vadd.f32 %v2623, 0.5
    %v2640 = vadd.f32 %v2624, 0.5
    %v2641 = vadd.f32 %v2625, 0.5
    %v2642 = vadd.f32 %v2626, 0.5
    %v2643 = vadd.f32 %v2627, 0.5
    %v2644 = vadd.f32 %v2628, 0.5
    %v2645 = vadd.f32 %v2629, 0.5
    %v2646 = vadd.f32 %v2630, 0.5
    %v2647 = vtanh.pop %v2441
    %v2648 = vtanh.pop %v2445
    %v2649 = vtanh.pop %v2449
    %v2650 = vtanh.pop %v2453
    %v2651 = vtanh.pop %v2457
    %v2652 = vtanh.pop %v2461
    %v2653 = vtanh.pop %v2465
    %v2654 = vtanh.pop %v2469
    %v2655 = vtanh.pop %v2473
    %v2656 = vtanh.pop %v2477
    %v2657 = vtanh.pop %v2481
    %v2658 = vtanh.pop %v2485
    %v2659 = vtanh.pop %v2489
    %v2660 = vtanh.pop %v2493
    %v2661 = vtanh.pop %v2497
    %v2662 = vtanh.pop %v2501
    %v2663 = vmul.f32 %v2631, %v2647
    %v2664 = vmul.f32 %v2632, %v2648
    %v2665 = vmul.f32 %v2633, %v2649
    %v2666 = vmul.f32 %v2634, %v2650
    %v2667 = vmul.f32 %v2635, %v2651
    %v2668 = vmul.f32 %v2636, %v2652
    %v2669 = vmul.f32 %v2637, %v2653
    %v2670 = vmul.f32 %v2638, %v2654
    %v2671 = vmul.f32 %v2639, %v2655
    %v2672 = vmul.f32 %v2640, %v2656
    %v2673 = vmul.f32 %v2641, %v2657
    %v2674 = vmul.f32 %v2642, %v2658
    %v2675 = vmul.f32 %v2643, %v2659
    %v2676 = vmul.f32 %v2644, %v2660
    %v2677 = vmul.f32 %v2645, %v2661
    %v2678 = vmul.f32 %v2646, %v2662
    %v2679 = vadd.f32 %v2567, %v2663
    %v2680 = vadd.f32 %v2568, %v2664
    %v2681 = vadd.f32 %v2569, %v2665
    %v2682 = vadd.f32 %v2570, %v2666
    %v2683 = vadd.f32 %v2571, %v2667
    %v2684 = vadd.f32 %v2572, %v2668
    %v2685 = vadd.f32 %v2573, %v2669
    %v2686 = vadd.f32 %v2574, %v2670
    %v2687 = vadd.f32 %v2575, %v2671
    %v2688 = vadd.f32 %v2576, %v2672
    %v2689 = vadd.f32 %v2577, %v2673
    %v2690 = vadd.f32 %v2578, %v2674
    %v2691 = vadd.f32 %v2579, %v2675
    %v2692 = vadd.f32 %v2580, %v2676
    %v2693 = vadd.f32 %v2581, %v2677
    %v2694 = vadd.f32 %v2582, %v2678
    %v2695 = vmul.f32 %v2442, 0.5
    %v2696 = vmul.f32 %v2446, 0.5
    %v2697 = vmul.f32 %v2450, 0.5
    %v2698 = vmul.f32 %v2454, 0.5
    %v2699 = vmul.f32 %v2458, 0.5
    %v2700 = vmul.f32 %v2462, 0.5
    %v2701 = vmul.f32 %v2466, 0.5
    %v2702 = vmul.f32 %v2470, 0.5
    %v2703 = vmul.f32 %v2474, 0.5
    %v2704 = vmul.f32 %v2478, 0.5
    %v2705 = vmul.f32 %v2482, 0.5
    %v2706 = vmul.f32 %v2486, 0.5
    %v2707 = vmul.f32 %v2490, 0.5
    %v2708 = vmul.f32 %v2494, 0.5
    %v2709 = vmul.f32 %v2498, 0.5
    %v2710 = vmul.f32 %v2502, 0.5
    %v2711 = vtanh.pop %v2695
    %v2712 = vtanh.pop %v2696
    %v2713 = vtanh.pop %v2697
    %v2714 = vtanh.pop %v2698
    %v2715 = vtanh.pop %v2699
    %v2716 = vtanh.pop %v2700
    %v2717 = vtanh.pop %v2701
    %v2718 = vtanh.pop %v2702
    %v2719 = vtanh.pop %v2703
    %v2720 = vtanh.pop %v2704
    %v2721 = vtanh.pop %v2705
    %v2722 = vtanh.pop %v2706
    %v2723 = vtanh.pop %v2707
    %v2724 = vtanh.pop %v2708
    %v2725 = vtanh.pop %v2709
    %v2726 = vtanh.pop %v2710
    %v2727 = vmul.f32 %v2711, 0.5
    %v2728 = vmul.f32 %v2712, 0.5
    %v2729 = vmul.f32 %v2713, 0.5
    %v2730 = vmul.f32 %v2714, 0.5
    %v2731 = vmul.f32 %v2715, 0.5
    %v2732 = vmul.f32 %v2716, 0.5
    %v2733 = vmul.f32 %v2717, 0.5
    %v2734 = vmul.f32 %v2718, 0.5
    %v2735 = vmul.f32 %v2719, 0.5
    %v2736 = vmul.f32 %v2720, 0.5
    %v2737 = vmul.f32 %v2721, 0.5
    %v2738 = vmul.f32 %v2722, 0.5
    %v2739 = vmul.f32 %v2723, 0.5
    %v2740 = vmul.f32 %v2724, 0.5
    %v2741 = vmul.f32 %v2725, 0.5
    %v2742 = vmul.f32 %v2726, 0.5
    %v2743 = vadd.f32 %v2727, 0.5
    %v2744 = vadd.f32 %v2728, 0.5
    %v2745 = vadd.f32 %v2729, 0.5
    %v2746 = vadd.f32 %v2730, 0.5
    %v2747 = vadd.f32 %v2731, 0.5
    %v2748 = vadd.f32 %v2732, 0.5
    %v2749 = vadd.f32 %v2733, 0.5
    %v2750 = vadd.f32 %v2734, 0.5
    %v2751 = vadd.f32 %v2735, 0.5
    %v2752 = vadd.f32 %v2736, 0.5
    %v2753 = vadd.f32 %v2737, 0.5
    %v2754 = vadd.f32 %v2738, 0.5
    %v2755 = vadd.f32 %v2739, 0.5
    %v2756 = vadd.f32 %v2740, 0.5
    %v2757 = vadd.f32 %v2741, 0.5
    %v2758 = vadd.f32 %v2742, 0.5
    %v2759 = vtanh.pop %v2679
    %v2760 = vtanh.pop %v2680
    %v2761 = vtanh.pop %v2681
    %v2762 = vtanh.pop %v2682
    %v2763 = vtanh.pop %v2683
    %v2764 = vtanh.pop %v2684
    %v2765 = vtanh.pop %v2685
    %v2766 = vtanh.pop %v2686
    %v2767 = vtanh.pop %v2687
    %v2768 = vtanh.pop %v2688
    %v2769 = vtanh.pop %v2689
    %v2770 = vtanh.pop %v2690
    %v2771 = vtanh.pop %v2691
    %v2772 = vtanh.pop %v2692
    %v2773 = vtanh.pop %v2693
    %v2774 = vtanh.pop %v2694
    %v2775 = vmul.f32 %v2743, %v2759
    %v2776 = vmul.f32 %v2744, %v2760
    %v2777 = vmul.f32 %v2745, %v2761
    %v2778 = vmul.f32 %v2746, %v2762
    %v2779 = vmul.f32 %v2747, %v2763
    %v2780 = vmul.f32 %v2748, %v2764
    %v2781 = vmul.f32 %v2749, %v2765
    %v2782 = vmul.f32 %v2750, %v2766
    %v2783 = vmul.f32 %v2751, %v2767
    %v2784 = vmul.f32 %v2752, %v2768
    %v2785 = vmul.f32 %v2753, %v2769
    %v2786 = vmul.f32 %v2754, %v2770
    %v2787 = vmul.f32 %v2755, %v2771
    %v2788 = vmul.f32 %v2756, %v2772
    %v2789 = vmul.f32 %v2757, %v2773
    %v2790 = vmul.f32 %v2758, %v2774
    %v2791 = vpack.c.bf16 %v2776, %v2775
    %v2792 = vpack.c.bf16 %v2778, %v2777
    %v2793 = vpack.c.bf16 %v2780, %v2779
    %v2794 = vpack.c.bf16 %v2782, %v2781
    %v2795 = vpack.c.bf16 %v2784, %v2783
    %v2796 = vpack.c.bf16 %v2786, %v2785
    %v2797 = vpack.c.bf16 %v2788, %v2787
    %v2798 = vpack.c.bf16 %v2790, %v2789
    %2799 = vmatprep.subr.bf16.mxu0 %v237
    %2800 = vmatpush1.bf16.msra.mxu0 %v236
    %2801 = vmatprep.subr.bf16.mxu0 %v233
    %2802 = vmatpush1.bf16.msra.mxu0 %v232
    %2803 = vmatprep.subr.bf16.mxu0 %v229
    %2804 = vmatpush1.bf16.msra.mxu0 %v228
    %2805 = vmatprep.subr.bf16.mxu0 %v225
    %2806 = vmatpush1.bf16.msra.mxu0 %v224
    %2807 = vmatprep.subr.bf16.mxu0 %v221
    %2808 = vmatpush1.bf16.msra.mxu0 %v220
    %2809 = vmatprep.subr.bf16.mxu0 %v217
    %2810 = vmatpush1.bf16.msra.mxu0 %v216
    %2811 = vmatprep.subr.bf16.mxu0 %v213
    %2812 = vmatpush1.bf16.msra.mxu0 %v212
    %2813 = vmatprep.subr.bf16.mxu0 %v209
    %2814 = vmatpush1.bf16.msra.mxu0 %v208
    %2815 = vmatprep.subr.bf16.mxu0 0
    %2816 = vmatpush2.bf16.msra.mxu0 0
    %2817 = vmatprep.subr.bf16.mxu0 0
    %2818 = vmatpush2.bf16.msra.mxu0 0
    %2819 = vmatprep.subr.bf16.mxu0 0
    %2820 = vmatpush2.bf16.msra.mxu0 0
    %2821 = vmatprep.subr.bf16.mxu0 0
    %2822 = vmatpush2.bf16.msra.mxu0 0
    %2823 = vmatprep.subr.bf16.mxu0 0
    %2824 = vmatpush2.bf16.msra.mxu0 0
    %2825 = vmatprep.subr.bf16.mxu0 0
    %2826 = vmatpush2.bf16.msra.mxu0 0
    %2827 = vmatprep.subr.bf16.mxu0 0
    %2828 = vmatpush2.bf16.msra.mxu0 0
    %2829 = vmatprep.subr.bf16.mxu0 0
    %2830 = vmatpush2.bf16.msra.mxu0 0
    %2831 = vmatprep.mubr.bf16.mxu0 0
    %2832 = vmatmul.mubr.bf16.gmra.mxu0 %v2791
    %v2833 = vpop.f32.mrf.mxu0
    %v2834 = vadd.f32 %v48, %v2833
    %v2835 = vpop.f32.mrf.mxu0
    %v2836 = vadd.f32 %v49, %v2835
    %v2837 = vpop.f32.mrf.mxu0
    %v2838 = vadd.f32 %v52, %v2837
    %v2839 = vpop.f32.mrf.mxu0
    %v2840 = vadd.f32 %v53, %v2839
    %2841 = vmatprep.mubr.bf16.mxu0 0
    %2842 = vmatmul.mubr.bf16.gmra.mxu0 %v2792
    %v2843 = vpop.f32.mrf.mxu0
    %v2844 = vadd.f32 %v56, %v2843
    %v2845 = vpop.f32.mrf.mxu0
    %v2846 = vadd.f32 %v57, %v2845
    %v2847 = vpop.f32.mrf.mxu0
    %v2848 = vadd.f32 %v60, %v2847
    %v2849 = vpop.f32.mrf.mxu0
    %v2850 = vadd.f32 %v61, %v2849
    %2851 = vmatprep.mubr.bf16.mxu0 0
    %2852 = vmatmul.mubr.bf16.gmra.mxu0 %v2793
    %v2853 = vpop.f32.mrf.mxu0
    %v2854 = vadd.f32 %v64, %v2853
    %v2855 = vpop.f32.mrf.mxu0
    %v2856 = vadd.f32 %v65, %v2855
    %v2857 = vpop.f32.mrf.mxu0
    %v2858 = vadd.f32 %v68, %v2857
    %v2859 = vpop.f32.mrf.mxu0
    %v2860 = vadd.f32 %v69, %v2859
    %2861 = vmatprep.mubr.bf16.mxu0 0
    %2862 = vmatmul.mubr.bf16.gmra.mxu0 %v2794
    %v2863 = vpop.f32.mrf.mxu0
    %v2864 = vadd.f32 %v72, %v2863
    %v2865 = vpop.f32.mrf.mxu0
    %v2866 = vadd.f32 %v73, %v2865
    %v2867 = vpop.f32.mrf.mxu0
    %v2868 = vadd.f32 %v76, %v2867
    %v2869 = vpop.f32.mrf.mxu0
    %v2870 = vadd.f32 %v77, %v2869
    %2871 = vmatprep.mubr.bf16.mxu0 0
    %2872 = vmatmul.mubr.bf16.gmra.mxu0 %v2795
    %v2873 = vpop.f32.mrf.mxu0
    %v2874 = vadd.f32 %v80, %v2873
    %v2875 = vpop.f32.mrf.mxu0
    %v2876 = vadd.f32 %v81, %v2875
    %v2877 = vpop.f32.mrf.mxu0
    %v2878 = vadd.f32 %v84, %v2877
    %v2879 = vpop.f32.mrf.mxu0
    %v2880 = vadd.f32 %v85, %v2879
    %2881 = vmatprep.mubr.bf16.mxu0 0
    %2882 = vmatmul.mubr.bf16.gmra.mxu0 %v2796
    %v2883 = vpop.f32.mrf.mxu0
    %v2884 = vadd.f32 %v88, %v2883
    %v2885 = vpop.f32.mrf.mxu0
    %v2886 = vadd.f32 %v89, %v2885
    %v2887 = vpop.f32.mrf.mxu0
    %v2888 = vadd.f32 %v92, %v2887
    %v2889 = vpop.f32.mrf.mxu0
    %v2890 = vadd.f32 %v93, %v2889
    %2891 = vmatprep.mubr.bf16.mxu0 0
    %2892 = vmatmul.mubr.bf16.gmra.mxu0 %v2797
    %v2893 = vpop.f32.mrf.mxu0
    %v2894 = vadd.f32 %v96, %v2893
    %v2895 = vpop.f32.mrf.mxu0
    %v2896 = vadd.f32 %v97, %v2895
    %v2897 = vpop.f32.mrf.mxu0
    %v2898 = vadd.f32 %v100, %v2897
    %v2899 = vpop.f32.mrf.mxu0
    %v2900 = vadd.f32 %v101, %v2899
    %2901 = vmatprep.mubr.bf16.mxu0 0
    %2902 = vmatmul.mubr.bf16.gmra.mxu0 %v2798
    %v2903 = vpop.f32.mrf.mxu0
    %v2904 = vadd.f32 %v104, %v2903
    %v2905 = vpop.f32.mrf.mxu0
    %v2906 = vadd.f32 %v105, %v2905
    %v2907 = vpop.f32.mrf.mxu0
    %v2908 = vadd.f32 %v108, %v2907
    %v2909 = vpop.f32.mrf.mxu0
    %v2910 = vadd.f32 %v109, %v2909
    %2911 = vdwg.mxu0
    %2912 = vmatprep.subr.bf16.mxu0 %v239
    %2913 = vmatpush1.bf16.msra.mxu0 %v238
    %2914 = vmatprep.subr.bf16.mxu0 %v235
    %2915 = vmatpush1.bf16.msra.mxu0 %v234
    %2916 = vmatprep.subr.bf16.mxu0 %v231
    %2917 = vmatpush1.bf16.msra.mxu0 %v230
    %2918 = vmatprep.subr.bf16.mxu0 %v227
    %2919 = vmatpush1.bf16.msra.mxu0 %v226
    %2920 = vmatprep.subr.bf16.mxu0 %v223
    %2921 = vmatpush1.bf16.msra.mxu0 %v222
    %2922 = vmatprep.subr.bf16.mxu0 %v219
    %2923 = vmatpush1.bf16.msra.mxu0 %v218
    %2924 = vmatprep.subr.bf16.mxu0 %v215
    %2925 = vmatpush1.bf16.msra.mxu0 %v214
    %2926 = vmatprep.subr.bf16.mxu0 %v211
    %2927 = vmatpush1.bf16.msra.mxu0 %v210
    %2928 = vmatprep.subr.bf16.mxu0 0
    %2929 = vmatpush2.bf16.msra.mxu0 0
    %2930 = vmatprep.subr.bf16.mxu0 0
    %2931 = vmatpush2.bf16.msra.mxu0 0
    %2932 = vmatprep.subr.bf16.mxu0 0
    %2933 = vmatpush2.bf16.msra.mxu0 0
    %2934 = vmatprep.subr.bf16.mxu0 0
    %2935 = vmatpush2.bf16.msra.mxu0 0
    %2936 = vmatprep.subr.bf16.mxu0 0
    %2937 = vmatpush2.bf16.msra.mxu0 0
    %2938 = vmatprep.subr.bf16.mxu0 0
    %2939 = vmatpush2.bf16.msra.mxu0 0
    %2940 = vmatprep.subr.bf16.mxu0 0
    %2941 = vmatpush2.bf16.msra.mxu0 0
    %2942 = vmatprep.subr.bf16.mxu0 0
    %2943 = vmatpush2.bf16.msra.mxu0 0
    %2944 = vmatprep.mubr.bf16.mxu0 0
    %2945 = vmatmul.mubr.bf16.gmra.mxu0 %v2791
    %v2946 = vpop.f32.mrf.mxu0
    %v2947 = vadd.f32 %v50, %v2946
    %v2948 = vpop.f32.mrf.mxu0
    %v2949 = vadd.f32 %v51, %v2948
    %v2950 = vpop.f32.mrf.mxu0
    %v2951 = vadd.f32 %v54, %v2950
    %v2952 = vpop.f32.mrf.mxu0
    %v2953 = vadd.f32 %v55, %v2952
    %2954 = vmatprep.mubr.bf16.mxu0 0
    %2955 = vmatmul.mubr.bf16.gmra.mxu0 %v2792
    %v2956 = vpop.f32.mrf.mxu0
    %v2957 = vadd.f32 %v58, %v2956
    %v2958 = vpop.f32.mrf.mxu0
    %v2959 = vadd.f32 %v59, %v2958
    %v2960 = vpop.f32.mrf.mxu0
    %v2961 = vadd.f32 %v62, %v2960
    %v2962 = vpop.f32.mrf.mxu0
    %v2963 = vadd.f32 %v63, %v2962
    %2964 = vmatprep.mubr.bf16.mxu0 0
    %2965 = vmatmul.mubr.bf16.gmra.mxu0 %v2793
    %v2966 = vpop.f32.mrf.mxu0
    %v2967 = vadd.f32 %v66, %v2966
    %v2968 = vpop.f32.mrf.mxu0
    %v2969 = vadd.f32 %v67, %v2968
    %v2970 = vpop.f32.mrf.mxu0
    %v2971 = vadd.f32 %v70, %v2970
    %v2972 = vpop.f32.mrf.mxu0
    %v2973 = vadd.f32 %v71, %v2972
    %2974 = vmatprep.mubr.bf16.mxu0 0
    %2975 = vmatmul.mubr.bf16.gmra.mxu0 %v2794
    %v2976 = vpop.f32.mrf.mxu0
    %v2977 = vadd.f32 %v74, %v2976
    %v2978 = vpop.f32.mrf.mxu0
    %v2979 = vadd.f32 %v75, %v2978
    %v2980 = vpop.f32.mrf.mxu0
    %v2981 = vadd.f32 %v78, %v2980
    %v2982 = vpop.f32.mrf.mxu0
    %v2983 = vadd.f32 %v79, %v2982
    %2984 = vmatprep.mubr.bf16.mxu0 0
    %2985 = vmatmul.mubr.bf16.gmra.mxu0 %v2795
    %v2986 = vpop.f32.mrf.mxu0
    %v2987 = vadd.f32 %v82, %v2986
    %v2988 = vpop.f32.mrf.mxu0
    %v2989 = vadd.f32 %v83, %v2988
    %v2990 = vpop.f32.mrf.mxu0
    %v2991 = vadd.f32 %v86, %v2990
    %v2992 = vpop.f32.mrf.mxu0
    %v2993 = vadd.f32 %v87, %v2992
    %2994 = vmatprep.mubr.bf16.mxu0 0
    %2995 = vmatmul.mubr.bf16.gmra.mxu0 %v2796
    %v2996 = vpop.f32.mrf.mxu0
    %v2997 = vadd.f32 %v90, %v2996
    %v2998 = vpop.f32.mrf.mxu0
    %v2999 = vadd.f32 %v91, %v2998
    %v3000 = vpop.f32.mrf.mxu0
    %v3001 = vadd.f32 %v94, %v3000
    %v3002 = vpop.f32.mrf.mxu0
    %v3003 = vadd.f32 %v95, %v3002
    %3004 = vmatprep.mubr.bf16.mxu0 0
    %3005 = vmatmul.mubr.bf16.gmra.mxu0 %v2797
    %v3006 = vpop.f32.mrf.mxu0
    %v3007 = vadd.f32 %v98, %v3006
    %v3008 = vpop.f32.mrf.mxu0
    %v3009 = vadd.f32 %v99, %v3008
    %v3010 = vpop.f32.mrf.mxu0
    %v3011 = vadd.f32 %v102, %v3010
    %v3012 = vpop.f32.mrf.mxu0
    %v3013 = vadd.f32 %v103, %v3012
    %3014 = vmatprep.mubr.bf16.mxu0 0
    %3015 = vmatmul.mubr.bf16.gmra.mxu0 %v2798
    %v3016 = vpop.f32.mrf.mxu0
    %v3017 = vadd.f32 %v106, %v3016
    %v3018 = vpop.f32.mrf.mxu0
    %v3019 = vadd.f32 %v107, %v3018
    %v3020 = vpop.f32.mrf.mxu0
    %v3021 = vadd.f32 %v110, %v3020
    %v3022 = vpop.f32.mrf.mxu0
    %v3023 = vadd.f32 %v111, %v3022
    %3024 = vdwg.mxu0
    %s3025 = scalar_lea.vmem %s0, 4
    %v3026 = vld [vmem:[%s3025] ss:$8 sm:$0xf]
    %v3028 = vlaneseq
    %v3029 = vshrl.u32 %v3028, 7
    %v3030 = vsub.s32 0, %v3029
    %v3031 = vrot.slane %v3026, %v3030
    %v3032 = vlaneseq
    %v3033 = vshrl.u32 %v3032, 7
    %v3034 = vsub.s32 1, %v3033
    %v3035 = vrot.slane %v3026, %v3034
    %v3036 = vlaneseq
    %v3037 = vshrl.u32 %v3036, 7
    %v3038 = vsub.s32 2, %v3037
    %v3039 = vrot.slane %v3026, %v3038
    %v3040 = vlaneseq
    %v3041 = vshrl.u32 %v3040, 7
    %v3042 = vsub.s32 3, %v3041
    %v3043 = vrot.slane %v3026, %v3042
    %s3048 = scalar_lea.vmem %s520, 4
    %v3049 = vld [vmem:[%s3048] ss:$8 sm:$0xf]
    %v3051 = vlaneseq
    %v3052 = vshrl.u32 %v3051, 7
    %v3053 = vsub.s32 0, %v3052
    %v3054 = vrot.slane %v3049, %v3053
    %v3055 = vlaneseq
    %v3056 = vshrl.u32 %v3055, 7
    %v3057 = vsub.s32 1, %v3056
    %v3058 = vrot.slane %v3049, %v3057
    %v3059 = vlaneseq
    %v3060 = vshrl.u32 %v3059, 7
    %v3061 = vsub.s32 2, %v3060
    %v3062 = vrot.slane %v3049, %v3061
    %v3063 = vlaneseq
    %v3064 = vshrl.u32 %v3063, 7
    %v3065 = vsub.s32 3, %v3064
    %v3066 = vrot.slane %v3049, %v3065
    %v3071 = vadd.f32 %v2834, %v3031
    %v3072 = vadd.f32 %v2836, %v3035
    %v3073 = vadd.f32 %v2947, %v3039
    %v3074 = vadd.f32 %v2949, %v3043
    %v3075 = vadd.f32 %v2838, %v3031
    %v3076 = vadd.f32 %v2840, %v3035
    %v3077 = vadd.f32 %v2951, %v3039
    %v3078 = vadd.f32 %v2953, %v3043
    %v3079 = vadd.f32 %v2844, %v3031
    %v3080 = vadd.f32 %v2846, %v3035
    %v3081 = vadd.f32 %v2957, %v3039
    %v3082 = vadd.f32 %v2959, %v3043
    %v3083 = vadd.f32 %v2848, %v3031
    %v3084 = vadd.f32 %v2850, %v3035
    %v3085 = vadd.f32 %v2961, %v3039
    %v3086 = vadd.f32 %v2963, %v3043
    %v3087 = vadd.f32 %v2854, %v3031
    %v3088 = vadd.f32 %v2856, %v3035
    %v3089 = vadd.f32 %v2967, %v3039
    %v3090 = vadd.f32 %v2969, %v3043
    %v3091 = vadd.f32 %v2858, %v3031
    %v3092 = vadd.f32 %v2860, %v3035
    %v3093 = vadd.f32 %v2971, %v3039
    %v3094 = vadd.f32 %v2973, %v3043
    %v3095 = vadd.f32 %v2864, %v3031
    %v3096 = vadd.f32 %v2866, %v3035
    %v3097 = vadd.f32 %v2977, %v3039
    %v3098 = vadd.f32 %v2979, %v3043
    %v3099 = vadd.f32 %v2868, %v3031
    %v3100 = vadd.f32 %v2870, %v3035
    %v3101 = vadd.f32 %v2981, %v3039
    %v3102 = vadd.f32 %v2983, %v3043
    %v3103 = vadd.f32 %v2874, %v3054
    %v3104 = vadd.f32 %v2876, %v3058
    %v3105 = vadd.f32 %v2987, %v3062
    %v3106 = vadd.f32 %v2989, %v3066
    %v3107 = vadd.f32 %v2878, %v3054
    %v3108 = vadd.f32 %v2880, %v3058
    %v3109 = vadd.f32 %v2991, %v3062
    %v3110 = vadd.f32 %v2993, %v3066
    %v3111 = vadd.f32 %v2884, %v3054
    %v3112 = vadd.f32 %v2886, %v3058
    %v3113 = vadd.f32 %v2997, %v3062
    %v3114 = vadd.f32 %v2999, %v3066
    %v3115 = vadd.f32 %v2888, %v3054
    %v3116 = vadd.f32 %v2890, %v3058
    %v3117 = vadd.f32 %v3001, %v3062
    %v3118 = vadd.f32 %v3003, %v3066
    %v3119 = vadd.f32 %v2894, %v3054
    %v3120 = vadd.f32 %v2896, %v3058
    %v3121 = vadd.f32 %v3007, %v3062
    %v3122 = vadd.f32 %v3009, %v3066
    %v3123 = vadd.f32 %v2898, %v3054
    %v3124 = vadd.f32 %v2900, %v3058
    %v3125 = vadd.f32 %v3011, %v3062
    %v3126 = vadd.f32 %v3013, %v3066
    %v3127 = vadd.f32 %v2904, %v3054
    %v3128 = vadd.f32 %v2906, %v3058
    %v3129 = vadd.f32 %v3017, %v3062
    %v3130 = vadd.f32 %v3019, %v3066
    %v3131 = vadd.f32 %v2908, %v3054
    %v3132 = vadd.f32 %v2910, %v3058
    %v3133 = vadd.f32 %v3021, %v3062
    %v3134 = vadd.f32 %v3023, %v3066
    %v3135 = vmul.f32 %v3072, 0.5
    %v3136 = vmul.f32 %v3076, 0.5
    %v3137 = vmul.f32 %v3080, 0.5
    %v3138 = vmul.f32 %v3084, 0.5
    %v3139 = vmul.f32 %v3088, 0.5
    %v3140 = vmul.f32 %v3092, 0.5
    %v3141 = vmul.f32 %v3096, 0.5
    %v3142 = vmul.f32 %v3100, 0.5
    %v3143 = vmul.f32 %v3104, 0.5
    %v3144 = vmul.f32 %v3108, 0.5
    %v3145 = vmul.f32 %v3112, 0.5
    %v3146 = vmul.f32 %v3116, 0.5
    %v3147 = vmul.f32 %v3120, 0.5
    %v3148 = vmul.f32 %v3124, 0.5
    %v3149 = vmul.f32 %v3128, 0.5
    %v3150 = vmul.f32 %v3132, 0.5
    %v3151 = vtanh.pop %v3135
    %v3152 = vtanh.pop %v3136
    %v3153 = vtanh.pop %v3137
    %v3154 = vtanh.pop %v3138
    %v3155 = vtanh.pop %v3139
    %v3156 = vtanh.pop %v3140
    %v3157 = vtanh.pop %v3141
    %v3158 = vtanh.pop %v3142
    %v3159 = vtanh.pop %v3143
    %v3160 = vtanh.pop %v3144
    %v3161 = vtanh.pop %v3145
    %v3162 = vtanh.pop %v3146
    %v3163 = vtanh.pop %v3147
    %v3164 = vtanh.pop %v3148
    %v3165 = vtanh.pop %v3149
    %v3166 = vtanh.pop %v3150
    %v3167 = vmul.f32 %v3151, 0.5
    %v3168 = vmul.f32 %v3152, 0.5
    %v3169 = vmul.f32 %v3153, 0.5
    %v3170 = vmul.f32 %v3154, 0.5
    %v3171 = vmul.f32 %v3155, 0.5
    %v3172 = vmul.f32 %v3156, 0.5
    %v3173 = vmul.f32 %v3157, 0.5
    %v3174 = vmul.f32 %v3158, 0.5
    %v3175 = vmul.f32 %v3159, 0.5
    %v3176 = vmul.f32 %v3160, 0.5
    %v3177 = vmul.f32 %v3161, 0.5
    %v3178 = vmul.f32 %v3162, 0.5
    %v3179 = vmul.f32 %v3163, 0.5
    %v3180 = vmul.f32 %v3164, 0.5
    %v3181 = vmul.f32 %v3165, 0.5
    %v3182 = vmul.f32 %v3166, 0.5
    %v3183 = vadd.f32 %v3167, 0.5
    %v3184 = vadd.f32 %v3168, 0.5
    %v3185 = vadd.f32 %v3169, 0.5
    %v3186 = vadd.f32 %v3170, 0.5
    %v3187 = vadd.f32 %v3171, 0.5
    %v3188 = vadd.f32 %v3172, 0.5
    %v3189 = vadd.f32 %v3173, 0.5
    %v3190 = vadd.f32 %v3174, 0.5
    %v3191 = vadd.f32 %v3175, 0.5
    %v3192 = vadd.f32 %v3176, 0.5
    %v3193 = vadd.f32 %v3177, 0.5
    %v3194 = vadd.f32 %v3178, 0.5
    %v3195 = vadd.f32 %v3179, 0.5
    %v3196 = vadd.f32 %v3180, 0.5
    %v3197 = vadd.f32 %v3181, 0.5
    %v3198 = vadd.f32 %v3182, 0.5
    %v3199 = vmul.f32 %v3183, %v2679
    %v3200 = vmul.f32 %v3184, %v2680
    %v3201 = vmul.f32 %v3185, %v2681
    %v3202 = vmul.f32 %v3186, %v2682
    %v3203 = vmul.f32 %v3187, %v2683
    %v3204 = vmul.f32 %v3188, %v2684
    %v3205 = vmul.f32 %v3189, %v2685
    %v3206 = vmul.f32 %v3190, %v2686
    %v3207 = vmul.f32 %v3191, %v2687
    %v3208 = vmul.f32 %v3192, %v2688
    %v3209 = vmul.f32 %v3193, %v2689
    %v3210 = vmul.f32 %v3194, %v2690
    %v3211 = vmul.f32 %v3195, %v2691
    %v3212 = vmul.f32 %v3196, %v2692
    %v3213 = vmul.f32 %v3197, %v2693
    %v3214 = vmul.f32 %v3198, %v2694
    %v3215 = vmul.f32 %v3071, 0.5
    %v3216 = vmul.f32 %v3075, 0.5
    %v3217 = vmul.f32 %v3079, 0.5
    %v3218 = vmul.f32 %v3083, 0.5
    %v3219 = vmul.f32 %v3087, 0.5
    %v3220 = vmul.f32 %v3091, 0.5
    %v3221 = vmul.f32 %v3095, 0.5
    %v3222 = vmul.f32 %v3099, 0.5
    %v3223 = vmul.f32 %v3103, 0.5
    %v3224 = vmul.f32 %v3107, 0.5
    %v3225 = vmul.f32 %v3111, 0.5
    %v3226 = vmul.f32 %v3115, 0.5
    %v3227 = vmul.f32 %v3119, 0.5
    %v3228 = vmul.f32 %v3123, 0.5
    %v3229 = vmul.f32 %v3127, 0.5
    %v3230 = vmul.f32 %v3131, 0.5
    %v3231 = vtanh.pop %v3215
    %v3232 = vtanh.pop %v3216
    %v3233 = vtanh.pop %v3217
    %v3234 = vtanh.pop %v3218
    %v3235 = vtanh.pop %v3219
    %v3236 = vtanh.pop %v3220
    %v3237 = vtanh.pop %v3221
    %v3238 = vtanh.pop %v3222
    %v3239 = vtanh.pop %v3223
    %v3240 = vtanh.pop %v3224
    %v3241 = vtanh.pop %v3225
    %v3242 = vtanh.pop %v3226
    %v3243 = vtanh.pop %v3227
    %v3244 = vtanh.pop %v3228
    %v3245 = vtanh.pop %v3229
    %v3246 = vtanh.pop %v3230
    %v3247 = vmul.f32 %v3231, 0.5
    %v3248 = vmul.f32 %v3232, 0.5
    %v3249 = vmul.f32 %v3233, 0.5
    %v3250 = vmul.f32 %v3234, 0.5
    %v3251 = vmul.f32 %v3235, 0.5
    %v3252 = vmul.f32 %v3236, 0.5
    %v3253 = vmul.f32 %v3237, 0.5
    %v3254 = vmul.f32 %v3238, 0.5
    %v3255 = vmul.f32 %v3239, 0.5
    %v3256 = vmul.f32 %v3240, 0.5
    %v3257 = vmul.f32 %v3241, 0.5
    %v3258 = vmul.f32 %v3242, 0.5
    %v3259 = vmul.f32 %v3243, 0.5
    %v3260 = vmul.f32 %v3244, 0.5
    %v3261 = vmul.f32 %v3245, 0.5
    %v3262 = vmul.f32 %v3246, 0.5
    %v3263 = vadd.f32 %v3247, 0.5
    %v3264 = vadd.f32 %v3248, 0.5
    %v3265 = vadd.f32 %v3249, 0.5
    %v3266 = vadd.f32 %v3250, 0.5
    %v3267 = vadd.f32 %v3251, 0.5
    %v3268 = vadd.f32 %v3252, 0.5
    %v3269 = vadd.f32 %v3253, 0.5
    %v3270 = vadd.f32 %v3254, 0.5
    %v3271 = vadd.f32 %v3255, 0.5
    %v3272 = vadd.f32 %v3256, 0.5
    %v3273 = vadd.f32 %v3257, 0.5
    %v3274 = vadd.f32 %v3258, 0.5
    %v3275 = vadd.f32 %v3259, 0.5
    %v3276 = vadd.f32 %v3260, 0.5
    %v3277 = vadd.f32 %v3261, 0.5
    %v3278 = vadd.f32 %v3262, 0.5
    %v3279 = vtanh.pop %v3073
    %v3280 = vtanh.pop %v3077
    %v3281 = vtanh.pop %v3081
    %v3282 = vtanh.pop %v3085
    %v3283 = vtanh.pop %v3089
    %v3284 = vtanh.pop %v3093
    %v3285 = vtanh.pop %v3097
    %v3286 = vtanh.pop %v3101
    %v3287 = vtanh.pop %v3105
    %v3288 = vtanh.pop %v3109
    %v3289 = vtanh.pop %v3113
    %v3290 = vtanh.pop %v3117
    %v3291 = vtanh.pop %v3121
    %v3292 = vtanh.pop %v3125
    %v3293 = vtanh.pop %v3129
    %v3294 = vtanh.pop %v3133
    %v3295 = vmul.f32 %v3263, %v3279
    %v3296 = vmul.f32 %v3264, %v3280
    %v3297 = vmul.f32 %v3265, %v3281
    %v3298 = vmul.f32 %v3266, %v3282
    %v3299 = vmul.f32 %v3267, %v3283
    %v3300 = vmul.f32 %v3268, %v3284
    %v3301 = vmul.f32 %v3269, %v3285
    %v3302 = vmul.f32 %v3270, %v3286
    %v3303 = vmul.f32 %v3271, %v3287
    %v3304 = vmul.f32 %v3272, %v3288
    %v3305 = vmul.f32 %v3273, %v3289
    %v3306 = vmul.f32 %v3274, %v3290
    %v3307 = vmul.f32 %v3275, %v3291
    %v3308 = vmul.f32 %v3276, %v3292
    %v3309 = vmul.f32 %v3277, %v3293
    %v3310 = vmul.f32 %v3278, %v3294
    %v3311 = vadd.f32 %v3199, %v3295
    %v3312 = vadd.f32 %v3200, %v3296
    %v3313 = vadd.f32 %v3201, %v3297
    %v3314 = vadd.f32 %v3202, %v3298
    %v3315 = vadd.f32 %v3203, %v3299
    %v3316 = vadd.f32 %v3204, %v3300
    %v3317 = vadd.f32 %v3205, %v3301
    %v3318 = vadd.f32 %v3206, %v3302
    %v3319 = vadd.f32 %v3207, %v3303
    %v3320 = vadd.f32 %v3208, %v3304
    %v3321 = vadd.f32 %v3209, %v3305
    %v3322 = vadd.f32 %v3210, %v3306
    %v3323 = vadd.f32 %v3211, %v3307
    %v3324 = vadd.f32 %v3212, %v3308
    %v3325 = vadd.f32 %v3213, %v3309
    %v3326 = vadd.f32 %v3214, %v3310
    %v3327 = vmul.f32 %v3074, 0.5
    %v3328 = vmul.f32 %v3078, 0.5
    %v3329 = vmul.f32 %v3082, 0.5
    %v3330 = vmul.f32 %v3086, 0.5
    %v3331 = vmul.f32 %v3090, 0.5
    %v3332 = vmul.f32 %v3094, 0.5
    %v3333 = vmul.f32 %v3098, 0.5
    %v3334 = vmul.f32 %v3102, 0.5
    %v3335 = vmul.f32 %v3106, 0.5
    %v3336 = vmul.f32 %v3110, 0.5
    %v3337 = vmul.f32 %v3114, 0.5
    %v3338 = vmul.f32 %v3118, 0.5
    %v3339 = vmul.f32 %v3122, 0.5
    %v3340 = vmul.f32 %v3126, 0.5
    %v3341 = vmul.f32 %v3130, 0.5
    %v3342 = vmul.f32 %v3134, 0.5
    %v3343 = vtanh.pop %v3327
    %v3344 = vtanh.pop %v3328
    %v3345 = vtanh.pop %v3329
    %v3346 = vtanh.pop %v3330
    %v3347 = vtanh.pop %v3331
    %v3348 = vtanh.pop %v3332
    %v3349 = vtanh.pop %v3333
    %v3350 = vtanh.pop %v3334
    %v3351 = vtanh.pop %v3335
    %v3352 = vtanh.pop %v3336
    %v3353 = vtanh.pop %v3337
    %v3354 = vtanh.pop %v3338
    %v3355 = vtanh.pop %v3339
    %v3356 = vtanh.pop %v3340
    %v3357 = vtanh.pop %v3341
    %v3358 = vtanh.pop %v3342
    %v3359 = vmul.f32 %v3343, 0.5
    %v3360 = vmul.f32 %v3344, 0.5
    %v3361 = vmul.f32 %v3345, 0.5
    %v3362 = vmul.f32 %v3346, 0.5
    %v3363 = vmul.f32 %v3347, 0.5
    %v3364 = vmul.f32 %v3348, 0.5
    %v3365 = vmul.f32 %v3349, 0.5
    %v3366 = vmul.f32 %v3350, 0.5
    %v3367 = vmul.f32 %v3351, 0.5
    %v3368 = vmul.f32 %v3352, 0.5
    %v3369 = vmul.f32 %v3353, 0.5
    %v3370 = vmul.f32 %v3354, 0.5
    %v3371 = vmul.f32 %v3355, 0.5
    %v3372 = vmul.f32 %v3356, 0.5
    %v3373 = vmul.f32 %v3357, 0.5
    %v3374 = vmul.f32 %v3358, 0.5
    %v3375 = vadd.f32 %v3359, 0.5
    %v3376 = vadd.f32 %v3360, 0.5
    %v3377 = vadd.f32 %v3361, 0.5
    %v3378 = vadd.f32 %v3362, 0.5
    %v3379 = vadd.f32 %v3363, 0.5
    %v3380 = vadd.f32 %v3364, 0.5
    %v3381 = vadd.f32 %v3365, 0.5
    %v3382 = vadd.f32 %v3366, 0.5
    %v3383 = vadd.f32 %v3367, 0.5
    %v3384 = vadd.f32 %v3368, 0.5
    %v3385 = vadd.f32 %v3369, 0.5
    %v3386 = vadd.f32 %v3370, 0.5
    %v3387 = vadd.f32 %v3371, 0.5
    %v3388 = vadd.f32 %v3372, 0.5
    %v3389 = vadd.f32 %v3373, 0.5
    %v3390 = vadd.f32 %v3374, 0.5
    %v3391 = vtanh.pop %v3311
    %v3392 = vtanh.pop %v3312
    %v3393 = vtanh.pop %v3313
    %v3394 = vtanh.pop %v3314
    %v3395 = vtanh.pop %v3315
    %v3396 = vtanh.pop %v3316
    %v3397 = vtanh.pop %v3317
    %v3398 = vtanh.pop %v3318
    %v3399 = vtanh.pop %v3319
    %v3400 = vtanh.pop %v3320
    %v3401 = vtanh.pop %v3321
    %v3402 = vtanh.pop %v3322
    %v3403 = vtanh.pop %v3323
    %v3404 = vtanh.pop %v3324
    %v3405 = vtanh.pop %v3325
    %v3406 = vtanh.pop %v3326
    %v3407 = vmul.f32 %v3375, %v3391
    %v3408 = vmul.f32 %v3376, %v3392
    %v3409 = vmul.f32 %v3377, %v3393
    %v3410 = vmul.f32 %v3378, %v3394
    %v3411 = vmul.f32 %v3379, %v3395
    %v3412 = vmul.f32 %v3380, %v3396
    %v3413 = vmul.f32 %v3381, %v3397
    %v3414 = vmul.f32 %v3382, %v3398
    %v3415 = vmul.f32 %v3383, %v3399
    %v3416 = vmul.f32 %v3384, %v3400
    %v3417 = vmul.f32 %v3385, %v3401
    %v3418 = vmul.f32 %v3386, %v3402
    %v3419 = vmul.f32 %v3387, %v3403
    %v3420 = vmul.f32 %v3388, %v3404
    %v3421 = vmul.f32 %v3389, %v3405
    %v3422 = vmul.f32 %v3390, %v3406
    %v3423 = vpack.c.bf16 %v3408, %v3407
    %v3424 = vpack.c.bf16 %v3410, %v3409
    %v3425 = vpack.c.bf16 %v3412, %v3411
    %v3426 = vpack.c.bf16 %v3414, %v3413
    %v3427 = vpack.c.bf16 %v3416, %v3415
    %v3428 = vpack.c.bf16 %v3418, %v3417
    %v3429 = vpack.c.bf16 %v3420, %v3419
    %v3430 = vpack.c.bf16 %v3422, %v3421
    %3431 = vmatprep.subr.bf16.mxu0 %v237
    %3432 = vmatpush1.bf16.msra.mxu0 %v236
    %3433 = vmatprep.subr.bf16.mxu0 %v233
    %3434 = vmatpush1.bf16.msra.mxu0 %v232
    %3435 = vmatprep.subr.bf16.mxu0 %v229
    %3436 = vmatpush1.bf16.msra.mxu0 %v228
    %3437 = vmatprep.subr.bf16.mxu0 %v225
    %3438 = vmatpush1.bf16.msra.mxu0 %v224
    %3439 = vmatprep.subr.bf16.mxu0 %v221
    %3440 = vmatpush1.bf16.msra.mxu0 %v220
    %3441 = vmatprep.subr.bf16.mxu0 %v217
    %3442 = vmatpush1.bf16.msra.mxu0 %v216
    %3443 = vmatprep.subr.bf16.mxu0 %v213
    %3444 = vmatpush1.bf16.msra.mxu0 %v212
    %3445 = vmatprep.subr.bf16.mxu0 %v209
    %3446 = vmatpush1.bf16.msra.mxu0 %v208
    %3447 = vmatprep.subr.bf16.mxu0 0
    %3448 = vmatpush2.bf16.msra.mxu0 0
    %3449 = vmatprep.subr.bf16.mxu0 0
    %3450 = vmatpush2.bf16.msra.mxu0 0
    %3451 = vmatprep.subr.bf16.mxu0 0
    %3452 = vmatpush2.bf16.msra.mxu0 0
    %3453 = vmatprep.subr.bf16.mxu0 0
    %3454 = vmatpush2.bf16.msra.mxu0 0
    %3455 = vmatprep.subr.bf16.mxu0 0
    %3456 = vmatpush2.bf16.msra.mxu0 0
    %3457 = vmatprep.subr.bf16.mxu0 0
    %3458 = vmatpush2.bf16.msra.mxu0 0
    %3459 = vmatprep.subr.bf16.mxu0 0
    %3460 = vmatpush2.bf16.msra.mxu0 0
    %3461 = vmatprep.subr.bf16.mxu0 0
    %3462 = vmatpush2.bf16.msra.mxu0 0
    %3463 = vmatprep.mubr.bf16.mxu0 0
    %3464 = vmatmul.mubr.bf16.gmra.mxu0 %v3423
    %v3465 = vpop.f32.mrf.mxu0
    %v3466 = vadd.f32 %v48, %v3465
    %v3467 = vpop.f32.mrf.mxu0
    %v3468 = vadd.f32 %v49, %v3467
    %v3469 = vpop.f32.mrf.mxu0
    %v3470 = vadd.f32 %v52, %v3469
    %v3471 = vpop.f32.mrf.mxu0
    %v3472 = vadd.f32 %v53, %v3471
    %3473 = vmatprep.mubr.bf16.mxu0 0
    %3474 = vmatmul.mubr.bf16.gmra.mxu0 %v3424
    %v3475 = vpop.f32.mrf.mxu0
    %v3476 = vadd.f32 %v56, %v3475
    %v3477 = vpop.f32.mrf.mxu0
    %v3478 = vadd.f32 %v57, %v3477
    %v3479 = vpop.f32.mrf.mxu0
    %v3480 = vadd.f32 %v60, %v3479
    %v3481 = vpop.f32.mrf.mxu0
    %v3482 = vadd.f32 %v61, %v3481
    %3483 = vmatprep.mubr.bf16.mxu0 0
    %3484 = vmatmul.mubr.bf16.gmra.mxu0 %v3425
    %v3485 = vpop.f32.mrf.mxu0
    %v3486 = vadd.f32 %v64, %v3485
    %v3487 = vpop.f32.mrf.mxu0
    %v3488 = vadd.f32 %v65, %v3487
    %v3489 = vpop.f32.mrf.mxu0
    %v3490 = vadd.f32 %v68, %v3489
    %v3491 = vpop.f32.mrf.mxu0
    %v3492 = vadd.f32 %v69, %v3491
    %3493 = vmatprep.mubr.bf16.mxu0 0
    %3494 = vmatmul.mubr.bf16.gmra.mxu0 %v3426
    %v3495 = vpop.f32.mrf.mxu0
    %v3496 = vadd.f32 %v72, %v3495
    %v3497 = vpop.f32.mrf.mxu0
    %v3498 = vadd.f32 %v73, %v3497
    %v3499 = vpop.f32.mrf.mxu0
    %v3500 = vadd.f32 %v76, %v3499
    %v3501 = vpop.f32.mrf.mxu0
    %v3502 = vadd.f32 %v77, %v3501
    %3503 = vmatprep.mubr.bf16.mxu0 0
    %3504 = vmatmul.mubr.bf16.gmra.mxu0 %v3427
    %v3505 = vpop.f32.mrf.mxu0
    %v3506 = vadd.f32 %v80, %v3505
    %v3507 = vpop.f32.mrf.mxu0
    %v3508 = vadd.f32 %v81, %v3507
    %v3509 = vpop.f32.mrf.mxu0
    %v3510 = vadd.f32 %v84, %v3509
    %v3511 = vpop.f32.mrf.mxu0
    %v3512 = vadd.f32 %v85, %v3511
    %3513 = vmatprep.mubr.bf16.mxu0 0
    %3514 = vmatmul.mubr.bf16.gmra.mxu0 %v3428
    %v3515 = vpop.f32.mrf.mxu0
    %v3516 = vadd.f32 %v88, %v3515
    %v3517 = vpop.f32.mrf.mxu0
    %v3518 = vadd.f32 %v89, %v3517
    %v3519 = vpop.f32.mrf.mxu0
    %v3520 = vadd.f32 %v92, %v3519
    %v3521 = vpop.f32.mrf.mxu0
    %v3522 = vadd.f32 %v93, %v3521
    %3523 = vmatprep.mubr.bf16.mxu0 0
    %3524 = vmatmul.mubr.bf16.gmra.mxu0 %v3429
    %v3525 = vpop.f32.mrf.mxu0
    %v3526 = vadd.f32 %v96, %v3525
    %v3527 = vpop.f32.mrf.mxu0
    %v3528 = vadd.f32 %v97, %v3527
    %v3529 = vpop.f32.mrf.mxu0
    %v3530 = vadd.f32 %v100, %v3529
    %v3531 = vpop.f32.mrf.mxu0
    %v3532 = vadd.f32 %v101, %v3531
    %3533 = vmatprep.mubr.bf16.mxu0 0
    %3534 = vmatmul.mubr.bf16.gmra.mxu0 %v3430
    %v3535 = vpop.f32.mrf.mxu0
    %v3536 = vadd.f32 %v104, %v3535
    %v3537 = vpop.f32.mrf.mxu0
    %v3538 = vadd.f32 %v105, %v3537
    %v3539 = vpop.f32.mrf.mxu0
    %v3540 = vadd.f32 %v108, %v3539
    %v3541 = vpop.f32.mrf.mxu0
    %v3542 = vadd.f32 %v109, %v3541
    %3543 = vdwg.mxu0
    %3544 = vmatprep.subr.bf16.mxu0 %v239
    %3545 = vmatpush1.bf16.msra.mxu0 %v238
    %3546 = vmatprep.subr.bf16.mxu0 %v235
    %3547 = vmatpush1.bf16.msra.mxu0 %v234
    %3548 = vmatprep.subr.bf16.mxu0 %v231
    %3549 = vmatpush1.bf16.msra.mxu0 %v230
    %3550 = vmatprep.subr.bf16.mxu0 %v227
    %3551 = vmatpush1.bf16.msra.mxu0 %v226
    %3552 = vmatprep.subr.bf16.mxu0 %v223
    %3553 = vmatpush1.bf16.msra.mxu0 %v222
    %3554 = vmatprep.subr.bf16.mxu0 %v219
    %3555 = vmatpush1.bf16.msra.mxu0 %v218
    %3556 = vmatprep.subr.bf16.mxu0 %v215
    %3557 = vmatpush1.bf16.msra.mxu0 %v214
    %3558 = vmatprep.subr.bf16.mxu0 %v211
    %3559 = vmatpush1.bf16.msra.mxu0 %v210
    %3560 = vmatprep.subr.bf16.mxu0 0
    %3561 = vmatpush2.bf16.msra.mxu0 0
    %3562 = vmatprep.subr.bf16.mxu0 0
    %3563 = vmatpush2.bf16.msra.mxu0 0
    %3564 = vmatprep.subr.bf16.mxu0 0
    %3565 = vmatpush2.bf16.msra.mxu0 0
    %3566 = vmatprep.subr.bf16.mxu0 0
    %3567 = vmatpush2.bf16.msra.mxu0 0
    %3568 = vmatprep.subr.bf16.mxu0 0
    %3569 = vmatpush2.bf16.msra.mxu0 0
    %3570 = vmatprep.subr.bf16.mxu0 0
    %3571 = vmatpush2.bf16.msra.mxu0 0
    %3572 = vmatprep.subr.bf16.mxu0 0
    %3573 = vmatpush2.bf16.msra.mxu0 0
    %3574 = vmatprep.subr.bf16.mxu0 0
    %3575 = vmatpush2.bf16.msra.mxu0 0
    %3576 = vmatprep.mubr.bf16.mxu0 0
    %3577 = vmatmul.mubr.bf16.gmra.mxu0 %v3423
    %v3578 = vpop.f32.mrf.mxu0
    %v3579 = vadd.f32 %v50, %v3578
    %v3580 = vpop.f32.mrf.mxu0
    %v3581 = vadd.f32 %v51, %v3580
    %v3582 = vpop.f32.mrf.mxu0
    %v3583 = vadd.f32 %v54, %v3582
    %v3584 = vpop.f32.mrf.mxu0
    %v3585 = vadd.f32 %v55, %v3584
    %3586 = vmatprep.mubr.bf16.mxu0 0
    %3587 = vmatmul.mubr.bf16.gmra.mxu0 %v3424
    %v3588 = vpop.f32.mrf.mxu0
    %v3589 = vadd.f32 %v58, %v3588
    %v3590 = vpop.f32.mrf.mxu0
    %v3591 = vadd.f32 %v59, %v3590
    %v3592 = vpop.f32.mrf.mxu0
    %v3593 = vadd.f32 %v62, %v3592
    %v3594 = vpop.f32.mrf.mxu0
    %v3595 = vadd.f32 %v63, %v3594
    %3596 = vmatprep.mubr.bf16.mxu0 0
    %3597 = vmatmul.mubr.bf16.gmra.mxu0 %v3425
    %v3598 = vpop.f32.mrf.mxu0
    %v3599 = vadd.f32 %v66, %v3598
    %v3600 = vpop.f32.mrf.mxu0
    %v3601 = vadd.f32 %v67, %v3600
    %v3602 = vpop.f32.mrf.mxu0
    %v3603 = vadd.f32 %v70, %v3602
    %v3604 = vpop.f32.mrf.mxu0
    %v3605 = vadd.f32 %v71, %v3604
    %3606 = vmatprep.mubr.bf16.mxu0 0
    %3607 = vmatmul.mubr.bf16.gmra.mxu0 %v3426
    %v3608 = vpop.f32.mrf.mxu0
    %v3609 = vadd.f32 %v74, %v3608
    %v3610 = vpop.f32.mrf.mxu0
    %v3611 = vadd.f32 %v75, %v3610
    %v3612 = vpop.f32.mrf.mxu0
    %v3613 = vadd.f32 %v78, %v3612
    %v3614 = vpop.f32.mrf.mxu0
    %v3615 = vadd.f32 %v79, %v3614
    %3616 = vmatprep.mubr.bf16.mxu0 0
    %3617 = vmatmul.mubr.bf16.gmra.mxu0 %v3427
    %v3618 = vpop.f32.mrf.mxu0
    %v3619 = vadd.f32 %v82, %v3618
    %v3620 = vpop.f32.mrf.mxu0
    %v3621 = vadd.f32 %v83, %v3620
    %v3622 = vpop.f32.mrf.mxu0
    %v3623 = vadd.f32 %v86, %v3622
    %v3624 = vpop.f32.mrf.mxu0
    %v3625 = vadd.f32 %v87, %v3624
    %3626 = vmatprep.mubr.bf16.mxu0 0
    %3627 = vmatmul.mubr.bf16.gmra.mxu0 %v3428
    %v3628 = vpop.f32.mrf.mxu0
    %v3629 = vadd.f32 %v90, %v3628
    %v3630 = vpop.f32.mrf.mxu0
    %v3631 = vadd.f32 %v91, %v3630
    %v3632 = vpop.f32.mrf.mxu0
    %v3633 = vadd.f32 %v94, %v3632
    %v3634 = vpop.f32.mrf.mxu0
    %v3635 = vadd.f32 %v95, %v3634
    %3636 = vmatprep.mubr.bf16.mxu0 0
    %3637 = vmatmul.mubr.bf16.gmra.mxu0 %v3429
    %v3638 = vpop.f32.mrf.mxu0
    %v3639 = vadd.f32 %v98, %v3638
    %v3640 = vpop.f32.mrf.mxu0
    %v3641 = vadd.f32 %v99, %v3640
    %v3642 = vpop.f32.mrf.mxu0
    %v3643 = vadd.f32 %v102, %v3642
    %v3644 = vpop.f32.mrf.mxu0
    %v3645 = vadd.f32 %v103, %v3644
    %3646 = vmatprep.mubr.bf16.mxu0 0
    %3647 = vmatmul.mubr.bf16.gmra.mxu0 %v3430
    %v3648 = vpop.f32.mrf.mxu0
    %v3649 = vadd.f32 %v106, %v3648
    %v3650 = vpop.f32.mrf.mxu0
    %v3651 = vadd.f32 %v107, %v3650
    %v3652 = vpop.f32.mrf.mxu0
    %v3653 = vadd.f32 %v110, %v3652
    %v3654 = vpop.f32.mrf.mxu0
    %v3655 = vadd.f32 %v111, %v3654
    %3656 = vdwg.mxu0
    %s3657 = scalar_lea.vmem %s0, 5
    %v3658 = vld [vmem:[%s3657] ss:$8 sm:$0xf]
    %v3660 = vlaneseq
    %v3661 = vshrl.u32 %v3660, 7
    %v3662 = vsub.s32 0, %v3661
    %v3663 = vrot.slane %v3658, %v3662
    %v3664 = vlaneseq
    %v3665 = vshrl.u32 %v3664, 7
    %v3666 = vsub.s32 1, %v3665
    %v3667 = vrot.slane %v3658, %v3666
    %v3668 = vlaneseq
    %v3669 = vshrl.u32 %v3668, 7
    %v3670 = vsub.s32 2, %v3669
    %v3671 = vrot.slane %v3658, %v3670
    %v3672 = vlaneseq
    %v3673 = vshrl.u32 %v3672, 7
    %v3674 = vsub.s32 3, %v3673
    %v3675 = vrot.slane %v3658, %v3674
    %s3680 = scalar_lea.vmem %s520, 5
    %v3681 = vld [vmem:[%s3680] ss:$8 sm:$0xf]
    %v3683 = vlaneseq
    %v3684 = vshrl.u32 %v3683, 7
    %v3685 = vsub.s32 0, %v3684
    %v3686 = vrot.slane %v3681, %v3685
    %v3687 = vlaneseq
    %v3688 = vshrl.u32 %v3687, 7
    %v3689 = vsub.s32 1, %v3688
    %v3690 = vrot.slane %v3681, %v3689
    %v3691 = vlaneseq
    %v3692 = vshrl.u32 %v3691, 7
    %v3693 = vsub.s32 2, %v3692
    %v3694 = vrot.slane %v3681, %v3693
    %v3695 = vlaneseq
    %v3696 = vshrl.u32 %v3695, 7
    %v3697 = vsub.s32 3, %v3696
    %v3698 = vrot.slane %v3681, %v3697
    %v3703 = vadd.f32 %v3466, %v3663
    %v3704 = vadd.f32 %v3468, %v3667
    %v3705 = vadd.f32 %v3579, %v3671
    %v3706 = vadd.f32 %v3581, %v3675
    %v3707 = vadd.f32 %v3470, %v3663
    %v3708 = vadd.f32 %v3472, %v3667
    %v3709 = vadd.f32 %v3583, %v3671
    %v3710 = vadd.f32 %v3585, %v3675
    %v3711 = vadd.f32 %v3476, %v3663
    %v3712 = vadd.f32 %v3478, %v3667
    %v3713 = vadd.f32 %v3589, %v3671
    %v3714 = vadd.f32 %v3591, %v3675
    %v3715 = vadd.f32 %v3480, %v3663
    %v3716 = vadd.f32 %v3482, %v3667
    %v3717 = vadd.f32 %v3593, %v3671
    %v3718 = vadd.f32 %v3595, %v3675
    %v3719 = vadd.f32 %v3486, %v3663
    %v3720 = vadd.f32 %v3488, %v3667
    %v3721 = vadd.f32 %v3599, %v3671
    %v3722 = vadd.f32 %v3601, %v3675
    %v3723 = vadd.f32 %v3490, %v3663
    %v3724 = vadd.f32 %v3492, %v3667
    %v3725 = vadd.f32 %v3603, %v3671
    %v3726 = vadd.f32 %v3605, %v3675
    %v3727 = vadd.f32 %v3496, %v3663
    %v3728 = vadd.f32 %v3498, %v3667
    %v3729 = vadd.f32 %v3609, %v3671
    %v3730 = vadd.f32 %v3611, %v3675
    %v3731 = vadd.f32 %v3500, %v3663
    %v3732 = vadd.f32 %v3502, %v3667
    %v3733 = vadd.f32 %v3613, %v3671
    %v3734 = vadd.f32 %v3615, %v3675
    %v3735 = vadd.f32 %v3506, %v3686
    %v3736 = vadd.f32 %v3508, %v3690
    %v3737 = vadd.f32 %v3619, %v3694
    %v3738 = vadd.f32 %v3621, %v3698
    %v3739 = vadd.f32 %v3510, %v3686
    %v3740 = vadd.f32 %v3512, %v3690
    %v3741 = vadd.f32 %v3623, %v3694
    %v3742 = vadd.f32 %v3625, %v3698
    %v3743 = vadd.f32 %v3516, %v3686
    %v3744 = vadd.f32 %v3518, %v3690
    %v3745 = vadd.f32 %v3629, %v3694
    %v3746 = vadd.f32 %v3631, %v3698
    %v3747 = vadd.f32 %v3520, %v3686
    %v3748 = vadd.f32 %v3522, %v3690
    %v3749 = vadd.f32 %v3633, %v3694
    %v3750 = vadd.f32 %v3635, %v3698
    %v3751 = vadd.f32 %v3526, %v3686
    %v3752 = vadd.f32 %v3528, %v3690
    %v3753 = vadd.f32 %v3639, %v3694
    %v3754 = vadd.f32 %v3641, %v3698
    %v3755 = vadd.f32 %v3530, %v3686
    %v3756 = vadd.f32 %v3532, %v3690
    %v3757 = vadd.f32 %v3643, %v3694
    %v3758 = vadd.f32 %v3645, %v3698
    %v3759 = vadd.f32 %v3536, %v3686
    %v3760 = vadd.f32 %v3538, %v3690
    %v3761 = vadd.f32 %v3649, %v3694
    %v3762 = vadd.f32 %v3651, %v3698
    %v3763 = vadd.f32 %v3540, %v3686
    %v3764 = vadd.f32 %v3542, %v3690
    %v3765 = vadd.f32 %v3653, %v3694
    %v3766 = vadd.f32 %v3655, %v3698
    %v3767 = vmul.f32 %v3704, 0.5
    %v3768 = vmul.f32 %v3708, 0.5
    %v3769 = vmul.f32 %v3712, 0.5
    %v3770 = vmul.f32 %v3716, 0.5
    %v3771 = vmul.f32 %v3720, 0.5
    %v3772 = vmul.f32 %v3724, 0.5
    %v3773 = vmul.f32 %v3728, 0.5
    %v3774 = vmul.f32 %v3732, 0.5
    %v3775 = vmul.f32 %v3736, 0.5
    %v3776 = vmul.f32 %v3740, 0.5
    %v3777 = vmul.f32 %v3744, 0.5
    %v3778 = vmul.f32 %v3748, 0.5
    %v3779 = vmul.f32 %v3752, 0.5
    %v3780 = vmul.f32 %v3756, 0.5
    %v3781 = vmul.f32 %v3760, 0.5
    %v3782 = vmul.f32 %v3764, 0.5
    %v3783 = vtanh.pop %v3767
    %v3784 = vtanh.pop %v3768
    %v3785 = vtanh.pop %v3769
    %v3786 = vtanh.pop %v3770
    %v3787 = vtanh.pop %v3771
    %v3788 = vtanh.pop %v3772
    %v3789 = vtanh.pop %v3773
    %v3790 = vtanh.pop %v3774
    %v3791 = vtanh.pop %v3775
    %v3792 = vtanh.pop %v3776
    %v3793 = vtanh.pop %v3777
    %v3794 = vtanh.pop %v3778
    %v3795 = vtanh.pop %v3779
    %v3796 = vtanh.pop %v3780
    %v3797 = vtanh.pop %v3781
    %v3798 = vtanh.pop %v3782
    %v3799 = vmul.f32 %v3783, 0.5
    %v3800 = vmul.f32 %v3784, 0.5
    %v3801 = vmul.f32 %v3785, 0.5
    %v3802 = vmul.f32 %v3786, 0.5
    %v3803 = vmul.f32 %v3787, 0.5
    %v3804 = vmul.f32 %v3788, 0.5
    %v3805 = vmul.f32 %v3789, 0.5
    %v3806 = vmul.f32 %v3790, 0.5
    %v3807 = vmul.f32 %v3791, 0.5
    %v3808 = vmul.f32 %v3792, 0.5
    %v3809 = vmul.f32 %v3793, 0.5
    %v3810 = vmul.f32 %v3794, 0.5
    %v3811 = vmul.f32 %v3795, 0.5
    %v3812 = vmul.f32 %v3796, 0.5
    %v3813 = vmul.f32 %v3797, 0.5
    %v3814 = vmul.f32 %v3798, 0.5
    %v3815 = vadd.f32 %v3799, 0.5
    %v3816 = vadd.f32 %v3800, 0.5
    %v3817 = vadd.f32 %v3801, 0.5
    %v3818 = vadd.f32 %v3802, 0.5
    %v3819 = vadd.f32 %v3803, 0.5
    %v3820 = vadd.f32 %v3804, 0.5
    %v3821 = vadd.f32 %v3805, 0.5
    %v3822 = vadd.f32 %v3806, 0.5
    %v3823 = vadd.f32 %v3807, 0.5
    %v3824 = vadd.f32 %v3808, 0.5
    %v3825 = vadd.f32 %v3809, 0.5
    %v3826 = vadd.f32 %v3810, 0.5
    %v3827 = vadd.f32 %v3811, 0.5
    %v3828 = vadd.f32 %v3812, 0.5
    %v3829 = vadd.f32 %v3813, 0.5
    %v3830 = vadd.f32 %v3814, 0.5
    %v3831 = vmul.f32 %v3815, %v3311
    %v3832 = vmul.f32 %v3816, %v3312
    %v3833 = vmul.f32 %v3817, %v3313
    %v3834 = vmul.f32 %v3818, %v3314
    %v3835 = vmul.f32 %v3819, %v3315
    %v3836 = vmul.f32 %v3820, %v3316
    %v3837 = vmul.f32 %v3821, %v3317
    %v3838 = vmul.f32 %v3822, %v3318
    %v3839 = vmul.f32 %v3823, %v3319
    %v3840 = vmul.f32 %v3824, %v3320
    %v3841 = vmul.f32 %v3825, %v3321
    %v3842 = vmul.f32 %v3826, %v3322
    %v3843 = vmul.f32 %v3827, %v3323
    %v3844 = vmul.f32 %v3828, %v3324
    %v3845 = vmul.f32 %v3829, %v3325
    %v3846 = vmul.f32 %v3830, %v3326
    %v3847 = vmul.f32 %v3703, 0.5
    %v3848 = vmul.f32 %v3707, 0.5
    %v3849 = vmul.f32 %v3711, 0.5
    %v3850 = vmul.f32 %v3715, 0.5
    %v3851 = vmul.f32 %v3719, 0.5
    %v3852 = vmul.f32 %v3723, 0.5
    %v3853 = vmul.f32 %v3727, 0.5
    %v3854 = vmul.f32 %v3731, 0.5
    %v3855 = vmul.f32 %v3735, 0.5
    %v3856 = vmul.f32 %v3739, 0.5
    %v3857 = vmul.f32 %v3743, 0.5
    %v3858 = vmul.f32 %v3747, 0.5
    %v3859 = vmul.f32 %v3751, 0.5
    %v3860 = vmul.f32 %v3755, 0.5
    %v3861 = vmul.f32 %v3759, 0.5
    %v3862 = vmul.f32 %v3763, 0.5
    %v3863 = vtanh.pop %v3847
    %v3864 = vtanh.pop %v3848
    %v3865 = vtanh.pop %v3849
    %v3866 = vtanh.pop %v3850
    %v3867 = vtanh.pop %v3851
    %v3868 = vtanh.pop %v3852
    %v3869 = vtanh.pop %v3853
    %v3870 = vtanh.pop %v3854
    %v3871 = vtanh.pop %v3855
    %v3872 = vtanh.pop %v3856
    %v3873 = vtanh.pop %v3857
    %v3874 = vtanh.pop %v3858
    %v3875 = vtanh.pop %v3859
    %v3876 = vtanh.pop %v3860
    %v3877 = vtanh.pop %v3861
    %v3878 = vtanh.pop %v3862
    %v3879 = vmul.f32 %v3863, 0.5
    %v3880 = vmul.f32 %v3864, 0.5
    %v3881 = vmul.f32 %v3865, 0.5
    %v3882 = vmul.f32 %v3866, 0.5
    %v3883 = vmul.f32 %v3867, 0.5
    %v3884 = vmul.f32 %v3868, 0.5
    %v3885 = vmul.f32 %v3869, 0.5
    %v3886 = vmul.f32 %v3870, 0.5
    %v3887 = vmul.f32 %v3871, 0.5
    %v3888 = vmul.f32 %v3872, 0.5
    %v3889 = vmul.f32 %v3873, 0.5
    %v3890 = vmul.f32 %v3874, 0.5
    %v3891 = vmul.f32 %v3875, 0.5
    %v3892 = vmul.f32 %v3876, 0.5
    %v3893 = vmul.f32 %v3877, 0.5
    %v3894 = vmul.f32 %v3878, 0.5
    %v3895 = vadd.f32 %v3879, 0.5
    %v3896 = vadd.f32 %v3880, 0.5
    %v3897 = vadd.f32 %v3881, 0.5
    %v3898 = vadd.f32 %v3882, 0.5
    %v3899 = vadd.f32 %v3883, 0.5
    %v3900 = vadd.f32 %v3884, 0.5
    %v3901 = vadd.f32 %v3885, 0.5
    %v3902 = vadd.f32 %v3886, 0.5
    %v3903 = vadd.f32 %v3887, 0.5
    %v3904 = vadd.f32 %v3888, 0.5
    %v3905 = vadd.f32 %v3889, 0.5
    %v3906 = vadd.f32 %v3890, 0.5
    %v3907 = vadd.f32 %v3891, 0.5
    %v3908 = vadd.f32 %v3892, 0.5
    %v3909 = vadd.f32 %v3893, 0.5
    %v3910 = vadd.f32 %v3894, 0.5
    %v3911 = vtanh.pop %v3705
    %v3912 = vtanh.pop %v3709
    %v3913 = vtanh.pop %v3713
    %v3914 = vtanh.pop %v3717
    %v3915 = vtanh.pop %v3721
    %v3916 = vtanh.pop %v3725
    %v3917 = vtanh.pop %v3729
    %v3918 = vtanh.pop %v3733
    %v3919 = vtanh.pop %v3737
    %v3920 = vtanh.pop %v3741
    %v3921 = vtanh.pop %v3745
    %v3922 = vtanh.pop %v3749
    %v3923 = vtanh.pop %v3753
    %v3924 = vtanh.pop %v3757
    %v3925 = vtanh.pop %v3761
    %v3926 = vtanh.pop %v3765
    %v3927 = vmul.f32 %v3895, %v3911
    %v3928 = vmul.f32 %v3896, %v3912
    %v3929 = vmul.f32 %v3897, %v3913
    %v3930 = vmul.f32 %v3898, %v3914
    %v3931 = vmul.f32 %v3899, %v3915
    %v3932 = vmul.f32 %v3900, %v3916
    %v3933 = vmul.f32 %v3901, %v3917
    %v3934 = vmul.f32 %v3902, %v3918
    %v3935 = vmul.f32 %v3903, %v3919
    %v3936 = vmul.f32 %v3904, %v3920
    %v3937 = vmul.f32 %v3905, %v3921
    %v3938 = vmul.f32 %v3906, %v3922
    %v3939 = vmul.f32 %v3907, %v3923
    %v3940 = vmul.f32 %v3908, %v3924
    %v3941 = vmul.f32 %v3909, %v3925
    %v3942 = vmul.f32 %v3910, %v3926
    %v3943 = vadd.f32 %v3831, %v3927
    %v3944 = vadd.f32 %v3832, %v3928
    %v3945 = vadd.f32 %v3833, %v3929
    %v3946 = vadd.f32 %v3834, %v3930
    %v3947 = vadd.f32 %v3835, %v3931
    %v3948 = vadd.f32 %v3836, %v3932
    %v3949 = vadd.f32 %v3837, %v3933
    %v3950 = vadd.f32 %v3838, %v3934
    %v3951 = vadd.f32 %v3839, %v3935
    %v3952 = vadd.f32 %v3840, %v3936
    %v3953 = vadd.f32 %v3841, %v3937
    %v3954 = vadd.f32 %v3842, %v3938
    %v3955 = vadd.f32 %v3843, %v3939
    %v3956 = vadd.f32 %v3844, %v3940
    %v3957 = vadd.f32 %v3845, %v3941
    %v3958 = vadd.f32 %v3846, %v3942
    %v3959 = vmul.f32 %v3706, 0.5
    %v3960 = vmul.f32 %v3710, 0.5
    %v3961 = vmul.f32 %v3714, 0.5
    %v3962 = vmul.f32 %v3718, 0.5
    %v3963 = vmul.f32 %v3722, 0.5
    %v3964 = vmul.f32 %v3726, 0.5
    %v3965 = vmul.f32 %v3730, 0.5
    %v3966 = vmul.f32 %v3734, 0.5
    %v3967 = vmul.f32 %v3738, 0.5
    %v3968 = vmul.f32 %v3742, 0.5
    %v3969 = vmul.f32 %v3746, 0.5
    %v3970 = vmul.f32 %v3750, 0.5
    %v3971 = vmul.f32 %v3754, 0.5
    %v3972 = vmul.f32 %v3758, 0.5
    %v3973 = vmul.f32 %v3762, 0.5
    %v3974 = vmul.f32 %v3766, 0.5
    %v3975 = vtanh.pop %v3959
    %v3976 = vtanh.pop %v3960
    %v3977 = vtanh.pop %v3961
    %v3978 = vtanh.pop %v3962
    %v3979 = vtanh.pop %v3963
    %v3980 = vtanh.pop %v3964
    %v3981 = vtanh.pop %v3965
    %v3982 = vtanh.pop %v3966
    %v3983 = vtanh.pop %v3967
    %v3984 = vtanh.pop %v3968
    %v3985 = vtanh.pop %v3969
    %v3986 = vtanh.pop %v3970
    %v3987 = vtanh.pop %v3971
    %v3988 = vtanh.pop %v3972
    %v3989 = vtanh.pop %v3973
    %v3990 = vtanh.pop %v3974
    %v3991 = vmul.f32 %v3975, 0.5
    %v3992 = vmul.f32 %v3976, 0.5
    %v3993 = vmul.f32 %v3977, 0.5
    %v3994 = vmul.f32 %v3978, 0.5
    %v3995 = vmul.f32 %v3979, 0.5
    %v3996 = vmul.f32 %v3980, 0.5
    %v3997 = vmul.f32 %v3981, 0.5
    %v3998 = vmul.f32 %v3982, 0.5
    %v3999 = vmul.f32 %v3983, 0.5
    %v4000 = vmul.f32 %v3984, 0.5
    %v4001 = vmul.f32 %v3985, 0.5
    %v4002 = vmul.f32 %v3986, 0.5
    %v4003 = vmul.f32 %v3987, 0.5
    %v4004 = vmul.f32 %v3988, 0.5
    %v4005 = vmul.f32 %v3989, 0.5
    %v4006 = vmul.f32 %v3990, 0.5
    %v4007 = vadd.f32 %v3991, 0.5
    %v4008 = vadd.f32 %v3992, 0.5
    %v4009 = vadd.f32 %v3993, 0.5
    %v4010 = vadd.f32 %v3994, 0.5
    %v4011 = vadd.f32 %v3995, 0.5
    %v4012 = vadd.f32 %v3996, 0.5
    %v4013 = vadd.f32 %v3997, 0.5
    %v4014 = vadd.f32 %v3998, 0.5
    %v4015 = vadd.f32 %v3999, 0.5
    %v4016 = vadd.f32 %v4000, 0.5
    %v4017 = vadd.f32 %v4001, 0.5
    %v4018 = vadd.f32 %v4002, 0.5
    %v4019 = vadd.f32 %v4003, 0.5
    %v4020 = vadd.f32 %v4004, 0.5
    %v4021 = vadd.f32 %v4005, 0.5
    %v4022 = vadd.f32 %v4006, 0.5
    %v4023 = vtanh.pop %v3943
    %v4024 = vtanh.pop %v3944
    %v4025 = vtanh.pop %v3945
    %v4026 = vtanh.pop %v3946
    %v4027 = vtanh.pop %v3947
    %v4028 = vtanh.pop %v3948
    %v4029 = vtanh.pop %v3949
    %v4030 = vtanh.pop %v3950
    %v4031 = vtanh.pop %v3951
    %v4032 = vtanh.pop %v3952
    %v4033 = vtanh.pop %v3953
    %v4034 = vtanh.pop %v3954
    %v4035 = vtanh.pop %v3955
    %v4036 = vtanh.pop %v3956
    %v4037 = vtanh.pop %v3957
    %v4038 = vtanh.pop %v3958
    %v4039 = vmul.f32 %v4007, %v4023
    %v4040 = vmul.f32 %v4008, %v4024
    %v4041 = vmul.f32 %v4009, %v4025
    %v4042 = vmul.f32 %v4010, %v4026
    %v4043 = vmul.f32 %v4011, %v4027
    %v4044 = vmul.f32 %v4012, %v4028
    %v4045 = vmul.f32 %v4013, %v4029
    %v4046 = vmul.f32 %v4014, %v4030
    %v4047 = vmul.f32 %v4015, %v4031
    %v4048 = vmul.f32 %v4016, %v4032
    %v4049 = vmul.f32 %v4017, %v4033
    %v4050 = vmul.f32 %v4018, %v4034
    %v4051 = vmul.f32 %v4019, %v4035
    %v4052 = vmul.f32 %v4020, %v4036
    %v4053 = vmul.f32 %v4021, %v4037
    %v4054 = vmul.f32 %v4022, %v4038
    %v4055 = vpack.c.bf16 %v4040, %v4039
    %v4056 = vpack.c.bf16 %v4042, %v4041
    %v4057 = vpack.c.bf16 %v4044, %v4043
    %v4058 = vpack.c.bf16 %v4046, %v4045
    %v4059 = vpack.c.bf16 %v4048, %v4047
    %v4060 = vpack.c.bf16 %v4050, %v4049
    %v4061 = vpack.c.bf16 %v4052, %v4051
    %v4062 = vpack.c.bf16 %v4054, %v4053
    %4063 = vmatprep.subr.bf16.mxu0 %v237
    %4064 = vmatpush1.bf16.msra.mxu0 %v236
    %4065 = vmatprep.subr.bf16.mxu0 %v233
    %4066 = vmatpush1.bf16.msra.mxu0 %v232
    %4067 = vmatprep.subr.bf16.mxu0 %v229
    %4068 = vmatpush1.bf16.msra.mxu0 %v228
    %4069 = vmatprep.subr.bf16.mxu0 %v225
    %4070 = vmatpush1.bf16.msra.mxu0 %v224
    %4071 = vmatprep.subr.bf16.mxu0 %v221
    %4072 = vmatpush1.bf16.msra.mxu0 %v220
    %4073 = vmatprep.subr.bf16.mxu0 %v217
    %4074 = vmatpush1.bf16.msra.mxu0 %v216
    %4075 = vmatprep.subr.bf16.mxu0 %v213
    %4076 = vmatpush1.bf16.msra.mxu0 %v212
    %4077 = vmatprep.subr.bf16.mxu0 %v209
    %4078 = vmatpush1.bf16.msra.mxu0 %v208
    %4079 = vmatprep.subr.bf16.mxu0 0
    %4080 = vmatpush2.bf16.msra.mxu0 0
    %4081 = vmatprep.subr.bf16.mxu0 0
    %4082 = vmatpush2.bf16.msra.mxu0 0
    %4083 = vmatprep.subr.bf16.mxu0 0
    %4084 = vmatpush2.bf16.msra.mxu0 0
    %4085 = vmatprep.subr.bf16.mxu0 0
    %4086 = vmatpush2.bf16.msra.mxu0 0
    %4087 = vmatprep.subr.bf16.mxu0 0
    %4088 = vmatpush2.bf16.msra.mxu0 0
    %4089 = vmatprep.subr.bf16.mxu0 0
    %4090 = vmatpush2.bf16.msra.mxu0 0
    %4091 = vmatprep.subr.bf16.mxu0 0
    %4092 = vmatpush2.bf16.msra.mxu0 0
    %4093 = vmatprep.subr.bf16.mxu0 0
    %4094 = vmatpush2.bf16.msra.mxu0 0
    %4095 = vmatprep.mubr.bf16.mxu0 0
    %4096 = vmatmul.mubr.bf16.gmra.mxu0 %v4055
    %v4097 = vpop.f32.mrf.mxu0
    %v4098 = vadd.f32 %v48, %v4097
    %v4099 = vpop.f32.mrf.mxu0
    %v4100 = vadd.f32 %v49, %v4099
    %v4101 = vpop.f32.mrf.mxu0
    %v4102 = vadd.f32 %v52, %v4101
    %v4103 = vpop.f32.mrf.mxu0
    %v4104 = vadd.f32 %v53, %v4103
    %4105 = vmatprep.mubr.bf16.mxu0 0
    %4106 = vmatmul.mubr.bf16.gmra.mxu0 %v4056
    %v4107 = vpop.f32.mrf.mxu0
    %v4108 = vadd.f32 %v56, %v4107
    %v4109 = vpop.f32.mrf.mxu0
    %v4110 = vadd.f32 %v57, %v4109
    %v4111 = vpop.f32.mrf.mxu0
    %v4112 = vadd.f32 %v60, %v4111
    %v4113 = vpop.f32.mrf.mxu0
    %v4114 = vadd.f32 %v61, %v4113
    %4115 = vmatprep.mubr.bf16.mxu0 0
    %4116 = vmatmul.mubr.bf16.gmra.mxu0 %v4057
    %v4117 = vpop.f32.mrf.mxu0
    %v4118 = vadd.f32 %v64, %v4117
    %v4119 = vpop.f32.mrf.mxu0
    %v4120 = vadd.f32 %v65, %v4119
    %v4121 = vpop.f32.mrf.mxu0
    %v4122 = vadd.f32 %v68, %v4121
    %v4123 = vpop.f32.mrf.mxu0
    %v4124 = vadd.f32 %v69, %v4123
    %4125 = vmatprep.mubr.bf16.mxu0 0
    %4126 = vmatmul.mubr.bf16.gmra.mxu0 %v4058
    %v4127 = vpop.f32.mrf.mxu0
    %v4128 = vadd.f32 %v72, %v4127
    %v4129 = vpop.f32.mrf.mxu0
    %v4130 = vadd.f32 %v73, %v4129
    %v4131 = vpop.f32.mrf.mxu0
    %v4132 = vadd.f32 %v76, %v4131
    %v4133 = vpop.f32.mrf.mxu0
    %v4134 = vadd.f32 %v77, %v4133
    %4135 = vmatprep.mubr.bf16.mxu0 0
    %4136 = vmatmul.mubr.bf16.gmra.mxu0 %v4059
    %v4137 = vpop.f32.mrf.mxu0
    %v4138 = vadd.f32 %v80, %v4137
    %v4139 = vpop.f32.mrf.mxu0
    %v4140 = vadd.f32 %v81, %v4139
    %v4141 = vpop.f32.mrf.mxu0
    %v4142 = vadd.f32 %v84, %v4141
    %v4143 = vpop.f32.mrf.mxu0
    %v4144 = vadd.f32 %v85, %v4143
    %4145 = vmatprep.mubr.bf16.mxu0 0
    %4146 = vmatmul.mubr.bf16.gmra.mxu0 %v4060
    %v4147 = vpop.f32.mrf.mxu0
    %v4148 = vadd.f32 %v88, %v4147
    %v4149 = vpop.f32.mrf.mxu0
    %v4150 = vadd.f32 %v89, %v4149
    %v4151 = vpop.f32.mrf.mxu0
    %v4152 = vadd.f32 %v92, %v4151
    %v4153 = vpop.f32.mrf.mxu0
    %v4154 = vadd.f32 %v93, %v4153
    %4155 = vmatprep.mubr.bf16.mxu0 0
    %4156 = vmatmul.mubr.bf16.gmra.mxu0 %v4061
    %v4157 = vpop.f32.mrf.mxu0
    %v4158 = vadd.f32 %v96, %v4157
    %v4159 = vpop.f32.mrf.mxu0
    %v4160 = vadd.f32 %v97, %v4159
    %v4161 = vpop.f32.mrf.mxu0
    %v4162 = vadd.f32 %v100, %v4161
    %v4163 = vpop.f32.mrf.mxu0
    %v4164 = vadd.f32 %v101, %v4163
    %4165 = vmatprep.mubr.bf16.mxu0 0
    %4166 = vmatmul.mubr.bf16.gmra.mxu0 %v4062
    %v4167 = vpop.f32.mrf.mxu0
    %v4168 = vadd.f32 %v104, %v4167
    %v4169 = vpop.f32.mrf.mxu0
    %v4170 = vadd.f32 %v105, %v4169
    %v4171 = vpop.f32.mrf.mxu0
    %v4172 = vadd.f32 %v108, %v4171
    %v4173 = vpop.f32.mrf.mxu0
    %v4174 = vadd.f32 %v109, %v4173
    %4175 = vdwg.mxu0
    %4176 = vmatprep.subr.bf16.mxu0 %v239
    %4177 = vmatpush1.bf16.msra.mxu0 %v238
    %4178 = vmatprep.subr.bf16.mxu0 %v235
    %4179 = vmatpush1.bf16.msra.mxu0 %v234
    %4180 = vmatprep.subr.bf16.mxu0 %v231
    %4181 = vmatpush1.bf16.msra.mxu0 %v230
    %4182 = vmatprep.subr.bf16.mxu0 %v227
    %4183 = vmatpush1.bf16.msra.mxu0 %v226
    %4184 = vmatprep.subr.bf16.mxu0 %v223
    %4185 = vmatpush1.bf16.msra.mxu0 %v222
    %4186 = vmatprep.subr.bf16.mxu0 %v219
    %4187 = vmatpush1.bf16.msra.mxu0 %v218
    %4188 = vmatprep.subr.bf16.mxu0 %v215
    %4189 = vmatpush1.bf16.msra.mxu0 %v214
    %4190 = vmatprep.subr.bf16.mxu0 %v211
    %4191 = vmatpush1.bf16.msra.mxu0 %v210
    %4192 = vmatprep.subr.bf16.mxu0 0
    %4193 = vmatpush2.bf16.msra.mxu0 0
    %4194 = vmatprep.subr.bf16.mxu0 0
    %4195 = vmatpush2.bf16.msra.mxu0 0
    %4196 = vmatprep.subr.bf16.mxu0 0
    %4197 = vmatpush2.bf16.msra.mxu0 0
    %4198 = vmatprep.subr.bf16.mxu0 0
    %4199 = vmatpush2.bf16.msra.mxu0 0
    %4200 = vmatprep.subr.bf16.mxu0 0
    %4201 = vmatpush2.bf16.msra.mxu0 0
    %4202 = vmatprep.subr.bf16.mxu0 0
    %4203 = vmatpush2.bf16.msra.mxu0 0
    %4204 = vmatprep.subr.bf16.mxu0 0
    %4205 = vmatpush2.bf16.msra.mxu0 0
    %4206 = vmatprep.subr.bf16.mxu0 0
    %4207 = vmatpush2.bf16.msra.mxu0 0
    %4208 = vmatprep.mubr.bf16.mxu0 0
    %4209 = vmatmul.mubr.bf16.gmra.mxu0 %v4055
    %v4210 = vpop.f32.mrf.mxu0
    %v4211 = vadd.f32 %v50, %v4210
    %v4212 = vpop.f32.mrf.mxu0
    %v4213 = vadd.f32 %v51, %v4212
    %v4214 = vpop.f32.mrf.mxu0
    %v4215 = vadd.f32 %v54, %v4214
    %v4216 = vpop.f32.mrf.mxu0
    %v4217 = vadd.f32 %v55, %v4216
    %4218 = vmatprep.mubr.bf16.mxu0 0
    %4219 = vmatmul.mubr.bf16.gmra.mxu0 %v4056
    %v4220 = vpop.f32.mrf.mxu0
    %v4221 = vadd.f32 %v58, %v4220
    %v4222 = vpop.f32.mrf.mxu0
    %v4223 = vadd.f32 %v59, %v4222
    %v4224 = vpop.f32.mrf.mxu0
    %v4225 = vadd.f32 %v62, %v4224
    %v4226 = vpop.f32.mrf.mxu0
    %v4227 = vadd.f32 %v63, %v4226
    %4228 = vmatprep.mubr.bf16.mxu0 0
    %4229 = vmatmul.mubr.bf16.gmra.mxu0 %v4057
    %v4230 = vpop.f32.mrf.mxu0
    %v4231 = vadd.f32 %v66, %v4230
    %v4232 = vpop.f32.mrf.mxu0
    %v4233 = vadd.f32 %v67, %v4232
    %v4234 = vpop.f32.mrf.mxu0
    %v4235 = vadd.f32 %v70, %v4234
    %v4236 = vpop.f32.mrf.mxu0
    %v4237 = vadd.f32 %v71, %v4236
    %4238 = vmatprep.mubr.bf16.mxu0 0
    %4239 = vmatmul.mubr.bf16.gmra.mxu0 %v4058
    %v4240 = vpop.f32.mrf.mxu0
    %v4241 = vadd.f32 %v74, %v4240
    %v4242 = vpop.f32.mrf.mxu0
    %v4243 = vadd.f32 %v75, %v4242
    %v4244 = vpop.f32.mrf.mxu0
    %v4245 = vadd.f32 %v78, %v4244
    %v4246 = vpop.f32.mrf.mxu0
    %v4247 = vadd.f32 %v79, %v4246
    %4248 = vmatprep.mubr.bf16.mxu0 0
    %4249 = vmatmul.mubr.bf16.gmra.mxu0 %v4059
    %v4250 = vpop.f32.mrf.mxu0
    %v4251 = vadd.f32 %v82, %v4250
    %v4252 = vpop.f32.mrf.mxu0
    %v4253 = vadd.f32 %v83, %v4252
    %v4254 = vpop.f32.mrf.mxu0
    %v4255 = vadd.f32 %v86, %v4254
    %v4256 = vpop.f32.mrf.mxu0
    %v4257 = vadd.f32 %v87, %v4256
    %4258 = vmatprep.mubr.bf16.mxu0 0
    %4259 = vmatmul.mubr.bf16.gmra.mxu0 %v4060
    %v4260 = vpop.f32.mrf.mxu0
    %v4261 = vadd.f32 %v90, %v4260
    %v4262 = vpop.f32.mrf.mxu0
    %v4263 = vadd.f32 %v91, %v4262
    %v4264 = vpop.f32.mrf.mxu0
    %v4265 = vadd.f32 %v94, %v4264
    %v4266 = vpop.f32.mrf.mxu0
    %v4267 = vadd.f32 %v95, %v4266
    %4268 = vmatprep.mubr.bf16.mxu0 0
    %4269 = vmatmul.mubr.bf16.gmra.mxu0 %v4061
    %v4270 = vpop.f32.mrf.mxu0
    %v4271 = vadd.f32 %v98, %v4270
    %v4272 = vpop.f32.mrf.mxu0
    %v4273 = vadd.f32 %v99, %v4272
    %v4274 = vpop.f32.mrf.mxu0
    %v4275 = vadd.f32 %v102, %v4274
    %v4276 = vpop.f32.mrf.mxu0
    %v4277 = vadd.f32 %v103, %v4276
    %4278 = vmatprep.mubr.bf16.mxu0 0
    %4279 = vmatmul.mubr.bf16.gmra.mxu0 %v4062
    %v4280 = vpop.f32.mrf.mxu0
    %v4281 = vadd.f32 %v106, %v4280
    %v4282 = vpop.f32.mrf.mxu0
    %v4283 = vadd.f32 %v107, %v4282
    %v4284 = vpop.f32.mrf.mxu0
    %v4285 = vadd.f32 %v110, %v4284
    %v4286 = vpop.f32.mrf.mxu0
    %v4287 = vadd.f32 %v111, %v4286
    %4288 = vdwg.mxu0
    %s4289 = scalar_lea.vmem %s0, 6
    %v4290 = vld [vmem:[%s4289] ss:$8 sm:$0xf]
    %v4292 = vlaneseq
    %v4293 = vshrl.u32 %v4292, 7
    %v4294 = vsub.s32 0, %v4293
    %v4295 = vrot.slane %v4290, %v4294
    %v4296 = vlaneseq
    %v4297 = vshrl.u32 %v4296, 7
    %v4298 = vsub.s32 1, %v4297
    %v4299 = vrot.slane %v4290, %v4298
    %v4300 = vlaneseq
    %v4301 = vshrl.u32 %v4300, 7
    %v4302 = vsub.s32 2, %v4301
    %v4303 = vrot.slane %v4290, %v4302
    %v4304 = vlaneseq
    %v4305 = vshrl.u32 %v4304, 7
    %v4306 = vsub.s32 3, %v4305
    %v4307 = vrot.slane %v4290, %v4306
    %s4312 = scalar_lea.vmem %s520, 6
    %v4313 = vld [vmem:[%s4312] ss:$8 sm:$0xf]
    %v4315 = vlaneseq
    %v4316 = vshrl.u32 %v4315, 7
    %v4317 = vsub.s32 0, %v4316
    %v4318 = vrot.slane %v4313, %v4317
    %v4319 = vlaneseq
    %v4320 = vshrl.u32 %v4319, 7
    %v4321 = vsub.s32 1, %v4320
    %v4322 = vrot.slane %v4313, %v4321
    %v4323 = vlaneseq
    %v4324 = vshrl.u32 %v4323, 7
    %v4325 = vsub.s32 2, %v4324
    %v4326 = vrot.slane %v4313, %v4325
    %v4327 = vlaneseq
    %v4328 = vshrl.u32 %v4327, 7
    %v4329 = vsub.s32 3, %v4328
    %v4330 = vrot.slane %v4313, %v4329
    %v4335 = vadd.f32 %v4098, %v4295
    %v4336 = vadd.f32 %v4100, %v4299
    %v4337 = vadd.f32 %v4211, %v4303
    %v4338 = vadd.f32 %v4213, %v4307
    %v4339 = vadd.f32 %v4102, %v4295
    %v4340 = vadd.f32 %v4104, %v4299
    %v4341 = vadd.f32 %v4215, %v4303
    %v4342 = vadd.f32 %v4217, %v4307
    %v4343 = vadd.f32 %v4108, %v4295
    %v4344 = vadd.f32 %v4110, %v4299
    %v4345 = vadd.f32 %v4221, %v4303
    %v4346 = vadd.f32 %v4223, %v4307
    %v4347 = vadd.f32 %v4112, %v4295
    %v4348 = vadd.f32 %v4114, %v4299
    %v4349 = vadd.f32 %v4225, %v4303
    %v4350 = vadd.f32 %v4227, %v4307
    %v4351 = vadd.f32 %v4118, %v4295
    %v4352 = vadd.f32 %v4120, %v4299
    %v4353 = vadd.f32 %v4231, %v4303
    %v4354 = vadd.f32 %v4233, %v4307
    %v4355 = vadd.f32 %v4122, %v4295
    %v4356 = vadd.f32 %v4124, %v4299
    %v4357 = vadd.f32 %v4235, %v4303
    %v4358 = vadd.f32 %v4237, %v4307
    %v4359 = vadd.f32 %v4128, %v4295
    %v4360 = vadd.f32 %v4130, %v4299
    %v4361 = vadd.f32 %v4241, %v4303
    %v4362 = vadd.f32 %v4243, %v4307
    %v4363 = vadd.f32 %v4132, %v4295
    %v4364 = vadd.f32 %v4134, %v4299
    %v4365 = vadd.f32 %v4245, %v4303
    %v4366 = vadd.f32 %v4247, %v4307
    %v4367 = vadd.f32 %v4138, %v4318
    %v4368 = vadd.f32 %v4140, %v4322
    %v4369 = vadd.f32 %v4251, %v4326
    %v4370 = vadd.f32 %v4253, %v4330
    %v4371 = vadd.f32 %v4142, %v4318
    %v4372 = vadd.f32 %v4144, %v4322
    %v4373 = vadd.f32 %v4255, %v4326
    %v4374 = vadd.f32 %v4257, %v4330
    %v4375 = vadd.f32 %v4148, %v4318
    %v4376 = vadd.f32 %v4150, %v4322
    %v4377 = vadd.f32 %v4261, %v4326
    %v4378 = vadd.f32 %v4263, %v4330
    %v4379 = vadd.f32 %v4152, %v4318
    %v4380 = vadd.f32 %v4154, %v4322
    %v4381 = vadd.f32 %v4265, %v4326
    %v4382 = vadd.f32 %v4267, %v4330
    %v4383 = vadd.f32 %v4158, %v4318
    %v4384 = vadd.f32 %v4160, %v4322
    %v4385 = vadd.f32 %v4271, %v4326
    %v4386 = vadd.f32 %v4273, %v4330
    %v4387 = vadd.f32 %v4162, %v4318
    %v4388 = vadd.f32 %v4164, %v4322
    %v4389 = vadd.f32 %v4275, %v4326
    %v4390 = vadd.f32 %v4277, %v4330
    %v4391 = vadd.f32 %v4168, %v4318
    %v4392 = vadd.f32 %v4170, %v4322
    %v4393 = vadd.f32 %v4281, %v4326
    %v4394 = vadd.f32 %v4283, %v4330
    %v4395 = vadd.f32 %v4172, %v4318
    %v4396 = vadd.f32 %v4174, %v4322
    %v4397 = vadd.f32 %v4285, %v4326
    %v4398 = vadd.f32 %v4287, %v4330
    %v4399 = vmul.f32 %v4336, 0.5
    %v4400 = vmul.f32 %v4340, 0.5
    %v4401 = vmul.f32 %v4344, 0.5
    %v4402 = vmul.f32 %v4348, 0.5
    %v4403 = vmul.f32 %v4352, 0.5
    %v4404 = vmul.f32 %v4356, 0.5
    %v4405 = vmul.f32 %v4360, 0.5
    %v4406 = vmul.f32 %v4364, 0.5
    %v4407 = vmul.f32 %v4368, 0.5
    %v4408 = vmul.f32 %v4372, 0.5
    %v4409 = vmul.f32 %v4376, 0.5
    %v4410 = vmul.f32 %v4380, 0.5
    %v4411 = vmul.f32 %v4384, 0.5
    %v4412 = vmul.f32 %v4388, 0.5
    %v4413 = vmul.f32 %v4392, 0.5
    %v4414 = vmul.f32 %v4396, 0.5
    %v4415 = vtanh.pop %v4399
    %v4416 = vtanh.pop %v4400
    %v4417 = vtanh.pop %v4401
    %v4418 = vtanh.pop %v4402
    %v4419 = vtanh.pop %v4403
    %v4420 = vtanh.pop %v4404
    %v4421 = vtanh.pop %v4405
    %v4422 = vtanh.pop %v4406
    %v4423 = vtanh.pop %v4407
    %v4424 = vtanh.pop %v4408
    %v4425 = vtanh.pop %v4409
    %v4426 = vtanh.pop %v4410
    %v4427 = vtanh.pop %v4411
    %v4428 = vtanh.pop %v4412
    %v4429 = vtanh.pop %v4413
    %v4430 = vtanh.pop %v4414
    %v4431 = vmul.f32 %v4415, 0.5
    %v4432 = vmul.f32 %v4416, 0.5
    %v4433 = vmul.f32 %v4417, 0.5
    %v4434 = vmul.f32 %v4418, 0.5
    %v4435 = vmul.f32 %v4419, 0.5
    %v4436 = vmul.f32 %v4420, 0.5
    %v4437 = vmul.f32 %v4421, 0.5
    %v4438 = vmul.f32 %v4422, 0.5
    %v4439 = vmul.f32 %v4423, 0.5
    %v4440 = vmul.f32 %v4424, 0.5
    %v4441 = vmul.f32 %v4425, 0.5
    %v4442 = vmul.f32 %v4426, 0.5
    %v4443 = vmul.f32 %v4427, 0.5
    %v4444 = vmul.f32 %v4428, 0.5
    %v4445 = vmul.f32 %v4429, 0.5
    %v4446 = vmul.f32 %v4430, 0.5
    %v4447 = vadd.f32 %v4431, 0.5
    %v4448 = vadd.f32 %v4432, 0.5
    %v4449 = vadd.f32 %v4433, 0.5
    %v4450 = vadd.f32 %v4434, 0.5
    %v4451 = vadd.f32 %v4435, 0.5
    %v4452 = vadd.f32 %v4436, 0.5
    %v4453 = vadd.f32 %v4437, 0.5
    %v4454 = vadd.f32 %v4438, 0.5
    %v4455 = vadd.f32 %v4439, 0.5
    %v4456 = vadd.f32 %v4440, 0.5
    %v4457 = vadd.f32 %v4441, 0.5
    %v4458 = vadd.f32 %v4442, 0.5
    %v4459 = vadd.f32 %v4443, 0.5
    %v4460 = vadd.f32 %v4444, 0.5
    %v4461 = vadd.f32 %v4445, 0.5
    %v4462 = vadd.f32 %v4446, 0.5
    %v4463 = vmul.f32 %v4447, %v3943
    %v4464 = vmul.f32 %v4448, %v3944
    %v4465 = vmul.f32 %v4449, %v3945
    %v4466 = vmul.f32 %v4450, %v3946
    %v4467 = vmul.f32 %v4451, %v3947
    %v4468 = vmul.f32 %v4452, %v3948
    %v4469 = vmul.f32 %v4453, %v3949
    %v4470 = vmul.f32 %v4454, %v3950
    %v4471 = vmul.f32 %v4455, %v3951
    %v4472 = vmul.f32 %v4456, %v3952
    %v4473 = vmul.f32 %v4457, %v3953
    %v4474 = vmul.f32 %v4458, %v3954
    %v4475 = vmul.f32 %v4459, %v3955
    %v4476 = vmul.f32 %v4460, %v3956
    %v4477 = vmul.f32 %v4461, %v3957
    %v4478 = vmul.f32 %v4462, %v3958
    %v4479 = vmul.f32 %v4335, 0.5
    %v4480 = vmul.f32 %v4339, 0.5
    %v4481 = vmul.f32 %v4343, 0.5
    %v4482 = vmul.f32 %v4347, 0.5
    %v4483 = vmul.f32 %v4351, 0.5
    %v4484 = vmul.f32 %v4355, 0.5
    %v4485 = vmul.f32 %v4359, 0.5
    %v4486 = vmul.f32 %v4363, 0.5
    %v4487 = vmul.f32 %v4367, 0.5
    %v4488 = vmul.f32 %v4371, 0.5
    %v4489 = vmul.f32 %v4375, 0.5
    %v4490 = vmul.f32 %v4379, 0.5
    %v4491 = vmul.f32 %v4383, 0.5
    %v4492 = vmul.f32 %v4387, 0.5
    %v4493 = vmul.f32 %v4391, 0.5
    %v4494 = vmul.f32 %v4395, 0.5
    %v4495 = vtanh.pop %v4479
    %v4496 = vtanh.pop %v4480
    %v4497 = vtanh.pop %v4481
    %v4498 = vtanh.pop %v4482
    %v4499 = vtanh.pop %v4483
    %v4500 = vtanh.pop %v4484
    %v4501 = vtanh.pop %v4485
    %v4502 = vtanh.pop %v4486
    %v4503 = vtanh.pop %v4487
    %v4504 = vtanh.pop %v4488
    %v4505 = vtanh.pop %v4489
    %v4506 = vtanh.pop %v4490
    %v4507 = vtanh.pop %v4491
    %v4508 = vtanh.pop %v4492
    %v4509 = vtanh.pop %v4493
    %v4510 = vtanh.pop %v4494
    %v4511 = vmul.f32 %v4495, 0.5
    %v4512 = vmul.f32 %v4496, 0.5
    %v4513 = vmul.f32 %v4497, 0.5
    %v4514 = vmul.f32 %v4498, 0.5
    %v4515 = vmul.f32 %v4499, 0.5
    %v4516 = vmul.f32 %v4500, 0.5
    %v4517 = vmul.f32 %v4501, 0.5
    %v4518 = vmul.f32 %v4502, 0.5
    %v4519 = vmul.f32 %v4503, 0.5
    %v4520 = vmul.f32 %v4504, 0.5
    %v4521 = vmul.f32 %v4505, 0.5
    %v4522 = vmul.f32 %v4506, 0.5
    %v4523 = vmul.f32 %v4507, 0.5
    %v4524 = vmul.f32 %v4508, 0.5
    %v4525 = vmul.f32 %v4509, 0.5
    %v4526 = vmul.f32 %v4510, 0.5
    %v4527 = vadd.f32 %v4511, 0.5
    %v4528 = vadd.f32 %v4512, 0.5
    %v4529 = vadd.f32 %v4513, 0.5
    %v4530 = vadd.f32 %v4514, 0.5
    %v4531 = vadd.f32 %v4515, 0.5
    %v4532 = vadd.f32 %v4516, 0.5
    %v4533 = vadd.f32 %v4517, 0.5
    %v4534 = vadd.f32 %v4518, 0.5
    %v4535 = vadd.f32 %v4519, 0.5
    %v4536 = vadd.f32 %v4520, 0.5
    %v4537 = vadd.f32 %v4521, 0.5
    %v4538 = vadd.f32 %v4522, 0.5
    %v4539 = vadd.f32 %v4523, 0.5
    %v4540 = vadd.f32 %v4524, 0.5
    %v4541 = vadd.f32 %v4525, 0.5
    %v4542 = vadd.f32 %v4526, 0.5
    %v4543 = vtanh.pop %v4337
    %v4544 = vtanh.pop %v4341
    %v4545 = vtanh.pop %v4345
    %v4546 = vtanh.pop %v4349
    %v4547 = vtanh.pop %v4353
    %v4548 = vtanh.pop %v4357
    %v4549 = vtanh.pop %v4361
    %v4550 = vtanh.pop %v4365
    %v4551 = vtanh.pop %v4369
    %v4552 = vtanh.pop %v4373
    %v4553 = vtanh.pop %v4377
    %v4554 = vtanh.pop %v4381
    %v4555 = vtanh.pop %v4385
    %v4556 = vtanh.pop %v4389
    %v4557 = vtanh.pop %v4393
    %v4558 = vtanh.pop %v4397
    %v4559 = vmul.f32 %v4527, %v4543
    %v4560 = vmul.f32 %v4528, %v4544
    %v4561 = vmul.f32 %v4529, %v4545
    %v4562 = vmul.f32 %v4530, %v4546
    %v4563 = vmul.f32 %v4531, %v4547
    %v4564 = vmul.f32 %v4532, %v4548
    %v4565 = vmul.f32 %v4533, %v4549
    %v4566 = vmul.f32 %v4534, %v4550
    %v4567 = vmul.f32 %v4535, %v4551
    %v4568 = vmul.f32 %v4536, %v4552
    %v4569 = vmul.f32 %v4537, %v4553
    %v4570 = vmul.f32 %v4538, %v4554
    %v4571 = vmul.f32 %v4539, %v4555
    %v4572 = vmul.f32 %v4540, %v4556
    %v4573 = vmul.f32 %v4541, %v4557
    %v4574 = vmul.f32 %v4542, %v4558
    %v4575 = vadd.f32 %v4463, %v4559
    %v4576 = vadd.f32 %v4464, %v4560
    %v4577 = vadd.f32 %v4465, %v4561
    %v4578 = vadd.f32 %v4466, %v4562
    %v4579 = vadd.f32 %v4467, %v4563
    %v4580 = vadd.f32 %v4468, %v4564
    %v4581 = vadd.f32 %v4469, %v4565
    %v4582 = vadd.f32 %v4470, %v4566
    %v4583 = vadd.f32 %v4471, %v4567
    %v4584 = vadd.f32 %v4472, %v4568
    %v4585 = vadd.f32 %v4473, %v4569
    %v4586 = vadd.f32 %v4474, %v4570
    %v4587 = vadd.f32 %v4475, %v4571
    %v4588 = vadd.f32 %v4476, %v4572
    %v4589 = vadd.f32 %v4477, %v4573
    %v4590 = vadd.f32 %v4478, %v4574
    %v4591 = vmul.f32 %v4338, 0.5
    %v4592 = vmul.f32 %v4342, 0.5
    %v4593 = vmul.f32 %v4346, 0.5
    %v4594 = vmul.f32 %v4350, 0.5
    %v4595 = vmul.f32 %v4354, 0.5
    %v4596 = vmul.f32 %v4358, 0.5
    %v4597 = vmul.f32 %v4362, 0.5
    %v4598 = vmul.f32 %v4366, 0.5
    %v4599 = vmul.f32 %v4370, 0.5
    %v4600 = vmul.f32 %v4374, 0.5
    %v4601 = vmul.f32 %v4378, 0.5
    %v4602 = vmul.f32 %v4382, 0.5
    %v4603 = vmul.f32 %v4386, 0.5
    %v4604 = vmul.f32 %v4390, 0.5
    %v4605 = vmul.f32 %v4394, 0.5
    %v4606 = vmul.f32 %v4398, 0.5
    %v4607 = vtanh.pop %v4591
    %v4608 = vtanh.pop %v4592
    %v4609 = vtanh.pop %v4593
    %v4610 = vtanh.pop %v4594
    %v4611 = vtanh.pop %v4595
    %v4612 = vtanh.pop %v4596
    %v4613 = vtanh.pop %v4597
    %v4614 = vtanh.pop %v4598
    %v4615 = vtanh.pop %v4599
    %v4616 = vtanh.pop %v4600
    %v4617 = vtanh.pop %v4601
    %v4618 = vtanh.pop %v4602
    %v4619 = vtanh.pop %v4603
    %v4620 = vtanh.pop %v4604
    %v4621 = vtanh.pop %v4605
    %v4622 = vtanh.pop %v4606
    %v4623 = vmul.f32 %v4607, 0.5
    %v4624 = vmul.f32 %v4608, 0.5
    %v4625 = vmul.f32 %v4609, 0.5
    %v4626 = vmul.f32 %v4610, 0.5
    %v4627 = vmul.f32 %v4611, 0.5
    %v4628 = vmul.f32 %v4612, 0.5
    %v4629 = vmul.f32 %v4613, 0.5
    %v4630 = vmul.f32 %v4614, 0.5
    %v4631 = vmul.f32 %v4615, 0.5
    %v4632 = vmul.f32 %v4616, 0.5
    %v4633 = vmul.f32 %v4617, 0.5
    %v4634 = vmul.f32 %v4618, 0.5
    %v4635 = vmul.f32 %v4619, 0.5
    %v4636 = vmul.f32 %v4620, 0.5
    %v4637 = vmul.f32 %v4621, 0.5
    %v4638 = vmul.f32 %v4622, 0.5
    %v4639 = vadd.f32 %v4623, 0.5
    %v4640 = vadd.f32 %v4624, 0.5
    %v4641 = vadd.f32 %v4625, 0.5
    %v4642 = vadd.f32 %v4626, 0.5
    %v4643 = vadd.f32 %v4627, 0.5
    %v4644 = vadd.f32 %v4628, 0.5
    %v4645 = vadd.f32 %v4629, 0.5
    %v4646 = vadd.f32 %v4630, 0.5
    %v4647 = vadd.f32 %v4631, 0.5
    %v4648 = vadd.f32 %v4632, 0.5
    %v4649 = vadd.f32 %v4633, 0.5
    %v4650 = vadd.f32 %v4634, 0.5
    %v4651 = vadd.f32 %v4635, 0.5
    %v4652 = vadd.f32 %v4636, 0.5
    %v4653 = vadd.f32 %v4637, 0.5
    %v4654 = vadd.f32 %v4638, 0.5
    %v4655 = vtanh.pop %v4575
    %v4656 = vtanh.pop %v4576
    %v4657 = vtanh.pop %v4577
    %v4658 = vtanh.pop %v4578
    %v4659 = vtanh.pop %v4579
    %v4660 = vtanh.pop %v4580
    %v4661 = vtanh.pop %v4581
    %v4662 = vtanh.pop %v4582
    %v4663 = vtanh.pop %v4583
    %v4664 = vtanh.pop %v4584
    %v4665 = vtanh.pop %v4585
    %v4666 = vtanh.pop %v4586
    %v4667 = vtanh.pop %v4587
    %v4668 = vtanh.pop %v4588
    %v4669 = vtanh.pop %v4589
    %v4670 = vtanh.pop %v4590
    %v4671 = vmul.f32 %v4639, %v4655
    %v4672 = vmul.f32 %v4640, %v4656
    %v4673 = vmul.f32 %v4641, %v4657
    %v4674 = vmul.f32 %v4642, %v4658
    %v4675 = vmul.f32 %v4643, %v4659
    %v4676 = vmul.f32 %v4644, %v4660
    %v4677 = vmul.f32 %v4645, %v4661
    %v4678 = vmul.f32 %v4646, %v4662
    %v4679 = vmul.f32 %v4647, %v4663
    %v4680 = vmul.f32 %v4648, %v4664
    %v4681 = vmul.f32 %v4649, %v4665
    %v4682 = vmul.f32 %v4650, %v4666
    %v4683 = vmul.f32 %v4651, %v4667
    %v4684 = vmul.f32 %v4652, %v4668
    %v4685 = vmul.f32 %v4653, %v4669
    %v4686 = vmul.f32 %v4654, %v4670
    %v4687 = vpack.c.bf16 %v4672, %v4671
    %v4688 = vpack.c.bf16 %v4674, %v4673
    %v4689 = vpack.c.bf16 %v4676, %v4675
    %v4690 = vpack.c.bf16 %v4678, %v4677
    %v4691 = vpack.c.bf16 %v4680, %v4679
    %v4692 = vpack.c.bf16 %v4682, %v4681
    %v4693 = vpack.c.bf16 %v4684, %v4683
    %v4694 = vpack.c.bf16 %v4686, %v4685
    %4695 = vmatprep.subr.bf16.mxu0 %v237
    %4696 = vmatpush1.bf16.msra.mxu0 %v236
    %4697 = vmatprep.subr.bf16.mxu0 %v233
    %4698 = vmatpush1.bf16.msra.mxu0 %v232
    %4699 = vmatprep.subr.bf16.mxu0 %v229
    %4700 = vmatpush1.bf16.msra.mxu0 %v228
    %4701 = vmatprep.subr.bf16.mxu0 %v225
    %4702 = vmatpush1.bf16.msra.mxu0 %v224
    %4703 = vmatprep.subr.bf16.mxu0 %v221
    %4704 = vmatpush1.bf16.msra.mxu0 %v220
    %4705 = vmatprep.subr.bf16.mxu0 %v217
    %4706 = vmatpush1.bf16.msra.mxu0 %v216
    %4707 = vmatprep.subr.bf16.mxu0 %v213
    %4708 = vmatpush1.bf16.msra.mxu0 %v212
    %4709 = vmatprep.subr.bf16.mxu0 %v209
    %4710 = vmatpush1.bf16.msra.mxu0 %v208
    %4711 = vmatprep.subr.bf16.mxu0 0
    %4712 = vmatpush2.bf16.msra.mxu0 0
    %4713 = vmatprep.subr.bf16.mxu0 0
    %4714 = vmatpush2.bf16.msra.mxu0 0
    %4715 = vmatprep.subr.bf16.mxu0 0
    %4716 = vmatpush2.bf16.msra.mxu0 0
    %4717 = vmatprep.subr.bf16.mxu0 0
    %4718 = vmatpush2.bf16.msra.mxu0 0
    %4719 = vmatprep.subr.bf16.mxu0 0
    %4720 = vmatpush2.bf16.msra.mxu0 0
    %4721 = vmatprep.subr.bf16.mxu0 0
    %4722 = vmatpush2.bf16.msra.mxu0 0
    %4723 = vmatprep.subr.bf16.mxu0 0
    %4724 = vmatpush2.bf16.msra.mxu0 0
    %4725 = vmatprep.subr.bf16.mxu0 0
    %4726 = vmatpush2.bf16.msra.mxu0 0
    %4727 = vmatprep.mubr.bf16.mxu0 0
    %4728 = vmatmul.mubr.bf16.gmra.mxu0 %v4687
    %v4729 = vpop.f32.mrf.mxu0
    %v4730 = vadd.f32 %v48, %v4729
    %v4731 = vpop.f32.mrf.mxu0
    %v4732 = vadd.f32 %v49, %v4731
    %v4733 = vpop.f32.mrf.mxu0
    %v4734 = vadd.f32 %v52, %v4733
    %v4735 = vpop.f32.mrf.mxu0
    %v4736 = vadd.f32 %v53, %v4735
    %4737 = vmatprep.mubr.bf16.mxu0 0
    %4738 = vmatmul.mubr.bf16.gmra.mxu0 %v4688
    %v4739 = vpop.f32.mrf.mxu0
    %v4740 = vadd.f32 %v56, %v4739
    %v4741 = vpop.f32.mrf.mxu0
    %v4742 = vadd.f32 %v57, %v4741
    %v4743 = vpop.f32.mrf.mxu0
    %v4744 = vadd.f32 %v60, %v4743
    %v4745 = vpop.f32.mrf.mxu0
    %v4746 = vadd.f32 %v61, %v4745
    %4747 = vmatprep.mubr.bf16.mxu0 0
    %4748 = vmatmul.mubr.bf16.gmra.mxu0 %v4689
    %v4749 = vpop.f32.mrf.mxu0
    %v4750 = vadd.f32 %v64, %v4749
    %v4751 = vpop.f32.mrf.mxu0
    %v4752 = vadd.f32 %v65, %v4751
    %v4753 = vpop.f32.mrf.mxu0
    %v4754 = vadd.f32 %v68, %v4753
    %v4755 = vpop.f32.mrf.mxu0
    %v4756 = vadd.f32 %v69, %v4755
    %4757 = vmatprep.mubr.bf16.mxu0 0
    %4758 = vmatmul.mubr.bf16.gmra.mxu0 %v4690
    %v4759 = vpop.f32.mrf.mxu0
    %v4760 = vadd.f32 %v72, %v4759
    %v4761 = vpop.f32.mrf.mxu0
    %v4762 = vadd.f32 %v73, %v4761
    %v4763 = vpop.f32.mrf.mxu0
    %v4764 = vadd.f32 %v76, %v4763
    %v4765 = vpop.f32.mrf.mxu0
    %v4766 = vadd.f32 %v77, %v4765
    %4767 = vmatprep.mubr.bf16.mxu0 0
    %4768 = vmatmul.mubr.bf16.gmra.mxu0 %v4691
    %v4769 = vpop.f32.mrf.mxu0
    %v4770 = vadd.f32 %v80, %v4769
    %v4771 = vpop.f32.mrf.mxu0
    %v4772 = vadd.f32 %v81, %v4771
    %v4773 = vpop.f32.mrf.mxu0
    %v4774 = vadd.f32 %v84, %v4773
    %v4775 = vpop.f32.mrf.mxu0
    %v4776 = vadd.f32 %v85, %v4775
    %4777 = vmatprep.mubr.bf16.mxu0 0
    %4778 = vmatmul.mubr.bf16.gmra.mxu0 %v4692
    %v4779 = vpop.f32.mrf.mxu0
    %v4780 = vadd.f32 %v88, %v4779
    %v4781 = vpop.f32.mrf.mxu0
    %v4782 = vadd.f32 %v89, %v4781
    %v4783 = vpop.f32.mrf.mxu0
    %v4784 = vadd.f32 %v92, %v4783
    %v4785 = vpop.f32.mrf.mxu0
    %v4786 = vadd.f32 %v93, %v4785
    %4787 = vmatprep.mubr.bf16.mxu0 0
    %4788 = vmatmul.mubr.bf16.gmra.mxu0 %v4693
    %v4789 = vpop.f32.mrf.mxu0
    %v4790 = vadd.f32 %v96, %v4789
    %v4791 = vpop.f32.mrf.mxu0
    %v4792 = vadd.f32 %v97, %v4791
    %v4793 = vpop.f32.mrf.mxu0
    %v4794 = vadd.f32 %v100, %v4793
    %v4795 = vpop.f32.mrf.mxu0
    %v4796 = vadd.f32 %v101, %v4795
    %4797 = vmatprep.mubr.bf16.mxu0 0
    %4798 = vmatmul.mubr.bf16.gmra.mxu0 %v4694
    %v4799 = vpop.f32.mrf.mxu0
    %v4800 = vadd.f32 %v104, %v4799
    %v4801 = vpop.f32.mrf.mxu0
    %v4802 = vadd.f32 %v105, %v4801
    %v4803 = vpop.f32.mrf.mxu0
    %v4804 = vadd.f32 %v108, %v4803
    %v4805 = vpop.f32.mrf.mxu0
    %v4806 = vadd.f32 %v109, %v4805
    %4807 = vdwg.mxu0
    %4808 = vmatprep.subr.bf16.mxu0 %v239
    %4809 = vmatpush1.bf16.msra.mxu0 %v238
    %4810 = vmatprep.subr.bf16.mxu0 %v235
    %4811 = vmatpush1.bf16.msra.mxu0 %v234
    %4812 = vmatprep.subr.bf16.mxu0 %v231
    %4813 = vmatpush1.bf16.msra.mxu0 %v230
    %4814 = vmatprep.subr.bf16.mxu0 %v227
    %4815 = vmatpush1.bf16.msra.mxu0 %v226
    %4816 = vmatprep.subr.bf16.mxu0 %v223
    %4817 = vmatpush1.bf16.msra.mxu0 %v222
    %4818 = vmatprep.subr.bf16.mxu0 %v219
    %4819 = vmatpush1.bf16.msra.mxu0 %v218
    %4820 = vmatprep.subr.bf16.mxu0 %v215
    %4821 = vmatpush1.bf16.msra.mxu0 %v214
    %4822 = vmatprep.subr.bf16.mxu0 %v211
    %4823 = vmatpush1.bf16.msra.mxu0 %v210
    %4824 = vmatprep.subr.bf16.mxu0 0
    %4825 = vmatpush2.bf16.msra.mxu0 0
    %4826 = vmatprep.subr.bf16.mxu0 0
    %4827 = vmatpush2.bf16.msra.mxu0 0
    %4828 = vmatprep.subr.bf16.mxu0 0
    %4829 = vmatpush2.bf16.msra.mxu0 0
    %4830 = vmatprep.subr.bf16.mxu0 0
    %4831 = vmatpush2.bf16.msra.mxu0 0
    %4832 = vmatprep.subr.bf16.mxu0 0
    %4833 = vmatpush2.bf16.msra.mxu0 0
    %4834 = vmatprep.subr.bf16.mxu0 0
    %4835 = vmatpush2.bf16.msra.mxu0 0
    %4836 = vmatprep.subr.bf16.mxu0 0
    %4837 = vmatpush2.bf16.msra.mxu0 0
    %4838 = vmatprep.subr.bf16.mxu0 0
    %4839 = vmatpush2.bf16.msra.mxu0 0
    %4840 = vmatprep.mubr.bf16.mxu0 0
    %4841 = vmatmul.mubr.bf16.gmra.mxu0 %v4687
    %v4842 = vpop.f32.mrf.mxu0
    %v4843 = vadd.f32 %v50, %v4842
    %v4844 = vpop.f32.mrf.mxu0
    %v4845 = vadd.f32 %v51, %v4844
    %v4846 = vpop.f32.mrf.mxu0
    %v4847 = vadd.f32 %v54, %v4846
    %v4848 = vpop.f32.mrf.mxu0
    %v4849 = vadd.f32 %v55, %v4848
    %4850 = vmatprep.mubr.bf16.mxu0 0
    %4851 = vmatmul.mubr.bf16.gmra.mxu0 %v4688
    %v4852 = vpop.f32.mrf.mxu0
    %v4853 = vadd.f32 %v58, %v4852
    %v4854 = vpop.f32.mrf.mxu0
    %v4855 = vadd.f32 %v59, %v4854
    %v4856 = vpop.f32.mrf.mxu0
    %v4857 = vadd.f32 %v62, %v4856
    %v4858 = vpop.f32.mrf.mxu0
    %v4859 = vadd.f32 %v63, %v4858
    %4860 = vmatprep.mubr.bf16.mxu0 0
    %4861 = vmatmul.mubr.bf16.gmra.mxu0 %v4689
    %v4862 = vpop.f32.mrf.mxu0
    %v4863 = vadd.f32 %v66, %v4862
    %v4864 = vpop.f32.mrf.mxu0
    %v4865 = vadd.f32 %v67, %v4864
    %v4866 = vpop.f32.mrf.mxu0
    %v4867 = vadd.f32 %v70, %v4866
    %v4868 = vpop.f32.mrf.mxu0
    %v4869 = vadd.f32 %v71, %v4868
    %4870 = vmatprep.mubr.bf16.mxu0 0
    %4871 = vmatmul.mubr.bf16.gmra.mxu0 %v4690
    %v4872 = vpop.f32.mrf.mxu0
    %v4873 = vadd.f32 %v74, %v4872
    %v4874 = vpop.f32.mrf.mxu0
    %v4875 = vadd.f32 %v75, %v4874
    %v4876 = vpop.f32.mrf.mxu0
    %v4877 = vadd.f32 %v78, %v4876
    %v4878 = vpop.f32.mrf.mxu0
    %v4879 = vadd.f32 %v79, %v4878
    %4880 = vmatprep.mubr.bf16.mxu0 0
    %4881 = vmatmul.mubr.bf16.gmra.mxu0 %v4691
    %v4882 = vpop.f32.mrf.mxu0
    %v4883 = vadd.f32 %v82, %v4882
    %v4884 = vpop.f32.mrf.mxu0
    %v4885 = vadd.f32 %v83, %v4884
    %v4886 = vpop.f32.mrf.mxu0
    %v4887 = vadd.f32 %v86, %v4886
    %v4888 = vpop.f32.mrf.mxu0
    %v4889 = vadd.f32 %v87, %v4888
    %4890 = vmatprep.mubr.bf16.mxu0 0
    %4891 = vmatmul.mubr.bf16.gmra.mxu0 %v4692
    %v4892 = vpop.f32.mrf.mxu0
    %v4893 = vadd.f32 %v90, %v4892
    %v4894 = vpop.f32.mrf.mxu0
    %v4895 = vadd.f32 %v91, %v4894
    %v4896 = vpop.f32.mrf.mxu0
    %v4897 = vadd.f32 %v94, %v4896
    %v4898 = vpop.f32.mrf.mxu0
    %v4899 = vadd.f32 %v95, %v4898
    %4900 = vmatprep.mubr.bf16.mxu0 0
    %4901 = vmatmul.mubr.bf16.gmra.mxu0 %v4693
    %v4902 = vpop.f32.mrf.mxu0
    %v4903 = vadd.f32 %v98, %v4902
    %v4904 = vpop.f32.mrf.mxu0
    %v4905 = vadd.f32 %v99, %v4904
    %v4906 = vpop.f32.mrf.mxu0
    %v4907 = vadd.f32 %v102, %v4906
    %v4908 = vpop.f32.mrf.mxu0
    %v4909 = vadd.f32 %v103, %v4908
    %4910 = vmatprep.mubr.bf16.mxu0 0
    %4911 = vmatmul.mubr.bf16.gmra.mxu0 %v4694
    %v4912 = vpop.f32.mrf.mxu0
    %v4913 = vadd.f32 %v106, %v4912
    %v4914 = vpop.f32.mrf.mxu0
    %v4915 = vadd.f32 %v107, %v4914
    %v4916 = vpop.f32.mrf.mxu0
    %v4917 = vadd.f32 %v110, %v4916
    %v4918 = vpop.f32.mrf.mxu0
    %v4919 = vadd.f32 %v111, %v4918
    %4920 = vdwg.mxu0
    %s4921 = scalar_lea.vmem %s0, 7
    %v4922 = vld [vmem:[%s4921] ss:$8 sm:$0xf]
    %v4924 = vlaneseq
    %v4925 = vshrl.u32 %v4924, 7
    %v4926 = vsub.s32 0, %v4925
    %v4927 = vrot.slane %v4922, %v4926
    %v4928 = vlaneseq
    %v4929 = vshrl.u32 %v4928, 7
    %v4930 = vsub.s32 1, %v4929
    %v4931 = vrot.slane %v4922, %v4930
    %v4932 = vlaneseq
    %v4933 = vshrl.u32 %v4932, 7
    %v4934 = vsub.s32 2, %v4933
    %v4935 = vrot.slane %v4922, %v4934
    %v4936 = vlaneseq
    %v4937 = vshrl.u32 %v4936, 7
    %v4938 = vsub.s32 3, %v4937
    %v4939 = vrot.slane %v4922, %v4938
    %s4944 = scalar_lea.vmem %s520, 7
    %v4945 = vld [vmem:[%s4944] ss:$8 sm:$0xf]
    %v4947 = vlaneseq
    %v4948 = vshrl.u32 %v4947, 7
    %v4949 = vsub.s32 0, %v4948
    %v4950 = vrot.slane %v4945, %v4949
    %v4951 = vlaneseq
    %v4952 = vshrl.u32 %v4951, 7
    %v4953 = vsub.s32 1, %v4952
    %v4954 = vrot.slane %v4945, %v4953
    %v4955 = vlaneseq
    %v4956 = vshrl.u32 %v4955, 7
    %v4957 = vsub.s32 2, %v4956
    %v4958 = vrot.slane %v4945, %v4957
    %v4959 = vlaneseq
    %v4960 = vshrl.u32 %v4959, 7
    %v4961 = vsub.s32 3, %v4960
    %v4962 = vrot.slane %v4945, %v4961
    %v4967 = vadd.f32 %v4730, %v4927
    %v4968 = vadd.f32 %v4732, %v4931
    %v4969 = vadd.f32 %v4843, %v4935
    %v4970 = vadd.f32 %v4845, %v4939
    %v4971 = vadd.f32 %v4734, %v4927
    %v4972 = vadd.f32 %v4736, %v4931
    %v4973 = vadd.f32 %v4847, %v4935
    %v4974 = vadd.f32 %v4849, %v4939
    %v4975 = vadd.f32 %v4740, %v4927
    %v4976 = vadd.f32 %v4742, %v4931
    %v4977 = vadd.f32 %v4853, %v4935
    %v4978 = vadd.f32 %v4855, %v4939
    %v4979 = vadd.f32 %v4744, %v4927
    %v4980 = vadd.f32 %v4746, %v4931
    %v4981 = vadd.f32 %v4857, %v4935
    %v4982 = vadd.f32 %v4859, %v4939
    %v4983 = vadd.f32 %v4750, %v4927
    %v4984 = vadd.f32 %v4752, %v4931
    %v4985 = vadd.f32 %v4863, %v4935
    %v4986 = vadd.f32 %v4865, %v4939
    %v4987 = vadd.f32 %v4754, %v4927
    %v4988 = vadd.f32 %v4756, %v4931
    %v4989 = vadd.f32 %v4867, %v4935
    %v4990 = vadd.f32 %v4869, %v4939
    %v4991 = vadd.f32 %v4760, %v4927
    %v4992 = vadd.f32 %v4762, %v4931
    %v4993 = vadd.f32 %v4873, %v4935
    %v4994 = vadd.f32 %v4875, %v4939
    %v4995 = vadd.f32 %v4764, %v4927
    %v4996 = vadd.f32 %v4766, %v4931
    %v4997 = vadd.f32 %v4877, %v4935
    %v4998 = vadd.f32 %v4879, %v4939
    %v4999 = vadd.f32 %v4770, %v4950
    %v5000 = vadd.f32 %v4772, %v4954
    %v5001 = vadd.f32 %v4883, %v4958
    %v5002 = vadd.f32 %v4885, %v4962
    %v5003 = vadd.f32 %v4774, %v4950
    %v5004 = vadd.f32 %v4776, %v4954
    %v5005 = vadd.f32 %v4887, %v4958
    %v5006 = vadd.f32 %v4889, %v4962
    %v5007 = vadd.f32 %v4780, %v4950
    %v5008 = vadd.f32 %v4782, %v4954
    %v5009 = vadd.f32 %v4893, %v4958
    %v5010 = vadd.f32 %v4895, %v4962
    %v5011 = vadd.f32 %v4784, %v4950
    %v5012 = vadd.f32 %v4786, %v4954
    %v5013 = vadd.f32 %v4897, %v4958
    %v5014 = vadd.f32 %v4899, %v4962
    %v5015 = vadd.f32 %v4790, %v4950
    %v5016 = vadd.f32 %v4792, %v4954
    %v5017 = vadd.f32 %v4903, %v4958
    %v5018 = vadd.f32 %v4905, %v4962
    %v5019 = vadd.f32 %v4794, %v4950
    %v5020 = vadd.f32 %v4796, %v4954
    %v5021 = vadd.f32 %v4907, %v4958
    %v5022 = vadd.f32 %v4909, %v4962
    %v5023 = vadd.f32 %v4800, %v4950
    %v5024 = vadd.f32 %v4802, %v4954
    %v5025 = vadd.f32 %v4913, %v4958
    %v5026 = vadd.f32 %v4915, %v4962
    %v5027 = vadd.f32 %v4804, %v4950
    %v5028 = vadd.f32 %v4806, %v4954
    %v5029 = vadd.f32 %v4917, %v4958
    %v5030 = vadd.f32 %v4919, %v4962
    %v5031 = vmul.f32 %v4968, 0.5
    %v5032 = vmul.f32 %v4972, 0.5
    %v5033 = vmul.f32 %v4976, 0.5
    %v5034 = vmul.f32 %v4980, 0.5
    %v5035 = vmul.f32 %v4984, 0.5
    %v5036 = vmul.f32 %v4988, 0.5
    %v5037 = vmul.f32 %v4992, 0.5
    %v5038 = vmul.f32 %v4996, 0.5
    %v5039 = vmul.f32 %v5000, 0.5
    %v5040 = vmul.f32 %v5004, 0.5
    %v5041 = vmul.f32 %v5008, 0.5
    %v5042 = vmul.f32 %v5012, 0.5
    %v5043 = vmul.f32 %v5016, 0.5
    %v5044 = vmul.f32 %v5020, 0.5
    %v5045 = vmul.f32 %v5024, 0.5
    %v5046 = vmul.f32 %v5028, 0.5
    %v5047 = vtanh.pop %v5031
    %v5048 = vtanh.pop %v5032
    %v5049 = vtanh.pop %v5033
    %v5050 = vtanh.pop %v5034
    %v5051 = vtanh.pop %v5035
    %v5052 = vtanh.pop %v5036
    %v5053 = vtanh.pop %v5037
    %v5054 = vtanh.pop %v5038
    %v5055 = vtanh.pop %v5039
    %v5056 = vtanh.pop %v5040
    %v5057 = vtanh.pop %v5041
    %v5058 = vtanh.pop %v5042
    %v5059 = vtanh.pop %v5043
    %v5060 = vtanh.pop %v5044
    %v5061 = vtanh.pop %v5045
    %v5062 = vtanh.pop %v5046
    %v5063 = vmul.f32 %v5047, 0.5
    %v5064 = vmul.f32 %v5048, 0.5
    %v5065 = vmul.f32 %v5049, 0.5
    %v5066 = vmul.f32 %v5050, 0.5
    %v5067 = vmul.f32 %v5051, 0.5
    %v5068 = vmul.f32 %v5052, 0.5
    %v5069 = vmul.f32 %v5053, 0.5
    %v5070 = vmul.f32 %v5054, 0.5
    %v5071 = vmul.f32 %v5055, 0.5
    %v5072 = vmul.f32 %v5056, 0.5
    %v5073 = vmul.f32 %v5057, 0.5
    %v5074 = vmul.f32 %v5058, 0.5
    %v5075 = vmul.f32 %v5059, 0.5
    %v5076 = vmul.f32 %v5060, 0.5
    %v5077 = vmul.f32 %v5061, 0.5
    %v5078 = vmul.f32 %v5062, 0.5
    %v5079 = vadd.f32 %v5063, 0.5
    %v5080 = vadd.f32 %v5064, 0.5
    %v5081 = vadd.f32 %v5065, 0.5
    %v5082 = vadd.f32 %v5066, 0.5
    %v5083 = vadd.f32 %v5067, 0.5
    %v5084 = vadd.f32 %v5068, 0.5
    %v5085 = vadd.f32 %v5069, 0.5
    %v5086 = vadd.f32 %v5070, 0.5
    %v5087 = vadd.f32 %v5071, 0.5
    %v5088 = vadd.f32 %v5072, 0.5
    %v5089 = vadd.f32 %v5073, 0.5
    %v5090 = vadd.f32 %v5074, 0.5
    %v5091 = vadd.f32 %v5075, 0.5
    %v5092 = vadd.f32 %v5076, 0.5
    %v5093 = vadd.f32 %v5077, 0.5
    %v5094 = vadd.f32 %v5078, 0.5
    %v5095 = vmul.f32 %v5079, %v4575
    %v5096 = vmul.f32 %v5080, %v4576
    %v5097 = vmul.f32 %v5081, %v4577
    %v5098 = vmul.f32 %v5082, %v4578
    %v5099 = vmul.f32 %v5083, %v4579
    %v5100 = vmul.f32 %v5084, %v4580
    %v5101 = vmul.f32 %v5085, %v4581
    %v5102 = vmul.f32 %v5086, %v4582
    %v5103 = vmul.f32 %v5087, %v4583
    %v5104 = vmul.f32 %v5088, %v4584
    %v5105 = vmul.f32 %v5089, %v4585
    %v5106 = vmul.f32 %v5090, %v4586
    %v5107 = vmul.f32 %v5091, %v4587
    %v5108 = vmul.f32 %v5092, %v4588
    %v5109 = vmul.f32 %v5093, %v4589
    %v5110 = vmul.f32 %v5094, %v4590
    %v5111 = vmul.f32 %v4967, 0.5
    %v5112 = vmul.f32 %v4971, 0.5
    %v5113 = vmul.f32 %v4975, 0.5
    %v5114 = vmul.f32 %v4979, 0.5
    %v5115 = vmul.f32 %v4983, 0.5
    %v5116 = vmul.f32 %v4987, 0.5
    %v5117 = vmul.f32 %v4991, 0.5
    %v5118 = vmul.f32 %v4995, 0.5
    %v5119 = vmul.f32 %v4999, 0.5
    %v5120 = vmul.f32 %v5003, 0.5
    %v5121 = vmul.f32 %v5007, 0.5
    %v5122 = vmul.f32 %v5011, 0.5
    %v5123 = vmul.f32 %v5015, 0.5
    %v5124 = vmul.f32 %v5019, 0.5
    %v5125 = vmul.f32 %v5023, 0.5
    %v5126 = vmul.f32 %v5027, 0.5
    %v5127 = vtanh.pop %v5111
    %v5128 = vtanh.pop %v5112
    %v5129 = vtanh.pop %v5113
    %v5130 = vtanh.pop %v5114
    %v5131 = vtanh.pop %v5115
    %v5132 = vtanh.pop %v5116
    %v5133 = vtanh.pop %v5117
    %v5134 = vtanh.pop %v5118
    %v5135 = vtanh.pop %v5119
    %v5136 = vtanh.pop %v5120
    %v5137 = vtanh.pop %v5121
    %v5138 = vtanh.pop %v5122
    %v5139 = vtanh.pop %v5123
    %v5140 = vtanh.pop %v5124
    %v5141 = vtanh.pop %v5125
    %v5142 = vtanh.pop %v5126
    %v5143 = vmul.f32 %v5127, 0.5
    %v5144 = vmul.f32 %v5128, 0.5
    %v5145 = vmul.f32 %v5129, 0.5
    %v5146 = vmul.f32 %v5130, 0.5
    %v5147 = vmul.f32 %v5131, 0.5
    %v5148 = vmul.f32 %v5132, 0.5
    %v5149 = vmul.f32 %v5133, 0.5
    %v5150 = vmul.f32 %v5134, 0.5
    %v5151 = vmul.f32 %v5135, 0.5
    %v5152 = vmul.f32 %v5136, 0.5
    %v5153 = vmul.f32 %v5137, 0.5
    %v5154 = vmul.f32 %v5138, 0.5
    %v5155 = vmul.f32 %v5139, 0.5
    %v5156 = vmul.f32 %v5140, 0.5
    %v5157 = vmul.f32 %v5141, 0.5
    %v5158 = vmul.f32 %v5142, 0.5
    %v5159 = vadd.f32 %v5143, 0.5
    %v5160 = vadd.f32 %v5144, 0.5
    %v5161 = vadd.f32 %v5145, 0.5
    %v5162 = vadd.f32 %v5146, 0.5
    %v5163 = vadd.f32 %v5147, 0.5
    %v5164 = vadd.f32 %v5148, 0.5
    %v5165 = vadd.f32 %v5149, 0.5
    %v5166 = vadd.f32 %v5150, 0.5
    %v5167 = vadd.f32 %v5151, 0.5
    %v5168 = vadd.f32 %v5152, 0.5
    %v5169 = vadd.f32 %v5153, 0.5
    %v5170 = vadd.f32 %v5154, 0.5
    %v5171 = vadd.f32 %v5155, 0.5
    %v5172 = vadd.f32 %v5156, 0.5
    %v5173 = vadd.f32 %v5157, 0.5
    %v5174 = vadd.f32 %v5158, 0.5
    %v5175 = vtanh.pop %v4969
    %v5176 = vtanh.pop %v4973
    %v5177 = vtanh.pop %v4977
    %v5178 = vtanh.pop %v4981
    %v5179 = vtanh.pop %v4985
    %v5180 = vtanh.pop %v4989
    %v5181 = vtanh.pop %v4993
    %v5182 = vtanh.pop %v4997
    %v5183 = vtanh.pop %v5001
    %v5184 = vtanh.pop %v5005
    %v5185 = vtanh.pop %v5009
    %v5186 = vtanh.pop %v5013
    %v5187 = vtanh.pop %v5017
    %v5188 = vtanh.pop %v5021
    %v5189 = vtanh.pop %v5025
    %v5190 = vtanh.pop %v5029
    %v5191 = vmul.f32 %v5159, %v5175
    %v5192 = vmul.f32 %v5160, %v5176
    %v5193 = vmul.f32 %v5161, %v5177
    %v5194 = vmul.f32 %v5162, %v5178
    %v5195 = vmul.f32 %v5163, %v5179
    %v5196 = vmul.f32 %v5164, %v5180
    %v5197 = vmul.f32 %v5165, %v5181
    %v5198 = vmul.f32 %v5166, %v5182
    %v5199 = vmul.f32 %v5167, %v5183
    %v5200 = vmul.f32 %v5168, %v5184
    %v5201 = vmul.f32 %v5169, %v5185
    %v5202 = vmul.f32 %v5170, %v5186
    %v5203 = vmul.f32 %v5171, %v5187
    %v5204 = vmul.f32 %v5172, %v5188
    %v5205 = vmul.f32 %v5173, %v5189
    %v5206 = vmul.f32 %v5174, %v5190
    %v5207 = vadd.f32 %v5095, %v5191
    %v5208 = vadd.f32 %v5096, %v5192
    %v5209 = vadd.f32 %v5097, %v5193
    %v5210 = vadd.f32 %v5098, %v5194
    %v5211 = vadd.f32 %v5099, %v5195
    %v5212 = vadd.f32 %v5100, %v5196
    %v5213 = vadd.f32 %v5101, %v5197
    %v5214 = vadd.f32 %v5102, %v5198
    %v5215 = vadd.f32 %v5103, %v5199
    %v5216 = vadd.f32 %v5104, %v5200
    %v5217 = vadd.f32 %v5105, %v5201
    %v5218 = vadd.f32 %v5106, %v5202
    %v5219 = vadd.f32 %v5107, %v5203
    %v5220 = vadd.f32 %v5108, %v5204
    %v5221 = vadd.f32 %v5109, %v5205
    %v5222 = vadd.f32 %v5110, %v5206
    %v5223 = vmul.f32 %v4970, 0.5
    %v5224 = vmul.f32 %v4974, 0.5
    %v5225 = vmul.f32 %v4978, 0.5
    %v5226 = vmul.f32 %v4982, 0.5
    %v5227 = vmul.f32 %v4986, 0.5
    %v5228 = vmul.f32 %v4990, 0.5
    %v5229 = vmul.f32 %v4994, 0.5
    %v5230 = vmul.f32 %v4998, 0.5
    %v5231 = vmul.f32 %v5002, 0.5
    %v5232 = vmul.f32 %v5006, 0.5
    %v5233 = vmul.f32 %v5010, 0.5
    %v5234 = vmul.f32 %v5014, 0.5
    %v5235 = vmul.f32 %v5018, 0.5
    %v5236 = vmul.f32 %v5022, 0.5
    %v5237 = vmul.f32 %v5026, 0.5
    %v5238 = vmul.f32 %v5030, 0.5
    %v5239 = vtanh.pop %v5223
    %v5240 = vtanh.pop %v5224
    %v5241 = vtanh.pop %v5225
    %v5242 = vtanh.pop %v5226
    %v5243 = vtanh.pop %v5227
    %v5244 = vtanh.pop %v5228
    %v5245 = vtanh.pop %v5229
    %v5246 = vtanh.pop %v5230
    %v5247 = vtanh.pop %v5231
    %v5248 = vtanh.pop %v5232
    %v5249 = vtanh.pop %v5233
    %v5250 = vtanh.pop %v5234
    %v5251 = vtanh.pop %v5235
    %v5252 = vtanh.pop %v5236
    %v5253 = vtanh.pop %v5237
    %v5254 = vtanh.pop %v5238
    %v5255 = vmul.f32 %v5239, 0.5
    %v5256 = vmul.f32 %v5240, 0.5
    %v5257 = vmul.f32 %v5241, 0.5
    %v5258 = vmul.f32 %v5242, 0.5
    %v5259 = vmul.f32 %v5243, 0.5
    %v5260 = vmul.f32 %v5244, 0.5
    %v5261 = vmul.f32 %v5245, 0.5
    %v5262 = vmul.f32 %v5246, 0.5
    %v5263 = vmul.f32 %v5247, 0.5
    %v5264 = vmul.f32 %v5248, 0.5
    %v5265 = vmul.f32 %v5249, 0.5
    %v5266 = vmul.f32 %v5250, 0.5
    %v5267 = vmul.f32 %v5251, 0.5
    %v5268 = vmul.f32 %v5252, 0.5
    %v5269 = vmul.f32 %v5253, 0.5
    %v5270 = vmul.f32 %v5254, 0.5
    %v5271 = vadd.f32 %v5255, 0.5
    %v5272 = vadd.f32 %v5256, 0.5
    %v5273 = vadd.f32 %v5257, 0.5
    %v5274 = vadd.f32 %v5258, 0.5
    %v5275 = vadd.f32 %v5259, 0.5
    %v5276 = vadd.f32 %v5260, 0.5
    %v5277 = vadd.f32 %v5261, 0.5
    %v5278 = vadd.f32 %v5262, 0.5
    %v5279 = vadd.f32 %v5263, 0.5
    %v5280 = vadd.f32 %v5264, 0.5
    %v5281 = vadd.f32 %v5265, 0.5
    %v5282 = vadd.f32 %v5266, 0.5
    %v5283 = vadd.f32 %v5267, 0.5
    %v5284 = vadd.f32 %v5268, 0.5
    %v5285 = vadd.f32 %v5269, 0.5
    %v5286 = vadd.f32 %v5270, 0.5
    %v5287 = vtanh.pop %v5207
    %v5288 = vtanh.pop %v5208
    %v5289 = vtanh.pop %v5209
    %v5290 = vtanh.pop %v5210
    %v5291 = vtanh.pop %v5211
    %v5292 = vtanh.pop %v5212
    %v5293 = vtanh.pop %v5213
    %v5294 = vtanh.pop %v5214
    %v5295 = vtanh.pop %v5215
    %v5296 = vtanh.pop %v5216
    %v5297 = vtanh.pop %v5217
    %v5298 = vtanh.pop %v5218
    %v5299 = vtanh.pop %v5219
    %v5300 = vtanh.pop %v5220
    %v5301 = vtanh.pop %v5221
    %v5302 = vtanh.pop %v5222
    %v5303 = vmul.f32 %v5271, %v5287
    %v5304 = vmul.f32 %v5272, %v5288
    %v5305 = vmul.f32 %v5273, %v5289
    %v5306 = vmul.f32 %v5274, %v5290
    %v5307 = vmul.f32 %v5275, %v5291
    %v5308 = vmul.f32 %v5276, %v5292
    %v5309 = vmul.f32 %v5277, %v5293
    %v5310 = vmul.f32 %v5278, %v5294
    %v5311 = vmul.f32 %v5279, %v5295
    %v5312 = vmul.f32 %v5280, %v5296
    %v5313 = vmul.f32 %v5281, %v5297
    %v5314 = vmul.f32 %v5282, %v5298
    %v5315 = vmul.f32 %v5283, %v5299
    %v5316 = vmul.f32 %v5284, %v5300
    %v5317 = vmul.f32 %v5285, %v5301
    %v5318 = vmul.f32 %v5286, %v5302
    %5319 = vst [vmem:[#allocation2] sm:$0xff] %v5303
    %5320 = vst [vmem:[#allocation2 + $0x8] sm:$0xff] %v5304
    %5321 = vst [vmem:[#allocation2 + $0x10] sm:$0xff] %v5305
    %5322 = vst [vmem:[#allocation2 + $0x18] sm:$0xff] %v5306
    %5323 = vst [vmem:[#allocation2 + $0x20] sm:$0xff] %v5307
    %5324 = vst [vmem:[#allocation2 + $0x28] sm:$0xff] %v5308
    %5325 = vst [vmem:[#allocation2 + $0x30] sm:$0xff] %v5309
    %5326 = vst [vmem:[#allocation2 + $0x38] sm:$0xff] %v5310
    %5327 = vst [vmem:[#allocation2 + $0x40] sm:$0xff] %v5311
    %5328 = vst [vmem:[#allocation2 + $0x48] sm:$0xff] %v5312
    %5329 = vst [vmem:[#allocation2 + $0x50] sm:$0xff] %v5313
    %5330 = vst [vmem:[#allocation2 + $0x58] sm:$0xff] %v5314
    %5331 = vst [vmem:[#allocation2 + $0x60] sm:$0xff] %v5315
    %5332 = vst [vmem:[#allocation2 + $0x68] sm:$0xff] %v5316
    %5333 = vst [vmem:[#allocation2 + $0x70] sm:$0xff] %v5317
    %5334 = vst [vmem:[#allocation2 + $0x78] sm:$0xff] %v5318
    // Predicated region
    $region14: #{rmi_forward.1} parent=1 // pred_check
      _
    $region15: #{rmi_forward.1} parent=1 // pred_check_branch
      %5336 = sbr.rel (0) target = $region17
    $region16: #{rmi_forward.1} parent=1 // pred_region
      %s5338 = ssub.s32 2048, 2048
      %5339 = vsyncadd [#allocation3], %s5338
      %s5340 = sshll.u32 [#allocation2], 4
      %s5341 = int_to_ptr.vmem [resolvable:$true] %s5340
      %5346 = dma.vmem_to_hbm [thread:$0]  %s5341, 2048, %s3, [#allocation3], 128, 128, 8
    $region17: #{rmi_forward.1} parent=1 // pred_fallthru
      _
    // Predicated region
    $region18: #{rmi_forward.1} parent=1 // pred_check
      _
    $region19: #{rmi_forward.1} parent=1 // pred_check_branch
      %5348 = sbr.rel (0) target = $region21
    $region20: #{rmi_forward.1} parent=1 // pred_region
      %5349 = dma.done [#allocation3], 2048
    $region21: #{rmi_forward.1} parent=1 // pred_fallthru
      _
    %5350 = vsyncpa [#allocation3], 1

</llo_original>
